<compile_context>
chip_gen: v6e
topology: v6e:2x2x1
jax: 0.10.0
libtpu: 0.0.40
codegen_flags: <defaults>
</compile_context>

<pallas_src>
import functools

import jax
import jax.numpy as jnp
from jax import lax
from jax.experimental import pallas as pl
from jax.experimental.pallas import tpu as pltpu


def _conv_in_relu_kernel(x_ref, w_ref, o_ref, *, cin, kh, kw, stride, hout, wout,
                         eps, fold_out):
    """One grid step: nb samples x cout_blk output channels.

    x_ref: (nb, Cin*stride*stride, Hq, Wq)  padded (+phase-split) input block
    w_ref: (cout_blk, K)                    conv weight rows, K = Cin*kh*kw
    o_ref: (nb, cout_blk, HW)    or    (nb, 1, cout_blk*HW) when fold_out
    """
    nb = x_ref.shape[0]
    cb = w_ref.shape[0]
    hw = hout * wout
    s = stride

    # In-kernel im2col: unit-stride slices of the VMEM-resident block, one row
    # per (cin, dy, dx), same order as weight.reshape(Cout, Cin*kh*kw).
    # TODO(synk): for very large K = Cin*kh*kw this static unroll should become
    # a chunked loop accumulating partial matmuls.
    rows = []
    for c in range(cin):
        for dy in range(kh):
            qy, ry = divmod(dy, s)
            for dx in range(kw):
                qx, rx = divmod(dx, s)
                chan = (c * s + ry) * s + rx
                slab = x_ref[:, chan, qy:qy + hout, qx:qx + wout]  # (nb,hout,wout)
                rows.append(slab.reshape(1, nb * hw))
    patches = jnp.concatenate(rows, axis=0)        # (K, nb*HW), lane-dense

    # One wide MXU matmul (weight stays in the input dtype; f32 accumulation).
    conv = jnp.dot(w_ref[...], patches,
                   preferred_element_type=jnp.float32)             # (cb, nb*HW)
    conv = conv.reshape(cb, nb, hw)

    # InstanceNorm2d(affine=False): per-(sample, channel) stats over HW, biased
    # variance, eps inside rsqrt (PyTorch defaults).  The conv bias is omitted:
    # a per-channel constant cancels exactly under the mean subtraction.
    mean = jnp.mean(conv, axis=2, keepdims=True)
    cen = conv - mean
    var = jnp.mean(cen * cen, axis=2, keepdims=True)
    y = jnp.maximum(cen * lax.rsqrt(var + eps), 0.0)                # ReLU

    if nb == 1:
        y = y.reshape(1, cb, hw)            # same layout; avoids a transpose
    else:
        y = jnp.transpose(y, (1, 0, 2))     # (nb, cb, HW)

    if fold_out:
        o_ref[...] = y.reshape(nb, 1, cb * hw).astype(o_ref.dtype)
    else:
        o_ref[...] = y.astype(o_ref.dtype)


def _vmem_budget_bytes():
    """~75% of per-core VMEM (leave headroom for compiler internal scratch)."""
    cap = 64 << 20
    try:
        cap = int(getattr(pltpu.get_tpu_info(), "vmem_capacity_bytes", cap))
    except Exception:
        pass
    return max(16 << 20, (cap * 3) // 4)


def _pick_batch_block(n, per_sample_bytes, target_bytes):
    nb = max(1, min(n, target_bytes // max(per_sample_bytes, 1)))
    if n >= 2:                 # keep >= 2 batch steps so both v7x TCs get work
        nb = min(nb, n // 2)
    nb = max(1, nb)
    while n % nb:              # avoid partial (out-of-bounds) blocks
        nb -= 1
    return int(nb)


def _pick_cout_block(cout, hw, fold_out, batch_steps):
    """Largest legal Cout tile; split further only to give the grid >= 4 steps."""
    def legal(cb):
        if cb == cout:
            return True
        if cb % 8:                        # keep (8, 128) block legality
            return False
        if fold_out and (cb * hw) % 128:  # folded output stays lane-dense
            return False
        return True

    cands = sorted((d for d in range(1, cout + 1)
                    if cout % d == 0 and legal(d) and d <= 512), reverse=True)
    if not cands:
        return cout
    want_c_steps = -(-4 // max(batch_steps, 1))   # ceil(4 / batch_steps)
    for cb in cands:
        if cout // cb >= want_c_steps:
            return int(cb)
    return int(cands[-1])


def relu_in_conv2d(x, weight, bias=None, *, stride, padding, eps=1e-5):
    """Forward of DRIT++ ReLUINConv2d.

    x: (N, Cin, H, W); weight: (Cout, Cin, kh, kw); bias: (Cout,) — accepted
    but unused: a per-channel conv bias is a mathematical no-op under
    InstanceNorm2d(affine=False).  Returns (N, Cout, Hout, Wout) in x.dtype.
    """
    del bias
    N, Cin, H, W = x.shape
    Cout, _, kh, kw = weight.shape
    s = int(stride)

    # --- ReflectionPad2d (1x-traffic layout plumbing on the XLA side) ---
    xp = x
    if padding > 0:
        xp = jnp.pad(x, ((0, 0), (0, 0), (padding, padding), (padding, padding)),
                     mode="reflect")
    Hp, Wp = H + 2 * padding, W + 2 * padding
    Hout = (Hp - kh) // s + 1
    Wout = (Wp - kw) // s + 1
    HW = Hout * Wout
    K = Cin * kh * kw

    # For stride > 1: space-to-depth by the stride so the kernel only needs
    # unit-stride slices.  ~1x extra HBM traffic vs. kh*kw x for wrapper im2col.
    if s > 1:
        Hq, Wq = -(-Hp // s), -(-Wp // s)
        xp = jnp.pad(xp, ((0, 0), (0, 0), (0, Hq * s - Hp), (0, Wq * s - Wp)))
        xp = xp.reshape(N, Cin, Hq, s, Wq, s).transpose(0, 1, 3, 5, 2, 4)
        xp = xp.reshape(N, Cin * s * s, Hq, Wq)
    else:
        Hq, Wq = Hp, Wp

    w_mat = weight.reshape(Cout, K).astype(x.dtype)

    fold_out = (HW % 128) != 0             # lane-dense stores when HW < 128 etc.
    itemsize = jnp.dtype(x.dtype).itemsize
    vmem_budget = _vmem_budget_bytes()
    target_bytes = (4 << 20) if vmem_budget >= (72 << 20) else (2 << 20)

    per_sample = (2 * Cin * s * s * Hq * Wq * itemsize    # double-buffered input
                  + K * HW * itemsize                     # in-kernel im2col temps
                  + Cout * HW * (3 * 4 + 2 * itemsize))   # f32 stats + output bufs
    nb = _pick_batch_block(N, per_sample, target_bytes)
    cout_blk = _pick_cout_block(Cout, HW, fold_out, N // nb)
    grid = (N // nb, Cout // cout_blk)      # Cout innermost: input never refetched

    in_specs = [
        pl.BlockSpec((nb, Cin * s * s, Hq, Wq), lambda i, j: (i, 0, 0, 0)),
        pl.BlockSpec((cout_blk, K), lambda i, j: (j, 0)),
    ]
    if fold_out:
        out_shape = jax.ShapeDtypeStruct((N, 1, Cout * HW), x.dtype)
        out_spec = pl.BlockSpec((nb, 1, cout_blk * HW), lambda i, j: (i, 0, j))
    else:
        out_shape = jax.ShapeDtypeStruct((N, Cout, HW), x.dtype)
        out_spec = pl.BlockSpec((nb, cout_blk, HW), lambda i, j: (i, j, 0))

    block_bytes = nb * per_sample + 2 * cout_blk * K * itemsize
    vmem_limit = int(min(vmem_budget, max(32 << 20, 6 * block_bytes)))

    kernel = functools.partial(_conv_in_relu_kernel, cin=Cin, kh=kh, kw=kw,
                               stride=s, hout=Hout, wout=Wout, eps=eps,
                               fold_out=fold_out)
    out = pl.pallas_call(
        kernel,
        out_shape=out_shape,
        grid_spec=pltpu.PrefetchScalarGridSpec(
            num_scalar_prefetch=0,
            grid=grid,
            in_specs=in_specs,
            out_specs=out_spec,
        ),
        compiler_params=pltpu.CompilerParams(
            dimension_semantics=("parallel", "parallel"),
            vmem_limit_bytes=vmem_limit,
        ),
    )(xp, w_mat)
    # TODO(synk): for HW so large that one (sample, channel-block) exceeds VMEM,
    # the HW axis would need a chunked two-pass sum / sum-of-squares reduction.
    return out.reshape(N, Cout, Hout, Wout)


def relu_in_conv2d_ref(x, weight, bias, *, stride, padding, eps=1e-5):
    """Pure-JAX reference: reflection pad -> conv(+bias) -> InstanceNorm -> ReLU."""
    xp = x
    if padding > 0:
        xp = jnp.pad(x, ((0, 0), (0, 0), (padding, padding), (padding, padding)),
                     mode="reflect")
    conv = lax.conv_general_dilated(
        xp.astype(jnp.float32), weight.astype(jnp.float32),
        window_strides=(stride, stride), padding="VALID",
        dimension_numbers=("NCHW", "OIHW", "NCHW"))
    conv = conv + bias.astype(jnp.float32).reshape(1, -1, 1, 1)
    mean = jnp.mean(conv, axis=(2, 3), keepdims=True)
    var = jnp.mean(jnp.square(conv - mean), axis=(2, 3), keepdims=True)
    y = (conv - mean) * lax.rsqrt(var + eps)
    return jnp.maximum(y, 0.0).astype(x.dtype)


if __name__ == "__main__":
    key = jax.random.PRNGKey(0)

    def run_case(case_key, N, Cin, Cout, H, W, k, stride, padding):
        kx, kw_, kb = jax.random.split(case_key, 3)
        x = jax.random.normal(kx, (N, Cin, H, W), dtype=jnp.float32)
        # gaussian_weights_init: conv weight ~ N(0, 0.02); bias small.
        w = 0.02 * jax.random.normal(kw_, (Cout, Cin, k, k), dtype=jnp.float32)
        b = 0.1 * jax.random.normal(kb, (Cout,), dtype=jnp.float32)
        out = relu_in_conv2d(x, w, b, stride=stride, padding=padding)
        out = jax.block_until_ready(out)
        ref = relu_in_conv2d_ref(x, w, b, stride=stride, padding=padding)
        assert out.shape == ref.shape and out.dtype == x.dtype
        assert jnp.allclose(out, ref, atol=1e-4, rtol=1e-4), "mismatch vs reference"

    k1, k2 = jax.random.split(key)
    # kernel_size=3, stride=1, padding=1 (typical DRIT++ encoder block) -> 16x16 out
    run_case(k1, N=2, Cin=4, Cout=8, H=16, W=16, k=3, stride=1, padding=1)
    # strided downsampling variant -> 8x8 out (HW=64 -> folded lane-dense output)
    run_case(k2, N=2, Cin=4, Cout=8, H=16, W=16, k=3, stride=2, padding=1)

    print("KERNEL_OK")
</pallas_src>

<mosaic_0001>
module attributes {stable_mosaic.version = 11 : i64} {
  func.func @_conv_in_relu_kernel(%arg0: i32, %arg1: i32, %arg2: memref<1x4x18x18xf32, #tpu.memory_space<vmem>>, %arg3: memref<8x36xf32, #tpu.memory_space<vmem>>, %arg4: memref<1x8x256xf32, #tpu.memory_space<vmem>>) attributes {dimension_semantics = [#tpu.dimension_semantics<parallel>, #tpu.dimension_semantics<parallel>], iteration_bounds = array<i64: 2, 1>, scalar_prefetch = 0 : i64, scratch_operands = 0 : i64, tpu.core_type = #tpu.core_type<tc>, window_params = [{transform_indices = @transform_0, window_bounds = array<i64: 1, 4, 18, 18>}, {transform_indices = @transform_1, window_bounds = array<i64: 8, 36>}, {transform_indices = @transform_2, window_bounds = array<i64: 1, 8, 256>}]} {
    %c0 = arith.constant 0 : index
    %c0_0 = arith.constant 0 : index
    %c0_1 = arith.constant 0 : index
    %c0_2 = arith.constant 0 : index
    %0 = vector.load %arg2[%c0, %c0_0, %c0_1, %c0_2] : memref<1x4x18x18xf32, #tpu.memory_space<vmem>>, vector<1x1x16x16xf32>
    %1 = vector.shape_cast %0 : vector<1x1x16x16xf32> to vector<1x16x16xf32>
    %2 = vector.shape_cast %1 : vector<1x16x16xf32> to vector<1x256xf32>
    %c0_3 = arith.constant 0 : index
    %c0_4 = arith.constant 0 : index
    %c0_5 = arith.constant 0 : index
    %c1 = arith.constant 1 : index
    %3 = vector.load %arg2[%c0_3, %c0_4, %c0_5, %c1] : memref<1x4x18x18xf32, #tpu.memory_space<vmem>>, vector<1x1x16x16xf32>
    %4 = vector.shape_cast %3 : vector<1x1x16x16xf32> to vector<1x16x16xf32>
    %5 = vector.shape_cast %4 : vector<1x16x16xf32> to vector<1x256xf32>
    %c0_6 = arith.constant 0 : index
    %c0_7 = arith.constant 0 : index
    %c0_8 = arith.constant 0 : index
    %c2 = arith.constant 2 : index
    %6 = vector.load %arg2[%c0_6, %c0_7, %c0_8, %c2] : memref<1x4x18x18xf32, #tpu.memory_space<vmem>>, vector<1x1x16x16xf32>
    %7 = vector.shape_cast %6 : vector<1x1x16x16xf32> to vector<1x16x16xf32>
    %8 = vector.shape_cast %7 : vector<1x16x16xf32> to vector<1x256xf32>
    %c0_9 = arith.constant 0 : index
    %c0_10 = arith.constant 0 : index
    %c1_11 = arith.constant 1 : index
    %c0_12 = arith.constant 0 : index
    %9 = vector.load %arg2[%c0_9, %c0_10, %c1_11, %c0_12] : memref<1x4x18x18xf32, #tpu.memory_space<vmem>>, vector<1x1x16x16xf32>
    %10 = vector.shape_cast %9 : vector<1x1x16x16xf32> to vector<1x16x16xf32>
    %11 = vector.shape_cast %10 : vector<1x16x16xf32> to vector<1x256xf32>
    %c0_13 = arith.constant 0 : index
    %c0_14 = arith.constant 0 : index
    %c1_15 = arith.constant 1 : index
    %c1_16 = arith.constant 1 : index
    %12 = vector.load %arg2[%c0_13, %c0_14, %c1_15, %c1_16] : memref<1x4x18x18xf32, #tpu.memory_space<vmem>>, vector<1x1x16x16xf32>
    %13 = vector.shape_cast %12 : vector<1x1x16x16xf32> to vector<1x16x16xf32>
    %14 = vector.shape_cast %13 : vector<1x16x16xf32> to vector<1x256xf32>
    %c0_17 = arith.constant 0 : index
    %c0_18 = arith.constant 0 : index
    %c1_19 = arith.constant 1 : index
    %c2_20 = arith.constant 2 : index
    %15 = vector.load %arg2[%c0_17, %c0_18, %c1_19, %c2_20] : memref<1x4x18x18xf32, #tpu.memory_space<vmem>>, vector<1x1x16x16xf32>
    %16 = vector.shape_cast %15 : vector<1x1x16x16xf32> to vector<1x16x16xf32>
    %17 = vector.shape_cast %16 : vector<1x16x16xf32> to vector<1x256xf32>
    %c0_21 = arith.constant 0 : index
    %c0_22 = arith.constant 0 : index
    %c2_23 = arith.constant 2 : index
    %c0_24 = arith.constant 0 : index
    %18 = vector.load %arg2[%c0_21, %c0_22, %c2_23, %c0_24] : memref<1x4x18x18xf32, #tpu.memory_space<vmem>>, vector<1x1x16x16xf32>
    %19 = vector.shape_cast %18 : vector<1x1x16x16xf32> to vector<1x16x16xf32>
    %20 = vector.shape_cast %19 : vector<1x16x16xf32> to vector<1x256xf32>
    %c0_25 = arith.constant 0 : index
    %c0_26 = arith.constant 0 : index
    %c2_27 = arith.constant 2 : index
    %c1_28 = arith.constant 1 : index
    %21 = vector.load %arg2[%c0_25, %c0_26, %c2_27, %c1_28] : memref<1x4x18x18xf32, #tpu.memory_space<vmem>>, vector<1x1x16x16xf32>
    %22 = vector.shape_cast %21 : vector<1x1x16x16xf32> to vector<1x16x16xf32>
    %23 = vector.shape_cast %22 : vector<1x16x16xf32> to vector<1x256xf32>
    %c0_29 = arith.constant 0 : index
    %c0_30 = arith.constant 0 : index
    %c2_31 = arith.constant 2 : index
    %c2_32 = arith.constant 2 : index
    %24 = vector.load %arg2[%c0_29, %c0_30, %c2_31, %c2_32] : memref<1x4x18x18xf32, #tpu.memory_space<vmem>>, vector<1x1x16x16xf32>
    %25 = vector.shape_cast %24 : vector<1x1x16x16xf32> to vector<1x16x16xf32>
    %26 = vector.shape_cast %25 : vector<1x16x16xf32> to vector<1x256xf32>
    %c0_33 = arith.constant 0 : index
    %c1_34 = arith.constant 1 : index
    %c0_35 = arith.constant 0 : index
    %c0_36 = arith.constant 0 : index
    %27 = vector.load %arg2[%c0_33, %c1_34, %c0_35, %c0_36] : memref<1x4x18x18xf32, #tpu.memory_space<vmem>>, vector<1x1x16x16xf32>
    %28 = vector.shape_cast %27 : vector<1x1x16x16xf32> to vector<1x16x16xf32>
    %29 = vector.shape_cast %28 : vector<1x16x16xf32> to vector<1x256xf32>
    %c0_37 = arith.constant 0 : index
    %c1_38 = arith.constant 1 : index
    %c0_39 = arith.constant 0 : index
    %c1_40 = arith.constant 1 : index
    %30 = vector.load %arg2[%c0_37, %c1_38, %c0_39, %c1_40] : memref<1x4x18x18xf32, #tpu.memory_space<vmem>>, vector<1x1x16x16xf32>
    %31 = vector.shape_cast %30 : vector<1x1x16x16xf32> to vector<1x16x16xf32>
    %32 = vector.shape_cast %31 : vector<1x16x16xf32> to vector<1x256xf32>
    %c0_41 = arith.constant 0 : index
    %c1_42 = arith.constant 1 : index
    %c0_43 = arith.constant 0 : index
    %c2_44 = arith.constant 2 : index
    %33 = vector.load %arg2[%c0_41, %c1_42, %c0_43, %c2_44] : memref<1x4x18x18xf32, #tpu.memory_space<vmem>>, vector<1x1x16x16xf32>
    %34 = vector.shape_cast %33 : vector<1x1x16x16xf32> to vector<1x16x16xf32>
    %35 = vector.shape_cast %34 : vector<1x16x16xf32> to vector<1x256xf32>
    %c0_45 = arith.constant 0 : index
    %c1_46 = arith.constant 1 : index
    %c1_47 = arith.constant 1 : index
    %c0_48 = arith.constant 0 : index
    %36 = vector.load %arg2[%c0_45, %c1_46, %c1_47, %c0_48] : memref<1x4x18x18xf32, #tpu.memory_space<vmem>>, vector<1x1x16x16xf32>
    %37 = vector.shape_cast %36 : vector<1x1x16x16xf32> to vector<1x16x16xf32>
    %38 = vector.shape_cast %37 : vector<1x16x16xf32> to vector<1x256xf32>
    %c0_49 = arith.constant 0 : index
    %c1_50 = arith.constant 1 : index
    %c1_51 = arith.constant 1 : index
    %c1_52 = arith.constant 1 : index
    %39 = vector.load %arg2[%c0_49, %c1_50, %c1_51, %c1_52] : memref<1x4x18x18xf32, #tpu.memory_space<vmem>>, vector<1x1x16x16xf32>
    %40 = vector.shape_cast %39 : vector<1x1x16x16xf32> to vector<1x16x16xf32>
    %41 = vector.shape_cast %40 : vector<1x16x16xf32> to vector<1x256xf32>
    %c0_53 = arith.constant 0 : index
    %c1_54 = arith.constant 1 : index
    %c1_55 = arith.constant 1 : index
    %c2_56 = arith.constant 2 : index
    %42 = vector.load %arg2[%c0_53, %c1_54, %c1_55, %c2_56] : memref<1x4x18x18xf32, #tpu.memory_space<vmem>>, vector<1x1x16x16xf32>
    %43 = vector.shape_cast %42 : vector<1x1x16x16xf32> to vector<1x16x16xf32>
    %44 = vector.shape_cast %43 : vector<1x16x16xf32> to vector<1x256xf32>
    %c0_57 = arith.constant 0 : index
    %c1_58 = arith.constant 1 : index
    %c2_59 = arith.constant 2 : index
    %c0_60 = arith.constant 0 : index
    %45 = vector.load %arg2[%c0_57, %c1_58, %c2_59, %c0_60] : memref<1x4x18x18xf32, #tpu.memory_space<vmem>>, vector<1x1x16x16xf32>
    %46 = vector.shape_cast %45 : vector<1x1x16x16xf32> to vector<1x16x16xf32>
    %47 = vector.shape_cast %46 : vector<1x16x16xf32> to vector<1x256xf32>
    %c0_61 = arith.constant 0 : index
    %c1_62 = arith.constant 1 : index
    %c2_63 = arith.constant 2 : index
    %c1_64 = arith.constant 1 : index
    %48 = vector.load %arg2[%c0_61, %c1_62, %c2_63, %c1_64] : memref<1x4x18x18xf32, #tpu.memory_space<vmem>>, vector<1x1x16x16xf32>
    %49 = vector.shape_cast %48 : vector<1x1x16x16xf32> to vector<1x16x16xf32>
    %50 = vector.shape_cast %49 : vector<1x16x16xf32> to vector<1x256xf32>
    %c0_65 = arith.constant 0 : index
    %c1_66 = arith.constant 1 : index
    %c2_67 = arith.constant 2 : index
    %c2_68 = arith.constant 2 : index
    %51 = vector.load %arg2[%c0_65, %c1_66, %c2_67, %c2_68] : memref<1x4x18x18xf32, #tpu.memory_space<vmem>>, vector<1x1x16x16xf32>
    %52 = vector.shape_cast %51 : vector<1x1x16x16xf32> to vector<1x16x16xf32>
    %53 = vector.shape_cast %52 : vector<1x16x16xf32> to vector<1x256xf32>
    %c0_69 = arith.constant 0 : index
    %c2_70 = arith.constant 2 : index
    %c0_71 = arith.constant 0 : index
    %c0_72 = arith.constant 0 : index
    %54 = vector.load %arg2[%c0_69, %c2_70, %c0_71, %c0_72] : memref<1x4x18x18xf32, #tpu.memory_space<vmem>>, vector<1x1x16x16xf32>
    %55 = vector.shape_cast %54 : vector<1x1x16x16xf32> to vector<1x16x16xf32>
    %56 = vector.shape_cast %55 : vector<1x16x16xf32> to vector<1x256xf32>
    %c0_73 = arith.constant 0 : index
    %c2_74 = arith.constant 2 : index
    %c0_75 = arith.constant 0 : index
    %c1_76 = arith.constant 1 : index
    %57 = vector.load %arg2[%c0_73, %c2_74, %c0_75, %c1_76] : memref<1x4x18x18xf32, #tpu.memory_space<vmem>>, vector<1x1x16x16xf32>
    %58 = vector.shape_cast %57 : vector<1x1x16x16xf32> to vector<1x16x16xf32>
    %59 = vector.shape_cast %58 : vector<1x16x16xf32> to vector<1x256xf32>
    %c0_77 = arith.constant 0 : index
    %c2_78 = arith.constant 2 : index
    %c0_79 = arith.constant 0 : index
    %c2_80 = arith.constant 2 : index
    %60 = vector.load %arg2[%c0_77, %c2_78, %c0_79, %c2_80] : memref<1x4x18x18xf32, #tpu.memory_space<vmem>>, vector<1x1x16x16xf32>
    %61 = vector.shape_cast %60 : vector<1x1x16x16xf32> to vector<1x16x16xf32>
    %62 = vector.shape_cast %61 : vector<1x16x16xf32> to vector<1x256xf32>
    %c0_81 = arith.constant 0 : index
    %c2_82 = arith.constant 2 : index
    %c1_83 = arith.constant 1 : index
    %c0_84 = arith.constant 0 : index
    %63 = vector.load %arg2[%c0_81, %c2_82, %c1_83, %c0_84] : memref<1x4x18x18xf32, #tpu.memory_space<vmem>>, vector<1x1x16x16xf32>
    %64 = vector.shape_cast %63 : vector<1x1x16x16xf32> to vector<1x16x16xf32>
    %65 = vector.shape_cast %64 : vector<1x16x16xf32> to vector<1x256xf32>
    %c0_85 = arith.constant 0 : index
    %c2_86 = arith.constant 2 : index
    %c1_87 = arith.constant 1 : index
    %c1_88 = arith.constant 1 : index
    %66 = vector.load %arg2[%c0_85, %c2_86, %c1_87, %c1_88] : memref<1x4x18x18xf32, #tpu.memory_space<vmem>>, vector<1x1x16x16xf32>
    %67 = vector.shape_cast %66 : vector<1x1x16x16xf32> to vector<1x16x16xf32>
    %68 = vector.shape_cast %67 : vector<1x16x16xf32> to vector<1x256xf32>
    %c0_89 = arith.constant 0 : index
    %c2_90 = arith.constant 2 : index
    %c1_91 = arith.constant 1 : index
    %c2_92 = arith.constant 2 : index
    %69 = vector.load %arg2[%c0_89, %c2_90, %c1_91, %c2_92] : memref<1x4x18x18xf32, #tpu.memory_space<vmem>>, vector<1x1x16x16xf32>
    %70 = vector.shape_cast %69 : vector<1x1x16x16xf32> to vector<1x16x16xf32>
    %71 = vector.shape_cast %70 : vector<1x16x16xf32> to vector<1x256xf32>
    %c0_93 = arith.constant 0 : index
    %c2_94 = arith.constant 2 : index
    %c2_95 = arith.constant 2 : index
    %c0_96 = arith.constant 0 : index
    %72 = vector.load %arg2[%c0_93, %c2_94, %c2_95, %c0_96] : memref<1x4x18x18xf32, #tpu.memory_space<vmem>>, vector<1x1x16x16xf32>
    %73 = vector.shape_cast %72 : vector<1x1x16x16xf32> to vector<1x16x16xf32>
    %74 = vector.shape_cast %73 : vector<1x16x16xf32> to vector<1x256xf32>
    %c0_97 = arith.constant 0 : index
    %c2_98 = arith.constant 2 : index
    %c2_99 = arith.constant 2 : index
    %c1_100 = arith.constant 1 : index
    %75 = vector.load %arg2[%c0_97, %c2_98, %c2_99, %c1_100] : memref<1x4x18x18xf32, #tpu.memory_space<vmem>>, vector<1x1x16x16xf32>
    %76 = vector.shape_cast %75 : vector<1x1x16x16xf32> to vector<1x16x16xf32>
    %77 = vector.shape_cast %76 : vector<1x16x16xf32> to vector<1x256xf32>
    %c0_101 = arith.constant 0 : index
    %c2_102 = arith.constant 2 : index
    %c2_103 = arith.constant 2 : index
    %c2_104 = arith.constant 2 : index
    %78 = vector.load %arg2[%c0_101, %c2_102, %c2_103, %c2_104] : memref<1x4x18x18xf32, #tpu.memory_space<vmem>>, vector<1x1x16x16xf32>
    %79 = vector.shape_cast %78 : vector<1x1x16x16xf32> to vector<1x16x16xf32>
    %80 = vector.shape_cast %79 : vector<1x16x16xf32> to vector<1x256xf32>
    %c0_105 = arith.constant 0 : index
    %c3 = arith.constant 3 : index
    %c0_106 = arith.constant 0 : index
    %c0_107 = arith.constant 0 : index
    %81 = vector.load %arg2[%c0_105, %c3, %c0_106, %c0_107] : memref<1x4x18x18xf32, #tpu.memory_space<vmem>>, vector<1x1x16x16xf32>
    %82 = vector.shape_cast %81 : vector<1x1x16x16xf32> to vector<1x16x16xf32>
    %83 = vector.shape_cast %82 : vector<1x16x16xf32> to vector<1x256xf32>
    %c0_108 = arith.constant 0 : index
    %c3_109 = arith.constant 3 : index
    %c0_110 = arith.constant 0 : index
    %c1_111 = arith.constant 1 : index
    %84 = vector.load %arg2[%c0_108, %c3_109, %c0_110, %c1_111] : memref<1x4x18x18xf32, #tpu.memory_space<vmem>>, vector<1x1x16x16xf32>
    %85 = vector.shape_cast %84 : vector<1x1x16x16xf32> to vector<1x16x16xf32>
    %86 = vector.shape_cast %85 : vector<1x16x16xf32> to vector<1x256xf32>
    %c0_112 = arith.constant 0 : index
    %c3_113 = arith.constant 3 : index
    %c0_114 = arith.constant 0 : index
    %c2_115 = arith.constant 2 : index
    %87 = vector.load %arg2[%c0_112, %c3_113, %c0_114, %c2_115] : memref<1x4x18x18xf32, #tpu.memory_space<vmem>>, vector<1x1x16x16xf32>
    %88 = vector.shape_cast %87 : vector<1x1x16x16xf32> to vector<1x16x16xf32>
    %89 = vector.shape_cast %88 : vector<1x16x16xf32> to vector<1x256xf32>
    %c0_116 = arith.constant 0 : index
    %c3_117 = arith.constant 3 : index
    %c1_118 = arith.constant 1 : index
    %c0_119 = arith.constant 0 : index
    %90 = vector.load %arg2[%c0_116, %c3_117, %c1_118, %c0_119] : memref<1x4x18x18xf32, #tpu.memory_space<vmem>>, vector<1x1x16x16xf32>
    %91 = vector.shape_cast %90 : vector<1x1x16x16xf32> to vector<1x16x16xf32>
    %92 = vector.shape_cast %91 : vector<1x16x16xf32> to vector<1x256xf32>
    %c0_120 = arith.constant 0 : index
    %c3_121 = arith.constant 3 : index
    %c1_122 = arith.constant 1 : index
    %c1_123 = arith.constant 1 : index
    %93 = vector.load %arg2[%c0_120, %c3_121, %c1_122, %c1_123] : memref<1x4x18x18xf32, #tpu.memory_space<vmem>>, vector<1x1x16x16xf32>
    %94 = vector.shape_cast %93 : vector<1x1x16x16xf32> to vector<1x16x16xf32>
    %95 = vector.shape_cast %94 : vector<1x16x16xf32> to vector<1x256xf32>
    %c0_124 = arith.constant 0 : index
    %c3_125 = arith.constant 3 : index
    %c1_126 = arith.constant 1 : index
    %c2_127 = arith.constant 2 : index
    %96 = vector.load %arg2[%c0_124, %c3_125, %c1_126, %c2_127] : memref<1x4x18x18xf32, #tpu.memory_space<vmem>>, vector<1x1x16x16xf32>
    %97 = vector.shape_cast %96 : vector<1x1x16x16xf32> to vector<1x16x16xf32>
    %98 = vector.shape_cast %97 : vector<1x16x16xf32> to vector<1x256xf32>
    %c0_128 = arith.constant 0 : index
    %c3_129 = arith.constant 3 : index
    %c2_130 = arith.constant 2 : index
    %c0_131 = arith.constant 0 : index
    %99 = vector.load %arg2[%c0_128, %c3_129, %c2_130, %c0_131] : memref<1x4x18x18xf32, #tpu.memory_space<vmem>>, vector<1x1x16x16xf32>
    %100 = vector.shape_cast %99 : vector<1x1x16x16xf32> to vector<1x16x16xf32>
    %101 = vector.shape_cast %100 : vector<1x16x16xf32> to vector<1x256xf32>
    %c0_132 = arith.constant 0 : index
    %c3_133 = arith.constant 3 : index
    %c2_134 = arith.constant 2 : index
    %c1_135 = arith.constant 1 : index
    %102 = vector.load %arg2[%c0_132, %c3_133, %c2_134, %c1_135] : memref<1x4x18x18xf32, #tpu.memory_space<vmem>>, vector<1x1x16x16xf32>
    %103 = vector.shape_cast %102 : vector<1x1x16x16xf32> to vector<1x16x16xf32>
    %104 = vector.shape_cast %103 : vector<1x16x16xf32> to vector<1x256xf32>
    %c0_136 = arith.constant 0 : index
    %c3_137 = arith.constant 3 : index
    %c2_138 = arith.constant 2 : index
    %c2_139 = arith.constant 2 : index
    %105 = vector.load %arg2[%c0_136, %c3_137, %c2_138, %c2_139] : memref<1x4x18x18xf32, #tpu.memory_space<vmem>>, vector<1x1x16x16xf32>
    %106 = vector.shape_cast %105 : vector<1x1x16x16xf32> to vector<1x16x16xf32>
    %107 = vector.shape_cast %106 : vector<1x16x16xf32> to vector<1x256xf32>
    %108 = tpu.concatenate %2, %5, %8, %11, %14, %17, %20, %23, %26, %29, %32, %35, %38, %41, %44, %47 in 0 : vector<1x256xf32>, vector<1x256xf32>, vector<1x256xf32>, vector<1x256xf32>, vector<1x256xf32>, vector<1x256xf32>, vector<1x256xf32>, vector<1x256xf32>, vector<1x256xf32>, vector<1x256xf32>, vector<1x256xf32>, vector<1x256xf32>, vector<1x256xf32>, vector<1x256xf32>, vector<1x256xf32>, vector<1x256xf32> -> vector<16x256xf32>
    %109 = tpu.concatenate %50, %53, %56, %59, %62, %65, %68, %71, %74, %77, %80, %83, %86, %89, %92, %95 in 0 : vector<1x256xf32>, vector<1x256xf32>, vector<1x256xf32>, vector<1x256xf32>, vector<1x256xf32>, vector<1x256xf32>, vector<1x256xf32>, vector<1x256xf32>, vector<1x256xf32>, vector<1x256xf32>, vector<1x256xf32>, vector<1x256xf32>, vector<1x256xf32>, vector<1x256xf32>, vector<1x256xf32>, vector<1x256xf32> -> vector<16x256xf32>
    %110 = tpu.concatenate %98, %101, %104, %107 in 0 : vector<1x256xf32>, vector<1x256xf32>, vector<1x256xf32>, vector<1x256xf32> -> vector<4x256xf32>
    %111 = tpu.concatenate %108, %109, %110 in 0 : vector<16x256xf32>, vector<16x256xf32>, vector<4x256xf32> -> vector<36x256xf32>
    %c0_140 = arith.constant 0 : index
    %c0_141 = arith.constant 0 : index
    %112 = vector.load %arg3[%c0_140, %c0_141] : memref<8x36xf32, #tpu.memory_space<vmem>>, vector<8x36xf32>
    %cst = arith.constant dense<0.000000e+00> : vector<8x256xf32>
    %113 = tpu.matmul %112, %111, %cst {dimension_numbers = #tpu.dot_dimension_numbers<[1], [0], [0], [1], [0, 0, 1, 1], [], []>} : vector<8x36xf32>, vector<36x256xf32>, vector<8x256xf32> -> vector<8x256xf32>
    %114 = vector.shape_cast %113 : vector<8x256xf32> to vector<8x1x256xf32>
    %cst_142 = arith.constant dense<0.000000e+00> : vector<8x1xf32>
    %115 = vector.multi_reduction <add>, %114, %cst_142 [2] : vector<8x1x256xf32> to vector<8x1xf32>
    %116 = vector.shape_cast %115 : vector<8x1xf32> to vector<8x1x1xf32>
    %cst_143 = arith.constant 2.560000e+02 : f32
    %117 = vector.broadcast %cst_143 : f32 to vector<8x1x1xf32>
    %118 = arith.divf %116, %117 : vector<8x1x1xf32>
    %119 = vector.broadcast %118 : vector<8x1x1xf32> to vector<8x1x256xf32>
    %120 = arith.subf %114, %119 : vector<8x1x256xf32>
    %121 = arith.mulf %120, %120 : vector<8x1x256xf32>
    %cst_144 = arith.constant dense<0.000000e+00> : vector<8x1xf32>
    %122 = vector.multi_reduction <add>, %121, %cst_144 [2] : vector<8x1x256xf32> to vector<8x1xf32>
    %123 = vector.shape_cast %122 : vector<8x1xf32> to vector<8x1x1xf32>
    %cst_145 = arith.constant 2.560000e+02 : f32
    %124 = vector.broadcast %cst_145 : f32 to vector<8x1x1xf32>
    %125 = arith.divf %123, %124 : vector<8x1x1xf32>
    %cst_146 = arith.constant 9.99999974E-6 : f32
    %126 = vector.broadcast %cst_146 : f32 to vector<8x1x1xf32>
    %127 = arith.addf %125, %126 : vector<8x1x1xf32>
    %128 = math.rsqrt %127 : vector<8x1x1xf32>
    %129 = vector.broadcast %128 : vector<8x1x1xf32> to vector<8x1x256xf32>
    %130 = arith.mulf %120, %129 : vector<8x1x256xf32>
    %cst_147 = arith.constant 0.000000e+00 : f32
    %131 = vector.broadcast %cst_147 : f32 to vector<8x1x256xf32>
    %132 = arith.maximumf %130, %131 : vector<8x1x256xf32>
    %133 = vector.shape_cast %132 : vector<8x1x256xf32> to vector<1x8x256xf32>
    %c0_148 = arith.constant 0 : index
    %c0_149 = arith.constant 0 : index
    %c0_150 = arith.constant 0 : index
    %134 = vector.load %arg4[%c0_148, %c0_149, %c0_150] : memref<1x8x256xf32, #tpu.memory_space<vmem>>, vector<1x8x256xf32>
    tpu.vector_store %arg4[%c0_148, %c0_149, %c0_150], %133 {strides = array<i32>} : memref<1x8x256xf32, #tpu.memory_space<vmem>>, vector<1x8x256xf32>,
    return
  }
  func.func @transform_0(%arg0: i32, %arg1: i32) -> (i32, i32, i32, i32) {
    %c0_i32 = arith.constant 0 : i32
    %c0_i32_0 = arith.constant 0 : i32
    %c0_i32_1 = arith.constant 0 : i32
    %c0_i32_2 = arith.constant 0 : i32
    return %arg0, %c0_i32, %c0_i32_0, %c0_i32_1 : i32, i32, i32, i32
  }
  func.func @transform_1(%arg0: i32, %arg1: i32) -> (i32, i32) {
    %c0_i32 = arith.constant 0 : i32
    %c0_i32_0 = arith.constant 0 : i32
    return %arg1, %c0_i32 : i32, i32
  }
  func.func @transform_2(%arg0: i32, %arg1: i32) -> (i32, i32, i32) {
    %c0_i32 = arith.constant 0 : i32
    %c0_i32_0 = arith.constant 0 : i32
    return %arg0, %arg1, %c0_i32 : i32, i32, i32
  }
}

</mosaic_0001>

<llo_original>
// kernel: tpu_custom_call.1
$region0: #{tpu_custom_call.1}
  #allocation0 [shape = 'u32[]', space=smem, size = 0x4, offset = 0x4, fixed_abs, tag = 'smem constant byte address 0x4 - core index']
  #allocation1 [shape = 'u32[144,128]{1,0:T(1,128)}', space=vmem, size = 0x12000, scoped, tag = 'internal scratch']
  %s0 = inlined_call_operand.vmem [shape: f32[2,4,18,18], index: 0, kind: input, shape index: {}]
  %s1 = inlined_call_operand.vmem [shape: f32[8,36], index: 1, kind: input, shape index: {}]
  %s2 = inlined_call_operand.hbm [shape: f32[2,8,256], index: 2, kind: output, shape index: {}]
  %s3 = sld [smem:[#allocation0]]
  $region41: #{tpu_custom_call.1} parent=0
    _
  %s5 = ssub.s32 1, %s3
  %s6 = scalar_select 0, %s5, %s3
  $region1: #{tpu_custom_call.1} parent=0
    #allocation2 [shape = 'u8[16384]{0}', space=vmem, size = 0x4000, scoped, tag = 'output window, operand 0']
    #allocation3 [shape = 's32[2]{0}', space=sflag, size = 0x8, scoped, tag = 'scoped memory for tpu_custom_call.1']
    %7 = vsyncpa [#allocation3], 0
    %s8 = scalar_lea.sflag [#allocation3], 1
    %9 = vsyncpa %s8, 0
    loop: start=0, step=1, limit=4
    $region2: #{tpu_custom_call.1} parent=1 // loop_pre_header
      _
    $region3: #{tpu_custom_call.1} parent=1 // loop_header
      %s11 = sphi 0, %s15
      %p12 = scmp.ge.s32.totalorder %s11, 4
      %s18 = sphi 0, %s30
      %s19 = sphi 0, %s26
      %s20 = sphi 0, %s18
      %s21 = sphi 0, %s19
      %s22 = sphi 0, %s20
      %s23 = sphi 0, %s21
      %s33 = sphi 0, %s35
      %s36 = sphi 0, %s33
      %s37 = sphi 0, %s36
      %s53 = sphi 0, %s37
      %s59 = sphi 0, %s61
      %s62 = sphi 0, %s59
      %s63 = sphi 0, %s62
      %s79 = sphi 0, %s63
      %s87 = sphi 0, %s89
      %s90 = sphi 0, %s87
      %s91 = sphi 0, %s90
      %s107 = sphi 0, %s91
    $region4: #{tpu_custom_call.1} parent=1 // loop_header_branch
      %14 = sbr.rel (%p12) target = $region8
    $region5: #{tpu_custom_call.1} parent=1 // loop_body
      %s16 = ssub.s32 %s11, 1
      %s17 = ssub.s32 %s11, 2
      %s24 = sadd.s32 1, %s19
      %p25 = scmp.ge.s32.totalorder %s24, 1
      %s26 = scalar_select %p25, 0, %s24
      %s27 = sadd.s32 1, %s18
      %s28 = scalar_select %p25, %s27, %s18
      %p29 = scmp.ge.s32.totalorder %s28, 2
      %s30 = scalar_select %p29, 0, %s28
      %s31 = ssub.s32 %s18, %s30
      %p32 = scmp.eq.s32.totalorder %s31, 0
      %s34 = sadd.s32 %s33, 1
      %s35 = scalar_select %p32, %s33, %s34
      %p38 = pneg %p32
      %p39 = scmp.eq.s32.totalorder %s11, 1
      %p40 = por %p38, %p39
      %p41 = scmp.ne.s32.totalorder %s33, %s36
      %p42 = scmp.eq.s32.totalorder %s11, 0
      %p43 = por %p41, %p42
      %p44 = scmp.ne.s32.totalorder %s33, %s36
      %p45 = scmp.eq.s32.totalorder %s16, 1
      %p46 = por %p44, %p45
      %p47 = scmp.ne.s32.totalorder %s36, %s37
      %p48 = scmp.eq.s32.totalorder %s16, 0
      %p49 = por %p47, %p48
      %p50 = scmp.ne.s32.totalorder %s36, %s37
      %p51 = scmp.eq.s32.totalorder %s17, 1
      %p52 = por %p50, %p51
      %p54 = scmp.ne.s32.totalorder %s37, %s53
      %p55 = scmp.eq.s32.totalorder %s17, 0
      %p56 = por %p54, %p55
      %s57 = ssub.s32 %s19, %s26
      %p58 = scmp.eq.s32.totalorder %s57, 0
      %s60 = sadd.s32 %s59, 1
      %s61 = scalar_select %p58, %s59, %s60
      %p64 = pneg %p58
      %p65 = scmp.eq.s32.totalorder %s11, 1
      %p66 = por %p64, %p65
      %p67 = scmp.ne.s32.totalorder %s59, %s62
      %p68 = scmp.eq.s32.totalorder %s11, 0
      %p69 = por %p67, %p68
      %p70 = scmp.ne.s32.totalorder %s59, %s62
      %p71 = scmp.eq.s32.totalorder %s16, 1
      %p72 = por %p70, %p71
      %p73 = scmp.ne.s32.totalorder %s62, %s63
      %p74 = scmp.eq.s32.totalorder %s16, 0
      %p75 = por %p73, %p74
      %p76 = scmp.ne.s32.totalorder %s62, %s63
      %p77 = scmp.eq.s32.totalorder %s17, 1
      %p78 = por %p76, %p77
      %p80 = scmp.ne.s32.totalorder %s63, %s79
      %p81 = scmp.eq.s32.totalorder %s17, 0
      %p82 = por %p80, %p81
      %s83 = ssub.s32 %s18, %s30
      %s84 = ssub.s32 %s19, %s26
      %s85 = sor.u32 %s83, %s84
      %p86 = scmp.eq.s32.totalorder %s85, 0
      %s88 = sadd.s32 %s87, 1
      %s89 = scalar_select %p86, %s87, %s88
      %p92 = pneg %p86
      %p93 = scmp.eq.s32.totalorder %s11, 1
      %p94 = por %p92, %p93
      %p95 = scmp.ne.s32.totalorder %s87, %s90
      %p96 = scmp.eq.s32.totalorder %s11, 0
      %p97 = por %p95, %p96
      %p98 = scmp.ne.s32.totalorder %s87, %s90
      %p99 = scmp.eq.s32.totalorder %s16, 1
      %p100 = por %p98, %p99
      %p101 = scmp.ne.s32.totalorder %s90, %s91
      %p102 = scmp.eq.s32.totalorder %s16, 0
      %p103 = por %p101, %p102
      %p104 = scmp.ne.s32.totalorder %s90, %s91
      %p105 = scmp.eq.s32.totalorder %s17, 1
      %p106 = por %p104, %p105
      %p108 = scmp.ne.s32.totalorder %s91, %s107
      %p109 = scmp.eq.s32.totalorder %s17, 0
      %p110 = por %p108, %p109
      %p111 = scmp.le.s32.totalorder 1, %s11
      %p112 = scmp.lt.s32.totalorder %s11, 3
      %p113 = pnand %p111, %p112
      %p114 = pneg %p113
      // Predicated region
      $region9: #{tpu_custom_call.1} parent=5 // pred_check
        _
      $region10: #{tpu_custom_call.1} parent=5 // pred_check_branch
        %116 = sbr.rel (%p113) target = $region12
      $region11: #{tpu_custom_call.1} parent=5 // pred_region
        %s117 = ssub.s32 %s11, 1
        // Predicated region
        $region13: #{tpu_custom_call.1} parent=11 // pred_check
          %p118 = pneg %p75
        $region14: #{tpu_custom_call.1} parent=11 // pred_check_branch
          %120 = sbr.rel (%p118) target = $region16
        $region15: #{tpu_custom_call.1} parent=11 // pred_region
          %p121 = scmp.lt.s32.totalorder %s21, 0
          %s122 = scalar_select %p121, %s21, 0
          %s123 = smul.addr %s122, 8
          %s124 = scalar_lea.vmem %s1, %s123
        $region16: #{tpu_custom_call.1} parent=11 // pred_fallthru
          _
      $region12: #{tpu_custom_call.1} parent=5 // pred_fallthru
        _
      %p125 = scmp.lt.s32.totalorder %s11, 2
      // Predicated region
      $region17: #{tpu_custom_call.1} parent=5 // pred_check
        %p126 = pneg %p125
      $region18: #{tpu_custom_call.1} parent=5 // pred_check_branch
        %128 = sbr.rel (%p126) target = $region20
      $region19: #{tpu_custom_call.1} parent=5 // pred_region
        // Predicated region
        $region21: #{tpu_custom_call.1} parent=19 // pred_check
          %p129 = pneg %p43
        $region22: #{tpu_custom_call.1} parent=19 // pred_check_branch
          %131 = sbr.rel (%p129) target = $region24
        $region23: #{tpu_custom_call.1} parent=19 // pred_region
          %p132 = scmp.lt.s32.totalorder %s18, 1
          %s133 = scalar_select %p132, %s18, 1
          %s134 = smul.addr %s133, 12
          %s135 = smul.addr %s134, 8
          %s136 = scalar_lea.vmem %s0, %s135
        $region24: #{tpu_custom_call.1} parent=19 // pred_fallthru
          _
      $region20: #{tpu_custom_call.1} parent=5 // pred_fallthru
        _
      %p137 = scmp.le.s32.totalorder 1, %s11
      %p138 = scmp.lt.s32.totalorder %s11, 3
      %p139 = pnand %p137, %p138
      %p140 = pneg %p139
      // Predicated region
      $region25: #{tpu_custom_call.1} parent=5 // pred_check
        _
      $region26: #{tpu_custom_call.1} parent=5 // pred_check_branch
        %142 = sbr.rel (%p139) target = $region28
      $region27: #{tpu_custom_call.1} parent=5 // pred_region
        %s143 = ssub.s32 %s11, 1
        %p144 = scmp.lt.s32.totalorder %s20, 1
        %s145 = scalar_select %p144, %s20, 1
        %s146 = smul.addr %s145, 12
        %s147 = smul.addr %s146, 8
        %s148 = scalar_lea.vmem %s0, %s147
        %p149 = pneg %p49
        %p150 = pneg %p46
        %p151 = scmp.lt.s32.totalorder %s21, 0
        %s152 = scalar_select %p151, %s21, 0
        %s153 = smul.addr %s152, 8
        %s154 = scalar_lea.vmem %s1, %s153
        %p155 = pneg %p75
        %p156 = pneg %p72
        %p157 = pneg %p103
        %p158 = pneg %p100
        %s159 = sand.u32 %s90, 1
        %s160 = scalar_lea.sflag [#allocation3], %s159
        %s161 = sand.u32 %s90, 1
        %s162 = smul.addr %s161, 16
        %s163 = scalar_lea.vmem [#allocation2], %s162
        %p164 = scmp.lt.s32.totalorder %s20, 1
        %s165 = scalar_select %p164, %s20, 1
        %s166 = smul.addr %s165, 12
        %s167 = smul.addr %s166, 8
        %s168 = scalar_lea.vmem %s0, %s167
        %p169 = scmp.lt.s32.totalorder %s21, 0
        %s170 = scalar_select %p169, %s21, 0
        %s171 = smul.addr %s170, 8
        %s172 = scalar_lea.vmem %s1, %s171
        %v173 = vld [vmem:[%s168] sm:$0xff]
        %v174 = vld [vmem:[%s168 + $0x8] sm:$0xff]
        %v175 = vcombine.high %v173, 0.0
        %v177 = vunpack.c.l.s4 1983009808
        %v178 = vunpack.c.0.s8 %v177
        %v179 = vlaneseq
        %v180 = vshrl.u32 %v179, 7
        %v181 = vsub.s32 %v178, %v180
        %v182 = vrot.slane %v173, %v181
        %v184 = vunpack.c.l.s4 1983009808
        %v185 = vunpack.c.0.s8 %v184
        %v186 = vlaneseq
        %v187 = vshrl.u32 %v186, 7
        %v188 = vsub.s32 %v185, %v187
        %v189 = vrot.slane %v175, %v188
        %v190 = vcombine.high %v182, 0.0
        %v192 = vunpack.c.l.s4 1934713408
        %v193 = vunpack.c.0.s8 %v192
        %v194 = vlaneseq
        %v195 = vshrl.u32 %v194, 7
        %v196 = vsub.s32 %v193, %v195
        %v197 = vrot.slane %v182, %v196
        %v199 = vunpack.c.l.s4 1934713408
        %v200 = vunpack.c.0.s8 %v199
        %v201 = vlaneseq
        %v202 = vshrl.u32 %v201, 7
        %v203 = vsub.s32 %v200, %v202
        %v204 = vrot.slane %v190, %v203
        %v205 = vcombine.high %v189, 0.0
        %v207 = vunpack.c.l.s4 1934713408
        %v208 = vunpack.c.0.s8 %v207
        %v209 = vlaneseq
        %v210 = vshrl.u32 %v209, 7
        %v211 = vsub.s32 %v208, %v210
        %v212 = vrot.slane %v189, %v211
        %v214 = vunpack.c.l.s4 1934713408
        %v215 = vunpack.c.0.s8 %v214
        %v216 = vlaneseq
        %v217 = vshrl.u32 %v216, 7
        %v218 = vsub.s32 %v215, %v217
        %v219 = vrot.slane %v205, %v218
        %v220 = vcombine.high %v197, 0.0
        %v221 = vcombine.high %v204, 0.0
        %v222 = vcombine.high %v212, 0.0
        %v223 = vcombine.high %v219, 0.0
        %v224 = vcombine.high %v174, 0.0
        %v226 = vunpack.c.l.s4 1983009808
        %v227 = vunpack.c.0.s8 %v226
        %v228 = vlaneseq
        %v229 = vshrl.u32 %v228, 7
        %v230 = vsub.s32 %v227, %v229
        %v231 = vrot.slane %v174, %v230
        %v233 = vunpack.c.l.s4 1983009808
        %v234 = vunpack.c.0.s8 %v233
        %v235 = vlaneseq
        %v236 = vshrl.u32 %v235, 7
        %v237 = vsub.s32 %v234, %v236
        %v238 = vrot.slane %v224, %v237
        %v239 = vcombine.high %v231, 0.0
        %v241 = vunpack.c.l.s4 1934713408
        %v242 = vunpack.c.0.s8 %v241
        %v243 = vlaneseq
        %v244 = vshrl.u32 %v243, 7
        %v245 = vsub.s32 %v242, %v244
        %v246 = vrot.slane %v231, %v245
        %v248 = vunpack.c.l.s4 1934713408
        %v249 = vunpack.c.0.s8 %v248
        %v250 = vlaneseq
        %v251 = vshrl.u32 %v250, 7
        %v252 = vsub.s32 %v249, %v251
        %v253 = vrot.slane %v239, %v252
        %v254 = vcombine.high %v238, 0.0
        %v256 = vunpack.c.l.s4 1934713408
        %v257 = vunpack.c.0.s8 %v256
        %v258 = vlaneseq
        %v259 = vshrl.u32 %v258, 7
        %v260 = vsub.s32 %v257, %v259
        %v261 = vrot.slane %v238, %v260
        %v263 = vunpack.c.l.s4 1934713408
        %v264 = vunpack.c.0.s8 %v263
        %v265 = vlaneseq
        %v266 = vshrl.u32 %v265, 7
        %v267 = vsub.s32 %v264, %v266
        %v268 = vrot.slane %v254, %v267
        %v269 = vcombine.high %v246, 0.0
        %v270 = vcombine.high %v253, 0.0
        %v271 = vcombine.high %v261, 0.0
        %v272 = vcombine.high %v268, 0.0
        %274 = vrot.lane.b32.xlu0 %v220, 16
        %v275 = vpop.permute.xlu0 %274
        %278 = vrot.lane.b32.xlu0 %v204, 32
        %v279 = vpop.permute.xlu0 %278
        %282 = vrot.lane.b32.xlu0 %v221, 48
        %v283 = vpop.permute.xlu0 %282
        %286 = vrot.lane.b32.xlu0 %v212, 64
        %v287 = vpop.permute.xlu0 %286
        %290 = vrot.lane.b32.xlu0 %v222, 80
        %v291 = vpop.permute.xlu0 %290
        %294 = vrot.lane.b32.xlu0 %v219, 96
        %v295 = vpop.permute.xlu0 %294
        %298 = vrot.lane.b32.xlu0 %v223, 112
        %v299 = vpop.permute.xlu0 %298
        %302 = vrot.lane.b32.xlu0 %v269, 16
        %v303 = vpop.permute.xlu0 %302
        %306 = vrot.lane.b32.xlu0 %v253, 32
        %v307 = vpop.permute.xlu0 %306
        %310 = vrot.lane.b32.xlu0 %v270, 48
        %v311 = vpop.permute.xlu0 %310
        %314 = vrot.lane.b32.xlu0 %v261, 64
        %v315 = vpop.permute.xlu0 %314
        %318 = vrot.lane.b32.xlu0 %v271, 80
        %v319 = vpop.permute.xlu0 %318
        %322 = vrot.lane.b32.xlu0 %v268, 96
        %v323 = vpop.permute.xlu0 %322
        %326 = vrot.lane.b32.xlu0 %v272, 112
        %v327 = vpop.permute.xlu0 %326
        %vm329 = vcmask 130048
        %v330 = vsel %vm329, %v197, %v275
        %vm331 = vcmask 261120
        %v332 = vsel %vm331, %v330, %v279
        %vm333 = vcmask 392192
        %v334 = vsel %vm333, %v332, %v283
        %vm335 = vcmask 523264
        %v336 = vsel %vm335, %v334, %v287
        %vm337 = vcmask 654336
        %v338 = vsel %vm337, %v336, %v291
        %vm339 = vcmask 785408
        %v340 = vsel %vm339, %v338, %v295
        %vm341 = vcmask 916480
        %v342 = vsel %vm341, %v340, %v299
        %v343 = vsel %vm329, %v246, %v303
        %v344 = vsel %vm331, %v343, %v307
        %v345 = vsel %vm333, %v344, %v311
        %v346 = vsel %vm335, %v345, %v315
        %v347 = vsel %vm337, %v346, %v319
        %v348 = vsel %vm339, %v347, %v323
        %v349 = vsel %vm341, %v348, %v327
        %352 = vrot.lane.b32.xlu0 %v173, 127
        %v353 = vpop.permute.xlu0 %352
        %354 = vrot.lane.b32.xlu0 %v174, 127
        %v355 = vpop.permute.xlu0 %354
        %v358 = vcombine.high %v353, 0.0
        %v360 = vunpack.c.l.s4 1983009808
        %v361 = vunpack.c.0.s8 %v360
        %v362 = vlaneseq
        %v363 = vshrl.u32 %v362, 7
        %v364 = vsub.s32 %v361, %v363
        %v365 = vrot.slane %v353, %v364
        %v367 = vunpack.c.l.s4 1983009808
        %v368 = vunpack.c.0.s8 %v367
        %v369 = vlaneseq
        %v370 = vshrl.u32 %v369, 7
        %v371 = vsub.s32 %v368, %v370
        %v372 = vrot.slane %v358, %v371
        %v373 = vcombine.high %v365, 0.0
        %v375 = vunpack.c.l.s4 1934713408
        %v376 = vunpack.c.0.s8 %v375
        %v377 = vlaneseq
        %v378 = vshrl.u32 %v377, 7
        %v379 = vsub.s32 %v376, %v378
        %v380 = vrot.slane %v365, %v379
        %v382 = vunpack.c.l.s4 1934713408
        %v383 = vunpack.c.0.s8 %v382
        %v384 = vlaneseq
        %v385 = vshrl.u32 %v384, 7
        %v386 = vsub.s32 %v383, %v385
        %v387 = vrot.slane %v373, %v386
        %v388 = vcombine.high %v372, 0.0
        %v390 = vunpack.c.l.s4 1934713408
        %v391 = vunpack.c.0.s8 %v390
        %v392 = vlaneseq
        %v393 = vshrl.u32 %v392, 7
        %v394 = vsub.s32 %v391, %v393
        %v395 = vrot.slane %v372, %v394
        %v397 = vunpack.c.l.s4 1934713408
        %v398 = vunpack.c.0.s8 %v397
        %v399 = vlaneseq
        %v400 = vshrl.u32 %v399, 7
        %v401 = vsub.s32 %v398, %v400
        %v402 = vrot.slane %v388, %v401
        %v403 = vcombine.high %v380, 0.0
        %v404 = vcombine.high %v387, 0.0
        %v405 = vcombine.high %v395, 0.0
        %v406 = vcombine.high %v402, 0.0
        %v407 = vcombine.high %v355, 0.0
        %v409 = vunpack.c.l.s4 1983009808
        %v410 = vunpack.c.0.s8 %v409
        %v411 = vlaneseq
        %v412 = vshrl.u32 %v411, 7
        %v413 = vsub.s32 %v410, %v412
        %v414 = vrot.slane %v355, %v413
        %v416 = vunpack.c.l.s4 1983009808
        %v417 = vunpack.c.0.s8 %v416
        %v418 = vlaneseq
        %v419 = vshrl.u32 %v418, 7
        %v420 = vsub.s32 %v417, %v419
        %v421 = vrot.slane %v407, %v420
        %v422 = vcombine.high %v414, 0.0
        %v424 = vunpack.c.l.s4 1934713408
        %v425 = vunpack.c.0.s8 %v424
        %v426 = vlaneseq
        %v427 = vshrl.u32 %v426, 7
        %v428 = vsub.s32 %v425, %v427
        %v429 = vrot.slane %v414, %v428
        %v431 = vunpack.c.l.s4 1934713408
        %v432 = vunpack.c.0.s8 %v431
        %v433 = vlaneseq
        %v434 = vshrl.u32 %v433, 7
        %v435 = vsub.s32 %v432, %v434
        %v436 = vrot.slane %v422, %v435
        %v437 = vcombine.high %v421, 0.0
        %v439 = vunpack.c.l.s4 1934713408
        %v440 = vunpack.c.0.s8 %v439
        %v441 = vlaneseq
        %v442 = vshrl.u32 %v441, 7
        %v443 = vsub.s32 %v440, %v442
        %v444 = vrot.slane %v421, %v443
        %v446 = vunpack.c.l.s4 1934713408
        %v447 = vunpack.c.0.s8 %v446
        %v448 = vlaneseq
        %v449 = vshrl.u32 %v448, 7
        %v450 = vsub.s32 %v447, %v449
        %v451 = vrot.slane %v437, %v450
        %v452 = vcombine.high %v429, 0.0
        %v453 = vcombine.high %v436, 0.0
        %v454 = vcombine.high %v444, 0.0
        %v455 = vcombine.high %v451, 0.0
        %457 = vrot.lane.b32.xlu0 %v403, 16
        %v458 = vpop.permute.xlu0 %457
        %461 = vrot.lane.b32.xlu0 %v387, 32
        %v462 = vpop.permute.xlu0 %461
        %465 = vrot.lane.b32.xlu0 %v404, 48
        %v466 = vpop.permute.xlu0 %465
        %469 = vrot.lane.b32.xlu0 %v395, 64
        %v470 = vpop.permute.xlu0 %469
        %473 = vrot.lane.b32.xlu0 %v405, 80
        %v474 = vpop.permute.xlu0 %473
        %477 = vrot.lane.b32.xlu0 %v402, 96
        %v478 = vpop.permute.xlu0 %477
        %481 = vrot.lane.b32.xlu0 %v406, 112
        %v482 = vpop.permute.xlu0 %481
        %485 = vrot.lane.b32.xlu0 %v452, 16
        %v486 = vpop.permute.xlu0 %485
        %489 = vrot.lane.b32.xlu0 %v436, 32
        %v490 = vpop.permute.xlu0 %489
        %493 = vrot.lane.b32.xlu0 %v453, 48
        %v494 = vpop.permute.xlu0 %493
        %497 = vrot.lane.b32.xlu0 %v444, 64
        %v498 = vpop.permute.xlu0 %497
        %501 = vrot.lane.b32.xlu0 %v454, 80
        %v502 = vpop.permute.xlu0 %501
        %505 = vrot.lane.b32.xlu0 %v451, 96
        %v506 = vpop.permute.xlu0 %505
        %509 = vrot.lane.b32.xlu0 %v455, 112
        %v510 = vpop.permute.xlu0 %509
        %v512 = vsel %vm329, %v380, %v458
        %v513 = vsel %vm331, %v512, %v462
        %v514 = vsel %vm333, %v513, %v466
        %v515 = vsel %vm335, %v514, %v470
        %v516 = vsel %vm337, %v515, %v474
        %v517 = vsel %vm339, %v516, %v478
        %v518 = vsel %vm341, %v517, %v482
        %v519 = vsel %vm329, %v429, %v486
        %v520 = vsel %vm331, %v519, %v490
        %v521 = vsel %vm333, %v520, %v494
        %v522 = vsel %vm335, %v521, %v498
        %v523 = vsel %vm337, %v522, %v502
        %v524 = vsel %vm339, %v523, %v506
        %v525 = vsel %vm341, %v524, %v510
        %526 = vrot.lane.b32.xlu0 %v173, 126
        %v527 = vpop.permute.xlu0 %526
        %528 = vrot.lane.b32.xlu0 %v174, 126
        %v529 = vpop.permute.xlu0 %528
        %v532 = vcombine.high %v527, 0.0
        %v534 = vunpack.c.l.s4 1983009808
        %v535 = vunpack.c.0.s8 %v534
        %v536 = vlaneseq
        %v537 = vshrl.u32 %v536, 7
        %v538 = vsub.s32 %v535, %v537
        %v539 = vrot.slane %v527, %v538
        %v541 = vunpack.c.l.s4 1983009808
        %v542 = vunpack.c.0.s8 %v541
        %v543 = vlaneseq
        %v544 = vshrl.u32 %v543, 7
        %v545 = vsub.s32 %v542, %v544
        %v546 = vrot.slane %v532, %v545
        %v547 = vcombine.high %v539, 0.0
        %v549 = vunpack.c.l.s4 1934713408
        %v550 = vunpack.c.0.s8 %v549
        %v551 = vlaneseq
        %v552 = vshrl.u32 %v551, 7
        %v553 = vsub.s32 %v550, %v552
        %v554 = vrot.slane %v539, %v553
        %v556 = vunpack.c.l.s4 1934713408
        %v557 = vunpack.c.0.s8 %v556
        %v558 = vlaneseq
        %v559 = vshrl.u32 %v558, 7
        %v560 = vsub.s32 %v557, %v559
        %v561 = vrot.slane %v547, %v560
        %v562 = vcombine.high %v546, 0.0
        %v564 = vunpack.c.l.s4 1934713408
        %v565 = vunpack.c.0.s8 %v564
        %v566 = vlaneseq
        %v567 = vshrl.u32 %v566, 7
        %v568 = vsub.s32 %v565, %v567
        %v569 = vrot.slane %v546, %v568
        %v571 = vunpack.c.l.s4 1934713408
        %v572 = vunpack.c.0.s8 %v571
        %v573 = vlaneseq
        %v574 = vshrl.u32 %v573, 7
        %v575 = vsub.s32 %v572, %v574
        %v576 = vrot.slane %v562, %v575
        %v577 = vcombine.high %v554, 0.0
        %v578 = vcombine.high %v561, 0.0
        %v579 = vcombine.high %v569, 0.0
        %v580 = vcombine.high %v576, 0.0
        %v581 = vcombine.high %v529, 0.0
        %v583 = vunpack.c.l.s4 1983009808
        %v584 = vunpack.c.0.s8 %v583
        %v585 = vlaneseq
        %v586 = vshrl.u32 %v585, 7
        %v587 = vsub.s32 %v584, %v586
        %v588 = vrot.slane %v529, %v587
        %v590 = vunpack.c.l.s4 1983009808
        %v591 = vunpack.c.0.s8 %v590
        %v592 = vlaneseq
        %v593 = vshrl.u32 %v592, 7
        %v594 = vsub.s32 %v591, %v593
        %v595 = vrot.slane %v581, %v594
        %v596 = vcombine.high %v588, 0.0
        %v598 = vunpack.c.l.s4 1934713408
        %v599 = vunpack.c.0.s8 %v598
        %v600 = vlaneseq
        %v601 = vshrl.u32 %v600, 7
        %v602 = vsub.s32 %v599, %v601
        %v603 = vrot.slane %v588, %v602
        %v605 = vunpack.c.l.s4 1934713408
        %v606 = vunpack.c.0.s8 %v605
        %v607 = vlaneseq
        %v608 = vshrl.u32 %v607, 7
        %v609 = vsub.s32 %v606, %v608
        %v610 = vrot.slane %v596, %v609
        %v611 = vcombine.high %v595, 0.0
        %v613 = vunpack.c.l.s4 1934713408
        %v614 = vunpack.c.0.s8 %v613
        %v615 = vlaneseq
        %v616 = vshrl.u32 %v615, 7
        %v617 = vsub.s32 %v614, %v616
        %v618 = vrot.slane %v595, %v617
        %v620 = vunpack.c.l.s4 1934713408
        %v621 = vunpack.c.0.s8 %v620
        %v622 = vlaneseq
        %v623 = vshrl.u32 %v622, 7
        %v624 = vsub.s32 %v621, %v623
        %v625 = vrot.slane %v611, %v624
        %v626 = vcombine.high %v603, 0.0
        %v627 = vcombine.high %v610, 0.0
        %v628 = vcombine.high %v618, 0.0
        %v629 = vcombine.high %v625, 0.0
        %631 = vrot.lane.b32.xlu0 %v577, 16
        %v632 = vpop.permute.xlu0 %631
        %635 = vrot.lane.b32.xlu0 %v561, 32
        %v636 = vpop.permute.xlu0 %635
        %639 = vrot.lane.b32.xlu0 %v578, 48
        %v640 = vpop.permute.xlu0 %639
        %643 = vrot.lane.b32.xlu0 %v569, 64
        %v644 = vpop.permute.xlu0 %643
        %647 = vrot.lane.b32.xlu0 %v579, 80
        %v648 = vpop.permute.xlu0 %647
        %651 = vrot.lane.b32.xlu0 %v576, 96
        %v652 = vpop.permute.xlu0 %651
        %655 = vrot.lane.b32.xlu0 %v580, 112
        %v656 = vpop.permute.xlu0 %655
        %659 = vrot.lane.b32.xlu0 %v626, 16
        %v660 = vpop.permute.xlu0 %659
        %663 = vrot.lane.b32.xlu0 %v610, 32
        %v664 = vpop.permute.xlu0 %663
        %667 = vrot.lane.b32.xlu0 %v627, 48
        %v668 = vpop.permute.xlu0 %667
        %671 = vrot.lane.b32.xlu0 %v618, 64
        %v672 = vpop.permute.xlu0 %671
        %675 = vrot.lane.b32.xlu0 %v628, 80
        %v676 = vpop.permute.xlu0 %675
        %679 = vrot.lane.b32.xlu0 %v625, 96
        %v680 = vpop.permute.xlu0 %679
        %683 = vrot.lane.b32.xlu0 %v629, 112
        %v684 = vpop.permute.xlu0 %683
        %v686 = vsel %vm329, %v554, %v632
        %v687 = vsel %vm331, %v686, %v636
        %v688 = vsel %vm333, %v687, %v640
        %v689 = vsel %vm335, %v688, %v644
        %v690 = vsel %vm337, %v689, %v648
        %v691 = vsel %vm339, %v690, %v652
        %v692 = vsel %vm341, %v691, %v656
        %v693 = vsel %vm329, %v603, %v660
        %v694 = vsel %vm331, %v693, %v664
        %v695 = vsel %vm333, %v694, %v668
        %v696 = vsel %vm335, %v695, %v672
        %v697 = vsel %vm337, %v696, %v676
        %v698 = vsel %vm339, %v697, %v680
        %v699 = vsel %vm341, %v698, %v684
        %v700 = vld [vmem:[%s168 + $0x1] sm:$0xff]
        %v701 = vld [vmem:[%s168 + $0x9] sm:$0xff]
        %v702 = vcombine.high %v700, 0.0
        %v704 = vunpack.c.l.s4 1983009808
        %v705 = vunpack.c.0.s8 %v704
        %v706 = vlaneseq
        %v707 = vshrl.u32 %v706, 7
        %v708 = vsub.s32 %v705, %v707
        %v709 = vrot.slane %v700, %v708
        %v711 = vunpack.c.l.s4 1983009808
        %v712 = vunpack.c.0.s8 %v711
        %v713 = vlaneseq
        %v714 = vshrl.u32 %v713, 7
        %v715 = vsub.s32 %v712, %v714
        %v716 = vrot.slane %v702, %v715
        %v717 = vcombine.high %v709, 0.0
        %v719 = vunpack.c.l.s4 1934713408
        %v720 = vunpack.c.0.s8 %v719
        %v721 = vlaneseq
        %v722 = vshrl.u32 %v721, 7
        %v723 = vsub.s32 %v720, %v722
        %v724 = vrot.slane %v709, %v723
        %v726 = vunpack.c.l.s4 1934713408
        %v727 = vunpack.c.0.s8 %v726
        %v728 = vlaneseq
        %v729 = vshrl.u32 %v728, 7
        %v730 = vsub.s32 %v727, %v729
        %v731 = vrot.slane %v717, %v730
        %v732 = vcombine.high %v716, 0.0
        %v734 = vunpack.c.l.s4 1934713408
        %v735 = vunpack.c.0.s8 %v734
        %v736 = vlaneseq
        %v737 = vshrl.u32 %v736, 7
        %v738 = vsub.s32 %v735, %v737
        %v739 = vrot.slane %v716, %v738
        %v741 = vunpack.c.l.s4 1934713408
        %v742 = vunpack.c.0.s8 %v741
        %v743 = vlaneseq
        %v744 = vshrl.u32 %v743, 7
        %v745 = vsub.s32 %v742, %v744
        %v746 = vrot.slane %v732, %v745
        %v747 = vcombine.high %v724, 0.0
        %v748 = vcombine.high %v731, 0.0
        %v749 = vcombine.high %v739, 0.0
        %v750 = vcombine.high %v746, 0.0
        %v751 = vcombine.high %v701, 0.0
        %v753 = vunpack.c.l.s4 1983009808
        %v754 = vunpack.c.0.s8 %v753
        %v755 = vlaneseq
        %v756 = vshrl.u32 %v755, 7
        %v757 = vsub.s32 %v754, %v756
        %v758 = vrot.slane %v701, %v757
        %v760 = vunpack.c.l.s4 1983009808
        %v761 = vunpack.c.0.s8 %v760
        %v762 = vlaneseq
        %v763 = vshrl.u32 %v762, 7
        %v764 = vsub.s32 %v761, %v763
        %v765 = vrot.slane %v751, %v764
        %v766 = vcombine.high %v758, 0.0
        %v768 = vunpack.c.l.s4 1934713408
        %v769 = vunpack.c.0.s8 %v768
        %v770 = vlaneseq
        %v771 = vshrl.u32 %v770, 7
        %v772 = vsub.s32 %v769, %v771
        %v773 = vrot.slane %v758, %v772
        %v775 = vunpack.c.l.s4 1934713408
        %v776 = vunpack.c.0.s8 %v775
        %v777 = vlaneseq
        %v778 = vshrl.u32 %v777, 7
        %v779 = vsub.s32 %v776, %v778
        %v780 = vrot.slane %v766, %v779
        %v781 = vcombine.high %v765, 0.0
        %v783 = vunpack.c.l.s4 1934713408
        %v784 = vunpack.c.0.s8 %v783
        %v785 = vlaneseq
        %v786 = vshrl.u32 %v785, 7
        %v787 = vsub.s32 %v784, %v786
        %v788 = vrot.slane %v765, %v787
        %v790 = vunpack.c.l.s4 1934713408
        %v791 = vunpack.c.0.s8 %v790
        %v792 = vlaneseq
        %v793 = vshrl.u32 %v792, 7
        %v794 = vsub.s32 %v791, %v793
        %v795 = vrot.slane %v781, %v794
        %v796 = vcombine.high %v773, 0.0
        %v797 = vcombine.high %v780, 0.0
        %v798 = vcombine.high %v788, 0.0
        %v799 = vcombine.high %v795, 0.0
        %801 = vrot.lane.b32.xlu0 %v747, 16
        %v802 = vpop.permute.xlu0 %801
        %805 = vrot.lane.b32.xlu0 %v731, 32
        %v806 = vpop.permute.xlu0 %805
        %809 = vrot.lane.b32.xlu0 %v748, 48
        %v810 = vpop.permute.xlu0 %809
        %813 = vrot.lane.b32.xlu0 %v739, 64
        %v814 = vpop.permute.xlu0 %813
        %817 = vrot.lane.b32.xlu0 %v749, 80
        %v818 = vpop.permute.xlu0 %817
        %821 = vrot.lane.b32.xlu0 %v746, 96
        %v822 = vpop.permute.xlu0 %821
        %825 = vrot.lane.b32.xlu0 %v750, 112
        %v826 = vpop.permute.xlu0 %825
        %829 = vrot.lane.b32.xlu0 %v796, 16
        %v830 = vpop.permute.xlu0 %829
        %833 = vrot.lane.b32.xlu0 %v780, 32
        %v834 = vpop.permute.xlu0 %833
        %837 = vrot.lane.b32.xlu0 %v797, 48
        %v838 = vpop.permute.xlu0 %837
        %841 = vrot.lane.b32.xlu0 %v788, 64
        %v842 = vpop.permute.xlu0 %841
        %845 = vrot.lane.b32.xlu0 %v798, 80
        %v846 = vpop.permute.xlu0 %845
        %849 = vrot.lane.b32.xlu0 %v795, 96
        %v850 = vpop.permute.xlu0 %849
        %853 = vrot.lane.b32.xlu0 %v799, 112
        %v854 = vpop.permute.xlu0 %853
        %v856 = vsel %vm329, %v724, %v802
        %v857 = vsel %vm331, %v856, %v806
        %v858 = vsel %vm333, %v857, %v810
        %v859 = vsel %vm335, %v858, %v814
        %v860 = vsel %vm337, %v859, %v818
        %v861 = vsel %vm339, %v860, %v822
        %v862 = vsel %vm341, %v861, %v826
        %v863 = vsel %vm329, %v773, %v830
        %v864 = vsel %vm331, %v863, %v834
        %v865 = vsel %vm333, %v864, %v838
        %v866 = vsel %vm335, %v865, %v842
        %v867 = vsel %vm337, %v866, %v846
        %v868 = vsel %vm339, %v867, %v850
        %v869 = vsel %vm341, %v868, %v854
        %872 = vrot.lane.b32.xlu0 %v700, 127
        %v873 = vpop.permute.xlu0 %872
        %874 = vrot.lane.b32.xlu0 %v701, 127
        %v875 = vpop.permute.xlu0 %874
        %v878 = vcombine.high %v873, 0.0
        %v880 = vunpack.c.l.s4 1983009808
        %v881 = vunpack.c.0.s8 %v880
        %v882 = vlaneseq
        %v883 = vshrl.u32 %v882, 7
        %v884 = vsub.s32 %v881, %v883
        %v885 = vrot.slane %v873, %v884
        %v887 = vunpack.c.l.s4 1983009808
        %v888 = vunpack.c.0.s8 %v887
        %v889 = vlaneseq
        %v890 = vshrl.u32 %v889, 7
        %v891 = vsub.s32 %v888, %v890
        %v892 = vrot.slane %v878, %v891
        %v893 = vcombine.high %v885, 0.0
        %v895 = vunpack.c.l.s4 1934713408
        %v896 = vunpack.c.0.s8 %v895
        %v897 = vlaneseq
        %v898 = vshrl.u32 %v897, 7
        %v899 = vsub.s32 %v896, %v898
        %v900 = vrot.slane %v885, %v899
        %v902 = vunpack.c.l.s4 1934713408
        %v903 = vunpack.c.0.s8 %v902
        %v904 = vlaneseq
        %v905 = vshrl.u32 %v904, 7
        %v906 = vsub.s32 %v903, %v905
        %v907 = vrot.slane %v893, %v906
        %v908 = vcombine.high %v892, 0.0
        %v910 = vunpack.c.l.s4 1934713408
        %v911 = vunpack.c.0.s8 %v910
        %v912 = vlaneseq
        %v913 = vshrl.u32 %v912, 7
        %v914 = vsub.s32 %v911, %v913
        %v915 = vrot.slane %v892, %v914
        %v917 = vunpack.c.l.s4 1934713408
        %v918 = vunpack.c.0.s8 %v917
        %v919 = vlaneseq
        %v920 = vshrl.u32 %v919, 7
        %v921 = vsub.s32 %v918, %v920
        %v922 = vrot.slane %v908, %v921
        %v923 = vcombine.high %v900, 0.0
        %v924 = vcombine.high %v907, 0.0
        %v925 = vcombine.high %v915, 0.0
        %v926 = vcombine.high %v922, 0.0
        %v927 = vcombine.high %v875, 0.0
        %v929 = vunpack.c.l.s4 1983009808
        %v930 = vunpack.c.0.s8 %v929
        %v931 = vlaneseq
        %v932 = vshrl.u32 %v931, 7
        %v933 = vsub.s32 %v930, %v932
        %v934 = vrot.slane %v875, %v933
        %v936 = vunpack.c.l.s4 1983009808
        %v937 = vunpack.c.0.s8 %v936
        %v938 = vlaneseq
        %v939 = vshrl.u32 %v938, 7
        %v940 = vsub.s32 %v937, %v939
        %v941 = vrot.slane %v927, %v940
        %v942 = vcombine.high %v934, 0.0
        %v944 = vunpack.c.l.s4 1934713408
        %v945 = vunpack.c.0.s8 %v944
        %v946 = vlaneseq
        %v947 = vshrl.u32 %v946, 7
        %v948 = vsub.s32 %v945, %v947
        %v949 = vrot.slane %v934, %v948
        %v951 = vunpack.c.l.s4 1934713408
        %v952 = vunpack.c.0.s8 %v951
        %v953 = vlaneseq
        %v954 = vshrl.u32 %v953, 7
        %v955 = vsub.s32 %v952, %v954
        %v956 = vrot.slane %v942, %v955
        %v957 = vcombine.high %v941, 0.0
        %v959 = vunpack.c.l.s4 1934713408
        %v960 = vunpack.c.0.s8 %v959
        %v961 = vlaneseq
        %v962 = vshrl.u32 %v961, 7
        %v963 = vsub.s32 %v960, %v962
        %v964 = vrot.slane %v941, %v963
        %v966 = vunpack.c.l.s4 1934713408
        %v967 = vunpack.c.0.s8 %v966
        %v968 = vlaneseq
        %v969 = vshrl.u32 %v968, 7
        %v970 = vsub.s32 %v967, %v969
        %v971 = vrot.slane %v957, %v970
        %v972 = vcombine.high %v949, 0.0
        %v973 = vcombine.high %v956, 0.0
        %v974 = vcombine.high %v964, 0.0
        %v975 = vcombine.high %v971, 0.0
        %977 = vrot.lane.b32.xlu0 %v923, 16
        %v978 = vpop.permute.xlu0 %977
        %981 = vrot.lane.b32.xlu0 %v907, 32
        %v982 = vpop.permute.xlu0 %981
        %985 = vrot.lane.b32.xlu0 %v924, 48
        %v986 = vpop.permute.xlu0 %985
        %989 = vrot.lane.b32.xlu0 %v915, 64
        %v990 = vpop.permute.xlu0 %989
        %993 = vrot.lane.b32.xlu0 %v925, 80
        %v994 = vpop.permute.xlu0 %993
        %997 = vrot.lane.b32.xlu0 %v922, 96
        %v998 = vpop.permute.xlu0 %997
        %1001 = vrot.lane.b32.xlu0 %v926, 112
        %v1002 = vpop.permute.xlu0 %1001
        %1005 = vrot.lane.b32.xlu0 %v972, 16
        %v1006 = vpop.permute.xlu0 %1005
        %1009 = vrot.lane.b32.xlu0 %v956, 32
        %v1010 = vpop.permute.xlu0 %1009
        %1013 = vrot.lane.b32.xlu0 %v973, 48
        %v1014 = vpop.permute.xlu0 %1013
        %1017 = vrot.lane.b32.xlu0 %v964, 64
        %v1018 = vpop.permute.xlu0 %1017
        %1021 = vrot.lane.b32.xlu0 %v974, 80
        %v1022 = vpop.permute.xlu0 %1021
        %1025 = vrot.lane.b32.xlu0 %v971, 96
        %v1026 = vpop.permute.xlu0 %1025
        %1029 = vrot.lane.b32.xlu0 %v975, 112
        %v1030 = vpop.permute.xlu0 %1029
        %v1032 = vsel %vm329, %v900, %v978
        %v1033 = vsel %vm331, %v1032, %v982
        %v1034 = vsel %vm333, %v1033, %v986
        %v1035 = vsel %vm335, %v1034, %v990
        %v1036 = vsel %vm337, %v1035, %v994
        %v1037 = vsel %vm339, %v1036, %v998
        %v1038 = vsel %vm341, %v1037, %v1002
        %v1039 = vsel %vm329, %v949, %v1006
        %v1040 = vsel %vm331, %v1039, %v1010
        %v1041 = vsel %vm333, %v1040, %v1014
        %v1042 = vsel %vm335, %v1041, %v1018
        %v1043 = vsel %vm337, %v1042, %v1022
        %v1044 = vsel %vm339, %v1043, %v1026
        %v1045 = vsel %vm341, %v1044, %v1030
        %1046 = vrot.lane.b32.xlu0 %v700, 126
        %v1047 = vpop.permute.xlu0 %1046
        %1048 = vrot.lane.b32.xlu0 %v701, 126
        %v1049 = vpop.permute.xlu0 %1048
        %v1052 = vcombine.high %v1047, 0.0
        %v1054 = vunpack.c.l.s4 1983009808
        %v1055 = vunpack.c.0.s8 %v1054
        %v1056 = vlaneseq
        %v1057 = vshrl.u32 %v1056, 7
        %v1058 = vsub.s32 %v1055, %v1057
        %v1059 = vrot.slane %v1047, %v1058
        %v1061 = vunpack.c.l.s4 1983009808
        %v1062 = vunpack.c.0.s8 %v1061
        %v1063 = vlaneseq
        %v1064 = vshrl.u32 %v1063, 7
        %v1065 = vsub.s32 %v1062, %v1064
        %v1066 = vrot.slane %v1052, %v1065
        %v1067 = vcombine.high %v1059, 0.0
        %v1069 = vunpack.c.l.s4 1934713408
        %v1070 = vunpack.c.0.s8 %v1069
        %v1071 = vlaneseq
        %v1072 = vshrl.u32 %v1071, 7
        %v1073 = vsub.s32 %v1070, %v1072
        %v1074 = vrot.slane %v1059, %v1073
        %v1076 = vunpack.c.l.s4 1934713408
        %v1077 = vunpack.c.0.s8 %v1076
        %v1078 = vlaneseq
        %v1079 = vshrl.u32 %v1078, 7
        %v1080 = vsub.s32 %v1077, %v1079
        %v1081 = vrot.slane %v1067, %v1080
        %v1082 = vcombine.high %v1066, 0.0
        %v1084 = vunpack.c.l.s4 1934713408
        %v1085 = vunpack.c.0.s8 %v1084
        %v1086 = vlaneseq
        %v1087 = vshrl.u32 %v1086, 7
        %v1088 = vsub.s32 %v1085, %v1087
        %v1089 = vrot.slane %v1066, %v1088
        %v1091 = vunpack.c.l.s4 1934713408
        %v1092 = vunpack.c.0.s8 %v1091
        %v1093 = vlaneseq
        %v1094 = vshrl.u32 %v1093, 7
        %v1095 = vsub.s32 %v1092, %v1094
        %v1096 = vrot.slane %v1082, %v1095
        %v1097 = vcombine.high %v1074, 0.0
        %v1098 = vcombine.high %v1081, 0.0
        %v1099 = vcombine.high %v1089, 0.0
        %v1100 = vcombine.high %v1096, 0.0
        %v1101 = vcombine.high %v1049, 0.0
        %v1103 = vunpack.c.l.s4 1983009808
        %v1104 = vunpack.c.0.s8 %v1103
        %v1105 = vlaneseq
        %v1106 = vshrl.u32 %v1105, 7
        %v1107 = vsub.s32 %v1104, %v1106
        %v1108 = vrot.slane %v1049, %v1107
        %v1110 = vunpack.c.l.s4 1983009808
        %v1111 = vunpack.c.0.s8 %v1110
        %v1112 = vlaneseq
        %v1113 = vshrl.u32 %v1112, 7
        %v1114 = vsub.s32 %v1111, %v1113
        %v1115 = vrot.slane %v1101, %v1114
        %v1116 = vcombine.high %v1108, 0.0
        %v1118 = vunpack.c.l.s4 1934713408
        %v1119 = vunpack.c.0.s8 %v1118
        %v1120 = vlaneseq
        %v1121 = vshrl.u32 %v1120, 7
        %v1122 = vsub.s32 %v1119, %v1121
        %v1123 = vrot.slane %v1108, %v1122
        %v1125 = vunpack.c.l.s4 1934713408
        %v1126 = vunpack.c.0.s8 %v1125
        %v1127 = vlaneseq
        %v1128 = vshrl.u32 %v1127, 7
        %v1129 = vsub.s32 %v1126, %v1128
        %v1130 = vrot.slane %v1116, %v1129
        %v1131 = vcombine.high %v1115, 0.0
        %v1133 = vunpack.c.l.s4 1934713408
        %v1134 = vunpack.c.0.s8 %v1133
        %v1135 = vlaneseq
        %v1136 = vshrl.u32 %v1135, 7
        %v1137 = vsub.s32 %v1134, %v1136
        %v1138 = vrot.slane %v1115, %v1137
        %v1140 = vunpack.c.l.s4 1934713408
        %v1141 = vunpack.c.0.s8 %v1140
        %v1142 = vlaneseq
        %v1143 = vshrl.u32 %v1142, 7
        %v1144 = vsub.s32 %v1141, %v1143
        %v1145 = vrot.slane %v1131, %v1144
        %v1146 = vcombine.high %v1123, 0.0
        %v1147 = vcombine.high %v1130, 0.0
        %v1148 = vcombine.high %v1138, 0.0
        %v1149 = vcombine.high %v1145, 0.0
        %1151 = vrot.lane.b32.xlu0 %v1097, 16
        %v1152 = vpop.permute.xlu0 %1151
        %1155 = vrot.lane.b32.xlu0 %v1081, 32
        %v1156 = vpop.permute.xlu0 %1155
        %1159 = vrot.lane.b32.xlu0 %v1098, 48
        %v1160 = vpop.permute.xlu0 %1159
        %1163 = vrot.lane.b32.xlu0 %v1089, 64
        %v1164 = vpop.permute.xlu0 %1163
        %1167 = vrot.lane.b32.xlu0 %v1099, 80
        %v1168 = vpop.permute.xlu0 %1167
        %1171 = vrot.lane.b32.xlu0 %v1096, 96
        %v1172 = vpop.permute.xlu0 %1171
        %1175 = vrot.lane.b32.xlu0 %v1100, 112
        %v1176 = vpop.permute.xlu0 %1175
        %1179 = vrot.lane.b32.xlu0 %v1146, 16
        %v1180 = vpop.permute.xlu0 %1179
        %1183 = vrot.lane.b32.xlu0 %v1130, 32
        %v1184 = vpop.permute.xlu0 %1183
        %1187 = vrot.lane.b32.xlu0 %v1147, 48
        %v1188 = vpop.permute.xlu0 %1187
        %1191 = vrot.lane.b32.xlu0 %v1138, 64
        %v1192 = vpop.permute.xlu0 %1191
        %1195 = vrot.lane.b32.xlu0 %v1148, 80
        %v1196 = vpop.permute.xlu0 %1195
        %1199 = vrot.lane.b32.xlu0 %v1145, 96
        %v1200 = vpop.permute.xlu0 %1199
        %1203 = vrot.lane.b32.xlu0 %v1149, 112
        %v1204 = vpop.permute.xlu0 %1203
        %v1206 = vsel %vm329, %v1074, %v1152
        %v1207 = vsel %vm331, %v1206, %v1156
        %v1208 = vsel %vm333, %v1207, %v1160
        %v1209 = vsel %vm335, %v1208, %v1164
        %v1210 = vsel %vm337, %v1209, %v1168
        %v1211 = vsel %vm339, %v1210, %v1172
        %v1212 = vsel %vm341, %v1211, %v1176
        %v1213 = vsel %vm329, %v1123, %v1180
        %v1214 = vsel %vm331, %v1213, %v1184
        %v1215 = vsel %vm333, %v1214, %v1188
        %v1216 = vsel %vm335, %v1215, %v1192
        %v1217 = vsel %vm337, %v1216, %v1196
        %v1218 = vsel %vm339, %v1217, %v1200
        %v1219 = vsel %vm341, %v1218, %v1204
        %v1220 = vld [vmem:[%s168 + $0x2] sm:$0xff]
        %v1221 = vld [vmem:[%s168 + $0xa] sm:$0xff]
        %v1222 = vcombine.high %v1220, 0.0
        %v1224 = vunpack.c.l.s4 1983009808
        %v1225 = vunpack.c.0.s8 %v1224
        %v1226 = vlaneseq
        %v1227 = vshrl.u32 %v1226, 7
        %v1228 = vsub.s32 %v1225, %v1227
        %v1229 = vrot.slane %v1220, %v1228
        %v1231 = vunpack.c.l.s4 1983009808
        %v1232 = vunpack.c.0.s8 %v1231
        %v1233 = vlaneseq
        %v1234 = vshrl.u32 %v1233, 7
        %v1235 = vsub.s32 %v1232, %v1234
        %v1236 = vrot.slane %v1222, %v1235
        %v1237 = vcombine.high %v1229, 0.0
        %v1239 = vunpack.c.l.s4 1934713408
        %v1240 = vunpack.c.0.s8 %v1239
        %v1241 = vlaneseq
        %v1242 = vshrl.u32 %v1241, 7
        %v1243 = vsub.s32 %v1240, %v1242
        %v1244 = vrot.slane %v1229, %v1243
        %v1246 = vunpack.c.l.s4 1934713408
        %v1247 = vunpack.c.0.s8 %v1246
        %v1248 = vlaneseq
        %v1249 = vshrl.u32 %v1248, 7
        %v1250 = vsub.s32 %v1247, %v1249
        %v1251 = vrot.slane %v1237, %v1250
        %v1252 = vcombine.high %v1236, 0.0
        %v1254 = vunpack.c.l.s4 1934713408
        %v1255 = vunpack.c.0.s8 %v1254
        %v1256 = vlaneseq
        %v1257 = vshrl.u32 %v1256, 7
        %v1258 = vsub.s32 %v1255, %v1257
        %v1259 = vrot.slane %v1236, %v1258
        %v1261 = vunpack.c.l.s4 1934713408
        %v1262 = vunpack.c.0.s8 %v1261
        %v1263 = vlaneseq
        %v1264 = vshrl.u32 %v1263, 7
        %v1265 = vsub.s32 %v1262, %v1264
        %v1266 = vrot.slane %v1252, %v1265
        %v1267 = vcombine.high %v1244, 0.0
        %v1268 = vcombine.high %v1251, 0.0
        %v1269 = vcombine.high %v1259, 0.0
        %v1270 = vcombine.high %v1266, 0.0
        %v1271 = vcombine.high %v1221, 0.0
        %v1273 = vunpack.c.l.s4 1983009808
        %v1274 = vunpack.c.0.s8 %v1273
        %v1275 = vlaneseq
        %v1276 = vshrl.u32 %v1275, 7
        %v1277 = vsub.s32 %v1274, %v1276
        %v1278 = vrot.slane %v1221, %v1277
        %v1280 = vunpack.c.l.s4 1983009808
        %v1281 = vunpack.c.0.s8 %v1280
        %v1282 = vlaneseq
        %v1283 = vshrl.u32 %v1282, 7
        %v1284 = vsub.s32 %v1281, %v1283
        %v1285 = vrot.slane %v1271, %v1284
        %v1286 = vcombine.high %v1278, 0.0
        %v1288 = vunpack.c.l.s4 1934713408
        %v1289 = vunpack.c.0.s8 %v1288
        %v1290 = vlaneseq
        %v1291 = vshrl.u32 %v1290, 7
        %v1292 = vsub.s32 %v1289, %v1291
        %v1293 = vrot.slane %v1278, %v1292
        %v1295 = vunpack.c.l.s4 1934713408
        %v1296 = vunpack.c.0.s8 %v1295
        %v1297 = vlaneseq
        %v1298 = vshrl.u32 %v1297, 7
        %v1299 = vsub.s32 %v1296, %v1298
        %v1300 = vrot.slane %v1286, %v1299
        %v1301 = vcombine.high %v1285, 0.0
        %v1303 = vunpack.c.l.s4 1934713408
        %v1304 = vunpack.c.0.s8 %v1303
        %v1305 = vlaneseq
        %v1306 = vshrl.u32 %v1305, 7
        %v1307 = vsub.s32 %v1304, %v1306
        %v1308 = vrot.slane %v1285, %v1307
        %v1310 = vunpack.c.l.s4 1934713408
        %v1311 = vunpack.c.0.s8 %v1310
        %v1312 = vlaneseq
        %v1313 = vshrl.u32 %v1312, 7
        %v1314 = vsub.s32 %v1311, %v1313
        %v1315 = vrot.slane %v1301, %v1314
        %v1316 = vcombine.high %v1293, 0.0
        %v1317 = vcombine.high %v1300, 0.0
        %v1318 = vcombine.high %v1308, 0.0
        %v1319 = vcombine.high %v1315, 0.0
        %1321 = vrot.lane.b32.xlu0 %v1267, 16
        %v1322 = vpop.permute.xlu0 %1321
        %1325 = vrot.lane.b32.xlu0 %v1251, 32
        %v1326 = vpop.permute.xlu0 %1325
        %1329 = vrot.lane.b32.xlu0 %v1268, 48
        %v1330 = vpop.permute.xlu0 %1329
        %1333 = vrot.lane.b32.xlu0 %v1259, 64
        %v1334 = vpop.permute.xlu0 %1333
        %1337 = vrot.lane.b32.xlu0 %v1269, 80
        %v1338 = vpop.permute.xlu0 %1337
        %1341 = vrot.lane.b32.xlu0 %v1266, 96
        %v1342 = vpop.permute.xlu0 %1341
        %1345 = vrot.lane.b32.xlu0 %v1270, 112
        %v1346 = vpop.permute.xlu0 %1345
        %1349 = vrot.lane.b32.xlu0 %v1316, 16
        %v1350 = vpop.permute.xlu0 %1349
        %1353 = vrot.lane.b32.xlu0 %v1300, 32
        %v1354 = vpop.permute.xlu0 %1353
        %1357 = vrot.lane.b32.xlu0 %v1317, 48
        %v1358 = vpop.permute.xlu0 %1357
        %1361 = vrot.lane.b32.xlu0 %v1308, 64
        %v1362 = vpop.permute.xlu0 %1361
        %1365 = vrot.lane.b32.xlu0 %v1318, 80
        %v1366 = vpop.permute.xlu0 %1365
        %1369 = vrot.lane.b32.xlu0 %v1315, 96
        %v1370 = vpop.permute.xlu0 %1369
        %1373 = vrot.lane.b32.xlu0 %v1319, 112
        %v1374 = vpop.permute.xlu0 %1373
        %v1376 = vsel %vm329, %v1244, %v1322
        %v1377 = vsel %vm331, %v1376, %v1326
        %v1378 = vsel %vm333, %v1377, %v1330
        %v1379 = vsel %vm335, %v1378, %v1334
        %v1380 = vsel %vm337, %v1379, %v1338
        %v1381 = vsel %vm339, %v1380, %v1342
        %v1382 = vsel %vm341, %v1381, %v1346
        %v1383 = vsel %vm329, %v1293, %v1350
        %v1384 = vsel %vm331, %v1383, %v1354
        %v1385 = vsel %vm333, %v1384, %v1358
        %v1386 = vsel %vm335, %v1385, %v1362
        %v1387 = vsel %vm337, %v1386, %v1366
        %v1388 = vsel %vm339, %v1387, %v1370
        %v1389 = vsel %vm341, %v1388, %v1374
        %1392 = vrot.lane.b32.xlu0 %v1220, 127
        %v1393 = vpop.permute.xlu0 %1392
        %1394 = vrot.lane.b32.xlu0 %v1221, 127
        %v1395 = vpop.permute.xlu0 %1394
        %v1398 = vcombine.high %v1393, 0.0
        %v1400 = vunpack.c.l.s4 1983009808
        %v1401 = vunpack.c.0.s8 %v1400
        %v1402 = vlaneseq
        %v1403 = vshrl.u32 %v1402, 7
        %v1404 = vsub.s32 %v1401, %v1403
        %v1405 = vrot.slane %v1393, %v1404
        %v1407 = vunpack.c.l.s4 1983009808
        %v1408 = vunpack.c.0.s8 %v1407
        %v1409 = vlaneseq
        %v1410 = vshrl.u32 %v1409, 7
        %v1411 = vsub.s32 %v1408, %v1410
        %v1412 = vrot.slane %v1398, %v1411
        %v1413 = vcombine.high %v1405, 0.0
        %v1415 = vunpack.c.l.s4 1934713408
        %v1416 = vunpack.c.0.s8 %v1415
        %v1417 = vlaneseq
        %v1418 = vshrl.u32 %v1417, 7
        %v1419 = vsub.s32 %v1416, %v1418
        %v1420 = vrot.slane %v1405, %v1419
        %v1422 = vunpack.c.l.s4 1934713408
        %v1423 = vunpack.c.0.s8 %v1422
        %v1424 = vlaneseq
        %v1425 = vshrl.u32 %v1424, 7
        %v1426 = vsub.s32 %v1423, %v1425
        %v1427 = vrot.slane %v1413, %v1426
        %v1428 = vcombine.high %v1412, 0.0
        %v1430 = vunpack.c.l.s4 1934713408
        %v1431 = vunpack.c.0.s8 %v1430
        %v1432 = vlaneseq
        %v1433 = vshrl.u32 %v1432, 7
        %v1434 = vsub.s32 %v1431, %v1433
        %v1435 = vrot.slane %v1412, %v1434
        %v1437 = vunpack.c.l.s4 1934713408
        %v1438 = vunpack.c.0.s8 %v1437
        %v1439 = vlaneseq
        %v1440 = vshrl.u32 %v1439, 7
        %v1441 = vsub.s32 %v1438, %v1440
        %v1442 = vrot.slane %v1428, %v1441
        %v1443 = vcombine.high %v1420, 0.0
        %v1444 = vcombine.high %v1427, 0.0
        %v1445 = vcombine.high %v1435, 0.0
        %v1446 = vcombine.high %v1442, 0.0
        %v1447 = vcombine.high %v1395, 0.0
        %v1449 = vunpack.c.l.s4 1983009808
        %v1450 = vunpack.c.0.s8 %v1449
        %v1451 = vlaneseq
        %v1452 = vshrl.u32 %v1451, 7
        %v1453 = vsub.s32 %v1450, %v1452
        %v1454 = vrot.slane %v1395, %v1453
        %v1456 = vunpack.c.l.s4 1983009808
        %v1457 = vunpack.c.0.s8 %v1456
        %v1458 = vlaneseq
        %v1459 = vshrl.u32 %v1458, 7
        %v1460 = vsub.s32 %v1457, %v1459
        %v1461 = vrot.slane %v1447, %v1460
        %v1462 = vcombine.high %v1454, 0.0
        %v1464 = vunpack.c.l.s4 1934713408
        %v1465 = vunpack.c.0.s8 %v1464
        %v1466 = vlaneseq
        %v1467 = vshrl.u32 %v1466, 7
        %v1468 = vsub.s32 %v1465, %v1467
        %v1469 = vrot.slane %v1454, %v1468
        %v1471 = vunpack.c.l.s4 1934713408
        %v1472 = vunpack.c.0.s8 %v1471
        %v1473 = vlaneseq
        %v1474 = vshrl.u32 %v1473, 7
        %v1475 = vsub.s32 %v1472, %v1474
        %v1476 = vrot.slane %v1462, %v1475
        %v1477 = vcombine.high %v1461, 0.0
        %v1479 = vunpack.c.l.s4 1934713408
        %v1480 = vunpack.c.0.s8 %v1479
        %v1481 = vlaneseq
        %v1482 = vshrl.u32 %v1481, 7
        %v1483 = vsub.s32 %v1480, %v1482
        %v1484 = vrot.slane %v1461, %v1483
        %v1486 = vunpack.c.l.s4 1934713408
        %v1487 = vunpack.c.0.s8 %v1486
        %v1488 = vlaneseq
        %v1489 = vshrl.u32 %v1488, 7
        %v1490 = vsub.s32 %v1487, %v1489
        %v1491 = vrot.slane %v1477, %v1490
        %v1492 = vcombine.high %v1469, 0.0
        %v1493 = vcombine.high %v1476, 0.0
        %v1494 = vcombine.high %v1484, 0.0
        %v1495 = vcombine.high %v1491, 0.0
        %1497 = vrot.lane.b32.xlu0 %v1443, 16
        %v1498 = vpop.permute.xlu0 %1497
        %1501 = vrot.lane.b32.xlu0 %v1427, 32
        %v1502 = vpop.permute.xlu0 %1501
        %1505 = vrot.lane.b32.xlu0 %v1444, 48
        %v1506 = vpop.permute.xlu0 %1505
        %1509 = vrot.lane.b32.xlu0 %v1435, 64
        %v1510 = vpop.permute.xlu0 %1509
        %1513 = vrot.lane.b32.xlu0 %v1445, 80
        %v1514 = vpop.permute.xlu0 %1513
        %1517 = vrot.lane.b32.xlu0 %v1442, 96
        %v1518 = vpop.permute.xlu0 %1517
        %1521 = vrot.lane.b32.xlu0 %v1446, 112
        %v1522 = vpop.permute.xlu0 %1521
        %1525 = vrot.lane.b32.xlu0 %v1492, 16
        %v1526 = vpop.permute.xlu0 %1525
        %1529 = vrot.lane.b32.xlu0 %v1476, 32
        %v1530 = vpop.permute.xlu0 %1529
        %1533 = vrot.lane.b32.xlu0 %v1493, 48
        %v1534 = vpop.permute.xlu0 %1533
        %1537 = vrot.lane.b32.xlu0 %v1484, 64
        %v1538 = vpop.permute.xlu0 %1537
        %1541 = vrot.lane.b32.xlu0 %v1494, 80
        %v1542 = vpop.permute.xlu0 %1541
        %1545 = vrot.lane.b32.xlu0 %v1491, 96
        %v1546 = vpop.permute.xlu0 %1545
        %1549 = vrot.lane.b32.xlu0 %v1495, 112
        %v1550 = vpop.permute.xlu0 %1549
        %v1552 = vsel %vm329, %v1420, %v1498
        %v1553 = vsel %vm331, %v1552, %v1502
        %v1554 = vsel %vm333, %v1553, %v1506
        %v1555 = vsel %vm335, %v1554, %v1510
        %v1556 = vsel %vm337, %v1555, %v1514
        %v1557 = vsel %vm339, %v1556, %v1518
        %v1558 = vsel %vm341, %v1557, %v1522
        %v1559 = vsel %vm329, %v1469, %v1526
        %v1560 = vsel %vm331, %v1559, %v1530
        %v1561 = vsel %vm333, %v1560, %v1534
        %v1562 = vsel %vm335, %v1561, %v1538
        %v1563 = vsel %vm337, %v1562, %v1542
        %v1564 = vsel %vm339, %v1563, %v1546
        %v1565 = vsel %vm341, %v1564, %v1550
        %1566 = vrot.lane.b32.xlu0 %v1220, 126
        %v1567 = vpop.permute.xlu0 %1566
        %1568 = vrot.lane.b32.xlu0 %v1221, 126
        %v1569 = vpop.permute.xlu0 %1568
        %v1572 = vcombine.high %v1567, 0.0
        %v1574 = vunpack.c.l.s4 1983009808
        %v1575 = vunpack.c.0.s8 %v1574
        %v1576 = vlaneseq
        %v1577 = vshrl.u32 %v1576, 7
        %v1578 = vsub.s32 %v1575, %v1577
        %v1579 = vrot.slane %v1567, %v1578
        %v1581 = vunpack.c.l.s4 1983009808
        %v1582 = vunpack.c.0.s8 %v1581
        %v1583 = vlaneseq
        %v1584 = vshrl.u32 %v1583, 7
        %v1585 = vsub.s32 %v1582, %v1584
        %v1586 = vrot.slane %v1572, %v1585
        %v1587 = vcombine.high %v1579, 0.0
        %v1589 = vunpack.c.l.s4 1934713408
        %v1590 = vunpack.c.0.s8 %v1589
        %v1591 = vlaneseq
        %v1592 = vshrl.u32 %v1591, 7
        %v1593 = vsub.s32 %v1590, %v1592
        %v1594 = vrot.slane %v1579, %v1593
        %v1596 = vunpack.c.l.s4 1934713408
        %v1597 = vunpack.c.0.s8 %v1596
        %v1598 = vlaneseq
        %v1599 = vshrl.u32 %v1598, 7
        %v1600 = vsub.s32 %v1597, %v1599
        %v1601 = vrot.slane %v1587, %v1600
        %v1602 = vcombine.high %v1586, 0.0
        %v1604 = vunpack.c.l.s4 1934713408
        %v1605 = vunpack.c.0.s8 %v1604
        %v1606 = vlaneseq
        %v1607 = vshrl.u32 %v1606, 7
        %v1608 = vsub.s32 %v1605, %v1607
        %v1609 = vrot.slane %v1586, %v1608
        %v1611 = vunpack.c.l.s4 1934713408
        %v1612 = vunpack.c.0.s8 %v1611
        %v1613 = vlaneseq
        %v1614 = vshrl.u32 %v1613, 7
        %v1615 = vsub.s32 %v1612, %v1614
        %v1616 = vrot.slane %v1602, %v1615
        %v1617 = vcombine.high %v1594, 0.0
        %v1618 = vcombine.high %v1601, 0.0
        %v1619 = vcombine.high %v1609, 0.0
        %v1620 = vcombine.high %v1616, 0.0
        %v1621 = vcombine.high %v1569, 0.0
        %v1623 = vunpack.c.l.s4 1983009808
        %v1624 = vunpack.c.0.s8 %v1623
        %v1625 = vlaneseq
        %v1626 = vshrl.u32 %v1625, 7
        %v1627 = vsub.s32 %v1624, %v1626
        %v1628 = vrot.slane %v1569, %v1627
        %v1630 = vunpack.c.l.s4 1983009808
        %v1631 = vunpack.c.0.s8 %v1630
        %v1632 = vlaneseq
        %v1633 = vshrl.u32 %v1632, 7
        %v1634 = vsub.s32 %v1631, %v1633
        %v1635 = vrot.slane %v1621, %v1634
        %v1636 = vcombine.high %v1628, 0.0
        %v1638 = vunpack.c.l.s4 1934713408
        %v1639 = vunpack.c.0.s8 %v1638
        %v1640 = vlaneseq
        %v1641 = vshrl.u32 %v1640, 7
        %v1642 = vsub.s32 %v1639, %v1641
        %v1643 = vrot.slane %v1628, %v1642
        %v1645 = vunpack.c.l.s4 1934713408
        %v1646 = vunpack.c.0.s8 %v1645
        %v1647 = vlaneseq
        %v1648 = vshrl.u32 %v1647, 7
        %v1649 = vsub.s32 %v1646, %v1648
        %v1650 = vrot.slane %v1636, %v1649
        %v1651 = vcombine.high %v1635, 0.0
        %v1653 = vunpack.c.l.s4 1934713408
        %v1654 = vunpack.c.0.s8 %v1653
        %v1655 = vlaneseq
        %v1656 = vshrl.u32 %v1655, 7
        %v1657 = vsub.s32 %v1654, %v1656
        %v1658 = vrot.slane %v1635, %v1657
        %v1660 = vunpack.c.l.s4 1934713408
        %v1661 = vunpack.c.0.s8 %v1660
        %v1662 = vlaneseq
        %v1663 = vshrl.u32 %v1662, 7
        %v1664 = vsub.s32 %v1661, %v1663
        %v1665 = vrot.slane %v1651, %v1664
        %v1666 = vcombine.high %v1643, 0.0
        %v1667 = vcombine.high %v1650, 0.0
        %v1668 = vcombine.high %v1658, 0.0
        %v1669 = vcombine.high %v1665, 0.0
        %1671 = vrot.lane.b32.xlu0 %v1617, 16
        %v1672 = vpop.permute.xlu0 %1671
        %1675 = vrot.lane.b32.xlu0 %v1601, 32
        %v1676 = vpop.permute.xlu0 %1675
        %1679 = vrot.lane.b32.xlu0 %v1618, 48
        %v1680 = vpop.permute.xlu0 %1679
        %1683 = vrot.lane.b32.xlu0 %v1609, 64
        %v1684 = vpop.permute.xlu0 %1683
        %1687 = vrot.lane.b32.xlu0 %v1619, 80
        %v1688 = vpop.permute.xlu0 %1687
        %1691 = vrot.lane.b32.xlu0 %v1616, 96
        %v1692 = vpop.permute.xlu0 %1691
        %1695 = vrot.lane.b32.xlu0 %v1620, 112
        %v1696 = vpop.permute.xlu0 %1695
        %1699 = vrot.lane.b32.xlu0 %v1666, 16
        %v1700 = vpop.permute.xlu0 %1699
        %1703 = vrot.lane.b32.xlu0 %v1650, 32
        %v1704 = vpop.permute.xlu0 %1703
        %1707 = vrot.lane.b32.xlu0 %v1667, 48
        %v1708 = vpop.permute.xlu0 %1707
        %1711 = vrot.lane.b32.xlu0 %v1658, 64
        %v1712 = vpop.permute.xlu0 %1711
        %1715 = vrot.lane.b32.xlu0 %v1668, 80
        %v1716 = vpop.permute.xlu0 %1715
        %1719 = vrot.lane.b32.xlu0 %v1665, 96
        %v1720 = vpop.permute.xlu0 %1719
        %1723 = vrot.lane.b32.xlu0 %v1669, 112
        %v1724 = vpop.permute.xlu0 %1723
        %v1726 = vsel %vm329, %v1594, %v1672
        %v1727 = vsel %vm331, %v1726, %v1676
        %v1728 = vsel %vm333, %v1727, %v1680
        %v1729 = vsel %vm335, %v1728, %v1684
        %v1730 = vsel %vm337, %v1729, %v1688
        %v1731 = vsel %vm339, %v1730, %v1692
        %v1732 = vsel %vm341, %v1731, %v1696
        %v1733 = vsel %vm329, %v1643, %v1700
        %v1734 = vsel %vm331, %v1733, %v1704
        %v1735 = vsel %vm333, %v1734, %v1708
        %v1736 = vsel %vm335, %v1735, %v1712
        %v1737 = vsel %vm337, %v1736, %v1716
        %v1738 = vsel %vm339, %v1737, %v1720
        %v1739 = vsel %vm341, %v1738, %v1724
        %s1740 = scalar_lea.vmem %s168, 24
        %v1741 = vld [vmem:[%s1740] sm:$0xff]
        %v1742 = vld [vmem:[%s1740 + $0x8] sm:$0xff]
        %v1743 = vcombine.high %v1741, 0.0
        %v1745 = vunpack.c.l.s4 1983009808
        %v1746 = vunpack.c.0.s8 %v1745
        %v1747 = vlaneseq
        %v1748 = vshrl.u32 %v1747, 7
        %v1749 = vsub.s32 %v1746, %v1748
        %v1750 = vrot.slane %v1741, %v1749
        %v1752 = vunpack.c.l.s4 1983009808
        %v1753 = vunpack.c.0.s8 %v1752
        %v1754 = vlaneseq
        %v1755 = vshrl.u32 %v1754, 7
        %v1756 = vsub.s32 %v1753, %v1755
        %v1757 = vrot.slane %v1743, %v1756
        %v1758 = vcombine.high %v1750, 0.0
        %v1760 = vunpack.c.l.s4 1934713408
        %v1761 = vunpack.c.0.s8 %v1760
        %v1762 = vlaneseq
        %v1763 = vshrl.u32 %v1762, 7
        %v1764 = vsub.s32 %v1761, %v1763
        %v1765 = vrot.slane %v1750, %v1764
        %v1767 = vunpack.c.l.s4 1934713408
        %v1768 = vunpack.c.0.s8 %v1767
        %v1769 = vlaneseq
        %v1770 = vshrl.u32 %v1769, 7
        %v1771 = vsub.s32 %v1768, %v1770
        %v1772 = vrot.slane %v1758, %v1771
        %v1773 = vcombine.high %v1757, 0.0
        %v1775 = vunpack.c.l.s4 1934713408
        %v1776 = vunpack.c.0.s8 %v1775
        %v1777 = vlaneseq
        %v1778 = vshrl.u32 %v1777, 7
        %v1779 = vsub.s32 %v1776, %v1778
        %v1780 = vrot.slane %v1757, %v1779
        %v1782 = vunpack.c.l.s4 1934713408
        %v1783 = vunpack.c.0.s8 %v1782
        %v1784 = vlaneseq
        %v1785 = vshrl.u32 %v1784, 7
        %v1786 = vsub.s32 %v1783, %v1785
        %v1787 = vrot.slane %v1773, %v1786
        %v1788 = vcombine.high %v1765, 0.0
        %v1789 = vcombine.high %v1772, 0.0
        %v1790 = vcombine.high %v1780, 0.0
        %v1791 = vcombine.high %v1787, 0.0
        %v1792 = vcombine.high %v1742, 0.0
        %v1794 = vunpack.c.l.s4 1983009808
        %v1795 = vunpack.c.0.s8 %v1794
        %v1796 = vlaneseq
        %v1797 = vshrl.u32 %v1796, 7
        %v1798 = vsub.s32 %v1795, %v1797
        %v1799 = vrot.slane %v1742, %v1798
        %v1801 = vunpack.c.l.s4 1983009808
        %v1802 = vunpack.c.0.s8 %v1801
        %v1803 = vlaneseq
        %v1804 = vshrl.u32 %v1803, 7
        %v1805 = vsub.s32 %v1802, %v1804
        %v1806 = vrot.slane %v1792, %v1805
        %v1807 = vcombine.high %v1799, 0.0
        %v1809 = vunpack.c.l.s4 1934713408
        %v1810 = vunpack.c.0.s8 %v1809
        %v1811 = vlaneseq
        %v1812 = vshrl.u32 %v1811, 7
        %v1813 = vsub.s32 %v1810, %v1812
        %v1814 = vrot.slane %v1799, %v1813
        %v1816 = vunpack.c.l.s4 1934713408
        %v1817 = vunpack.c.0.s8 %v1816
        %v1818 = vlaneseq
        %v1819 = vshrl.u32 %v1818, 7
        %v1820 = vsub.s32 %v1817, %v1819
        %v1821 = vrot.slane %v1807, %v1820
        %v1822 = vcombine.high %v1806, 0.0
        %v1824 = vunpack.c.l.s4 1934713408
        %v1825 = vunpack.c.0.s8 %v1824
        %v1826 = vlaneseq
        %v1827 = vshrl.u32 %v1826, 7
        %v1828 = vsub.s32 %v1825, %v1827
        %v1829 = vrot.slane %v1806, %v1828
        %v1831 = vunpack.c.l.s4 1934713408
        %v1832 = vunpack.c.0.s8 %v1831
        %v1833 = vlaneseq
        %v1834 = vshrl.u32 %v1833, 7
        %v1835 = vsub.s32 %v1832, %v1834
        %v1836 = vrot.slane %v1822, %v1835
        %v1837 = vcombine.high %v1814, 0.0
        %v1838 = vcombine.high %v1821, 0.0
        %v1839 = vcombine.high %v1829, 0.0
        %v1840 = vcombine.high %v1836, 0.0
        %1842 = vrot.lane.b32.xlu0 %v1788, 16
        %v1843 = vpop.permute.xlu0 %1842
        %1846 = vrot.lane.b32.xlu0 %v1772, 32
        %v1847 = vpop.permute.xlu0 %1846
        %1850 = vrot.lane.b32.xlu0 %v1789, 48
        %v1851 = vpop.permute.xlu0 %1850
        %1854 = vrot.lane.b32.xlu0 %v1780, 64
        %v1855 = vpop.permute.xlu0 %1854
        %1858 = vrot.lane.b32.xlu0 %v1790, 80
        %v1859 = vpop.permute.xlu0 %1858
        %1862 = vrot.lane.b32.xlu0 %v1787, 96
        %v1863 = vpop.permute.xlu0 %1862
        %1866 = vrot.lane.b32.xlu0 %v1791, 112
        %v1867 = vpop.permute.xlu0 %1866
        %1870 = vrot.lane.b32.xlu0 %v1837, 16
        %v1871 = vpop.permute.xlu0 %1870
        %1874 = vrot.lane.b32.xlu0 %v1821, 32
        %v1875 = vpop.permute.xlu0 %1874
        %1878 = vrot.lane.b32.xlu0 %v1838, 48
        %v1879 = vpop.permute.xlu0 %1878
        %1882 = vrot.lane.b32.xlu0 %v1829, 64
        %v1883 = vpop.permute.xlu0 %1882
        %1886 = vrot.lane.b32.xlu0 %v1839, 80
        %v1887 = vpop.permute.xlu0 %1886
        %1890 = vrot.lane.b32.xlu0 %v1836, 96
        %v1891 = vpop.permute.xlu0 %1890
        %1894 = vrot.lane.b32.xlu0 %v1840, 112
        %v1895 = vpop.permute.xlu0 %1894
        %v1897 = vsel %vm329, %v1765, %v1843
        %v1898 = vsel %vm331, %v1897, %v1847
        %v1899 = vsel %vm333, %v1898, %v1851
        %v1900 = vsel %vm335, %v1899, %v1855
        %v1901 = vsel %vm337, %v1900, %v1859
        %v1902 = vsel %vm339, %v1901, %v1863
        %v1903 = vsel %vm341, %v1902, %v1867
        %v1904 = vsel %vm329, %v1814, %v1871
        %v1905 = vsel %vm331, %v1904, %v1875
        %v1906 = vsel %vm333, %v1905, %v1879
        %v1907 = vsel %vm335, %v1906, %v1883
        %v1908 = vsel %vm337, %v1907, %v1887
        %v1909 = vsel %vm339, %v1908, %v1891
        %v1910 = vsel %vm341, %v1909, %v1895
        %1913 = vrot.lane.b32.xlu0 %v1741, 127
        %v1914 = vpop.permute.xlu0 %1913
        %1915 = vrot.lane.b32.xlu0 %v1742, 127
        %v1916 = vpop.permute.xlu0 %1915
        %v1919 = vcombine.high %v1914, 0.0
        %v1921 = vunpack.c.l.s4 1983009808
        %v1922 = vunpack.c.0.s8 %v1921
        %v1923 = vlaneseq
        %v1924 = vshrl.u32 %v1923, 7
        %v1925 = vsub.s32 %v1922, %v1924
        %v1926 = vrot.slane %v1914, %v1925
        %v1928 = vunpack.c.l.s4 1983009808
        %v1929 = vunpack.c.0.s8 %v1928
        %v1930 = vlaneseq
        %v1931 = vshrl.u32 %v1930, 7
        %v1932 = vsub.s32 %v1929, %v1931
        %v1933 = vrot.slane %v1919, %v1932
        %v1934 = vcombine.high %v1926, 0.0
        %v1936 = vunpack.c.l.s4 1934713408
        %v1937 = vunpack.c.0.s8 %v1936
        %v1938 = vlaneseq
        %v1939 = vshrl.u32 %v1938, 7
        %v1940 = vsub.s32 %v1937, %v1939
        %v1941 = vrot.slane %v1926, %v1940
        %v1943 = vunpack.c.l.s4 1934713408
        %v1944 = vunpack.c.0.s8 %v1943
        %v1945 = vlaneseq
        %v1946 = vshrl.u32 %v1945, 7
        %v1947 = vsub.s32 %v1944, %v1946
        %v1948 = vrot.slane %v1934, %v1947
        %v1949 = vcombine.high %v1933, 0.0
        %v1951 = vunpack.c.l.s4 1934713408
        %v1952 = vunpack.c.0.s8 %v1951
        %v1953 = vlaneseq
        %v1954 = vshrl.u32 %v1953, 7
        %v1955 = vsub.s32 %v1952, %v1954
        %v1956 = vrot.slane %v1933, %v1955
        %v1958 = vunpack.c.l.s4 1934713408
        %v1959 = vunpack.c.0.s8 %v1958
        %v1960 = vlaneseq
        %v1961 = vshrl.u32 %v1960, 7
        %v1962 = vsub.s32 %v1959, %v1961
        %v1963 = vrot.slane %v1949, %v1962
        %v1964 = vcombine.high %v1941, 0.0
        %v1965 = vcombine.high %v1948, 0.0
        %v1966 = vcombine.high %v1956, 0.0
        %v1967 = vcombine.high %v1963, 0.0
        %v1968 = vcombine.high %v1916, 0.0
        %v1970 = vunpack.c.l.s4 1983009808
        %v1971 = vunpack.c.0.s8 %v1970
        %v1972 = vlaneseq
        %v1973 = vshrl.u32 %v1972, 7
        %v1974 = vsub.s32 %v1971, %v1973
        %v1975 = vrot.slane %v1916, %v1974
        %v1977 = vunpack.c.l.s4 1983009808
        %v1978 = vunpack.c.0.s8 %v1977
        %v1979 = vlaneseq
        %v1980 = vshrl.u32 %v1979, 7
        %v1981 = vsub.s32 %v1978, %v1980
        %v1982 = vrot.slane %v1968, %v1981
        %v1983 = vcombine.high %v1975, 0.0
        %v1985 = vunpack.c.l.s4 1934713408
        %v1986 = vunpack.c.0.s8 %v1985
        %v1987 = vlaneseq
        %v1988 = vshrl.u32 %v1987, 7
        %v1989 = vsub.s32 %v1986, %v1988
        %v1990 = vrot.slane %v1975, %v1989
        %v1992 = vunpack.c.l.s4 1934713408
        %v1993 = vunpack.c.0.s8 %v1992
        %v1994 = vlaneseq
        %v1995 = vshrl.u32 %v1994, 7
        %v1996 = vsub.s32 %v1993, %v1995
        %v1997 = vrot.slane %v1983, %v1996
        %v1998 = vcombine.high %v1982, 0.0
        %v2000 = vunpack.c.l.s4 1934713408
        %v2001 = vunpack.c.0.s8 %v2000
        %v2002 = vlaneseq
        %v2003 = vshrl.u32 %v2002, 7
        %v2004 = vsub.s32 %v2001, %v2003
        %v2005 = vrot.slane %v1982, %v2004
        %v2007 = vunpack.c.l.s4 1934713408
        %v2008 = vunpack.c.0.s8 %v2007
        %v2009 = vlaneseq
        %v2010 = vshrl.u32 %v2009, 7
        %v2011 = vsub.s32 %v2008, %v2010
        %v2012 = vrot.slane %v1998, %v2011
        %v2013 = vcombine.high %v1990, 0.0
        %v2014 = vcombine.high %v1997, 0.0
        %v2015 = vcombine.high %v2005, 0.0
        %v2016 = vcombine.high %v2012, 0.0
        %2018 = vrot.lane.b32.xlu0 %v1964, 16
        %v2019 = vpop.permute.xlu0 %2018
        %2022 = vrot.lane.b32.xlu0 %v1948, 32
        %v2023 = vpop.permute.xlu0 %2022
        %2026 = vrot.lane.b32.xlu0 %v1965, 48
        %v2027 = vpop.permute.xlu0 %2026
        %2030 = vrot.lane.b32.xlu0 %v1956, 64
        %v2031 = vpop.permute.xlu0 %2030
        %2034 = vrot.lane.b32.xlu0 %v1966, 80
        %v2035 = vpop.permute.xlu0 %2034
        %2038 = vrot.lane.b32.xlu0 %v1963, 96
        %v2039 = vpop.permute.xlu0 %2038
        %2042 = vrot.lane.b32.xlu0 %v1967, 112
        %v2043 = vpop.permute.xlu0 %2042
        %2046 = vrot.lane.b32.xlu0 %v2013, 16
        %v2047 = vpop.permute.xlu0 %2046
        %2050 = vrot.lane.b32.xlu0 %v1997, 32
        %v2051 = vpop.permute.xlu0 %2050
        %2054 = vrot.lane.b32.xlu0 %v2014, 48
        %v2055 = vpop.permute.xlu0 %2054
        %2058 = vrot.lane.b32.xlu0 %v2005, 64
        %v2059 = vpop.permute.xlu0 %2058
        %2062 = vrot.lane.b32.xlu0 %v2015, 80
        %v2063 = vpop.permute.xlu0 %2062
        %2066 = vrot.lane.b32.xlu0 %v2012, 96
        %v2067 = vpop.permute.xlu0 %2066
        %2070 = vrot.lane.b32.xlu0 %v2016, 112
        %v2071 = vpop.permute.xlu0 %2070
        %v2073 = vsel %vm329, %v1941, %v2019
        %v2074 = vsel %vm331, %v2073, %v2023
        %v2075 = vsel %vm333, %v2074, %v2027
        %v2076 = vsel %vm335, %v2075, %v2031
        %v2077 = vsel %vm337, %v2076, %v2035
        %v2078 = vsel %vm339, %v2077, %v2039
        %v2079 = vsel %vm341, %v2078, %v2043
        %v2080 = vsel %vm329, %v1990, %v2047
        %v2081 = vsel %vm331, %v2080, %v2051
        %v2082 = vsel %vm333, %v2081, %v2055
        %v2083 = vsel %vm335, %v2082, %v2059
        %v2084 = vsel %vm337, %v2083, %v2063
        %v2085 = vsel %vm339, %v2084, %v2067
        %v2086 = vsel %vm341, %v2085, %v2071
        %2087 = vrot.lane.b32.xlu0 %v1741, 126
        %v2088 = vpop.permute.xlu0 %2087
        %2089 = vrot.lane.b32.xlu0 %v1742, 126
        %v2090 = vpop.permute.xlu0 %2089
        %v2093 = vcombine.high %v2088, 0.0
        %v2095 = vunpack.c.l.s4 1983009808
        %v2096 = vunpack.c.0.s8 %v2095
        %v2097 = vlaneseq
        %v2098 = vshrl.u32 %v2097, 7
        %v2099 = vsub.s32 %v2096, %v2098
        %v2100 = vrot.slane %v2088, %v2099
        %v2102 = vunpack.c.l.s4 1983009808
        %v2103 = vunpack.c.0.s8 %v2102
        %v2104 = vlaneseq
        %v2105 = vshrl.u32 %v2104, 7
        %v2106 = vsub.s32 %v2103, %v2105
        %v2107 = vrot.slane %v2093, %v2106
        %v2108 = vcombine.high %v2100, 0.0
        %v2110 = vunpack.c.l.s4 1934713408
        %v2111 = vunpack.c.0.s8 %v2110
        %v2112 = vlaneseq
        %v2113 = vshrl.u32 %v2112, 7
        %v2114 = vsub.s32 %v2111, %v2113
        %v2115 = vrot.slane %v2100, %v2114
        %v2117 = vunpack.c.l.s4 1934713408
        %v2118 = vunpack.c.0.s8 %v2117
        %v2119 = vlaneseq
        %v2120 = vshrl.u32 %v2119, 7
        %v2121 = vsub.s32 %v2118, %v2120
        %v2122 = vrot.slane %v2108, %v2121
        %v2123 = vcombine.high %v2107, 0.0
        %v2125 = vunpack.c.l.s4 1934713408
        %v2126 = vunpack.c.0.s8 %v2125
        %v2127 = vlaneseq
        %v2128 = vshrl.u32 %v2127, 7
        %v2129 = vsub.s32 %v2126, %v2128
        %v2130 = vrot.slane %v2107, %v2129
        %v2132 = vunpack.c.l.s4 1934713408
        %v2133 = vunpack.c.0.s8 %v2132
        %v2134 = vlaneseq
        %v2135 = vshrl.u32 %v2134, 7
        %v2136 = vsub.s32 %v2133, %v2135
        %v2137 = vrot.slane %v2123, %v2136
        %v2138 = vcombine.high %v2115, 0.0
        %v2139 = vcombine.high %v2122, 0.0
        %v2140 = vcombine.high %v2130, 0.0
        %v2141 = vcombine.high %v2137, 0.0
        %v2142 = vcombine.high %v2090, 0.0
        %v2144 = vunpack.c.l.s4 1983009808
        %v2145 = vunpack.c.0.s8 %v2144
        %v2146 = vlaneseq
        %v2147 = vshrl.u32 %v2146, 7
        %v2148 = vsub.s32 %v2145, %v2147
        %v2149 = vrot.slane %v2090, %v2148
        %v2151 = vunpack.c.l.s4 1983009808
        %v2152 = vunpack.c.0.s8 %v2151
        %v2153 = vlaneseq
        %v2154 = vshrl.u32 %v2153, 7
        %v2155 = vsub.s32 %v2152, %v2154
        %v2156 = vrot.slane %v2142, %v2155
        %v2157 = vcombine.high %v2149, 0.0
        %v2159 = vunpack.c.l.s4 1934713408
        %v2160 = vunpack.c.0.s8 %v2159
        %v2161 = vlaneseq
        %v2162 = vshrl.u32 %v2161, 7
        %v2163 = vsub.s32 %v2160, %v2162
        %v2164 = vrot.slane %v2149, %v2163
        %v2166 = vunpack.c.l.s4 1934713408
        %v2167 = vunpack.c.0.s8 %v2166
        %v2168 = vlaneseq
        %v2169 = vshrl.u32 %v2168, 7
        %v2170 = vsub.s32 %v2167, %v2169
        %v2171 = vrot.slane %v2157, %v2170
        %v2172 = vcombine.high %v2156, 0.0
        %v2174 = vunpack.c.l.s4 1934713408
        %v2175 = vunpack.c.0.s8 %v2174
        %v2176 = vlaneseq
        %v2177 = vshrl.u32 %v2176, 7
        %v2178 = vsub.s32 %v2175, %v2177
        %v2179 = vrot.slane %v2156, %v2178
        %v2181 = vunpack.c.l.s4 1934713408
        %v2182 = vunpack.c.0.s8 %v2181
        %v2183 = vlaneseq
        %v2184 = vshrl.u32 %v2183, 7
        %v2185 = vsub.s32 %v2182, %v2184
        %v2186 = vrot.slane %v2172, %v2185
        %v2187 = vcombine.high %v2164, 0.0
        %v2188 = vcombine.high %v2171, 0.0
        %v2189 = vcombine.high %v2179, 0.0
        %v2190 = vcombine.high %v2186, 0.0
        %2192 = vrot.lane.b32.xlu0 %v2138, 16
        %v2193 = vpop.permute.xlu0 %2192
        %2196 = vrot.lane.b32.xlu0 %v2122, 32
        %v2197 = vpop.permute.xlu0 %2196
        %2200 = vrot.lane.b32.xlu0 %v2139, 48
        %v2201 = vpop.permute.xlu0 %2200
        %2204 = vrot.lane.b32.xlu0 %v2130, 64
        %v2205 = vpop.permute.xlu0 %2204
        %2208 = vrot.lane.b32.xlu0 %v2140, 80
        %v2209 = vpop.permute.xlu0 %2208
        %2212 = vrot.lane.b32.xlu0 %v2137, 96
        %v2213 = vpop.permute.xlu0 %2212
        %2216 = vrot.lane.b32.xlu0 %v2141, 112
        %v2217 = vpop.permute.xlu0 %2216
        %2220 = vrot.lane.b32.xlu0 %v2187, 16
        %v2221 = vpop.permute.xlu0 %2220
        %2224 = vrot.lane.b32.xlu0 %v2171, 32
        %v2225 = vpop.permute.xlu0 %2224
        %2228 = vrot.lane.b32.xlu0 %v2188, 48
        %v2229 = vpop.permute.xlu0 %2228
        %2232 = vrot.lane.b32.xlu0 %v2179, 64
        %v2233 = vpop.permute.xlu0 %2232
        %2236 = vrot.lane.b32.xlu0 %v2189, 80
        %v2237 = vpop.permute.xlu0 %2236
        %2240 = vrot.lane.b32.xlu0 %v2186, 96
        %v2241 = vpop.permute.xlu0 %2240
        %2244 = vrot.lane.b32.xlu0 %v2190, 112
        %v2245 = vpop.permute.xlu0 %2244
        %v2247 = vsel %vm329, %v2115, %v2193
        %v2248 = vsel %vm331, %v2247, %v2197
        %v2249 = vsel %vm333, %v2248, %v2201
        %v2250 = vsel %vm335, %v2249, %v2205
        %v2251 = vsel %vm337, %v2250, %v2209
        %v2252 = vsel %vm339, %v2251, %v2213
        %v2253 = vsel %vm341, %v2252, %v2217
        %v2254 = vsel %vm329, %v2164, %v2221
        %v2255 = vsel %vm331, %v2254, %v2225
        %v2256 = vsel %vm333, %v2255, %v2229
        %v2257 = vsel %vm335, %v2256, %v2233
        %v2258 = vsel %vm337, %v2257, %v2237
        %v2259 = vsel %vm339, %v2258, %v2241
        %v2260 = vsel %vm341, %v2259, %v2245
        %v2261 = vld [vmem:[%s1740 + $0x1] sm:$0xff]
        %v2262 = vld [vmem:[%s1740 + $0x9] sm:$0xff]
        %v2263 = vcombine.high %v2261, 0.0
        %v2265 = vunpack.c.l.s4 1983009808
        %v2266 = vunpack.c.0.s8 %v2265
        %v2267 = vlaneseq
        %v2268 = vshrl.u32 %v2267, 7
        %v2269 = vsub.s32 %v2266, %v2268
        %v2270 = vrot.slane %v2261, %v2269
        %v2272 = vunpack.c.l.s4 1983009808
        %v2273 = vunpack.c.0.s8 %v2272
        %v2274 = vlaneseq
        %v2275 = vshrl.u32 %v2274, 7
        %v2276 = vsub.s32 %v2273, %v2275
        %v2277 = vrot.slane %v2263, %v2276
        %v2278 = vcombine.high %v2270, 0.0
        %v2280 = vunpack.c.l.s4 1934713408
        %v2281 = vunpack.c.0.s8 %v2280
        %v2282 = vlaneseq
        %v2283 = vshrl.u32 %v2282, 7
        %v2284 = vsub.s32 %v2281, %v2283
        %v2285 = vrot.slane %v2270, %v2284
        %v2287 = vunpack.c.l.s4 1934713408
        %v2288 = vunpack.c.0.s8 %v2287
        %v2289 = vlaneseq
        %v2290 = vshrl.u32 %v2289, 7
        %v2291 = vsub.s32 %v2288, %v2290
        %v2292 = vrot.slane %v2278, %v2291
        %v2293 = vcombine.high %v2277, 0.0
        %v2295 = vunpack.c.l.s4 1934713408
        %v2296 = vunpack.c.0.s8 %v2295
        %v2297 = vlaneseq
        %v2298 = vshrl.u32 %v2297, 7
        %v2299 = vsub.s32 %v2296, %v2298
        %v2300 = vrot.slane %v2277, %v2299
        %v2302 = vunpack.c.l.s4 1934713408
        %v2303 = vunpack.c.0.s8 %v2302
        %v2304 = vlaneseq
        %v2305 = vshrl.u32 %v2304, 7
        %v2306 = vsub.s32 %v2303, %v2305
        %v2307 = vrot.slane %v2293, %v2306
        %v2308 = vcombine.high %v2285, 0.0
        %v2309 = vcombine.high %v2292, 0.0
        %v2310 = vcombine.high %v2300, 0.0
        %v2311 = vcombine.high %v2307, 0.0
        %v2312 = vcombine.high %v2262, 0.0
        %v2314 = vunpack.c.l.s4 1983009808
        %v2315 = vunpack.c.0.s8 %v2314
        %v2316 = vlaneseq
        %v2317 = vshrl.u32 %v2316, 7
        %v2318 = vsub.s32 %v2315, %v2317
        %v2319 = vrot.slane %v2262, %v2318
        %v2321 = vunpack.c.l.s4 1983009808
        %v2322 = vunpack.c.0.s8 %v2321
        %v2323 = vlaneseq
        %v2324 = vshrl.u32 %v2323, 7
        %v2325 = vsub.s32 %v2322, %v2324
        %v2326 = vrot.slane %v2312, %v2325
        %v2327 = vcombine.high %v2319, 0.0
        %v2329 = vunpack.c.l.s4 1934713408
        %v2330 = vunpack.c.0.s8 %v2329
        %v2331 = vlaneseq
        %v2332 = vshrl.u32 %v2331, 7
        %v2333 = vsub.s32 %v2330, %v2332
        %v2334 = vrot.slane %v2319, %v2333
        %v2336 = vunpack.c.l.s4 1934713408
        %v2337 = vunpack.c.0.s8 %v2336
        %v2338 = vlaneseq
        %v2339 = vshrl.u32 %v2338, 7
        %v2340 = vsub.s32 %v2337, %v2339
        %v2341 = vrot.slane %v2327, %v2340
        %v2342 = vcombine.high %v2326, 0.0
        %v2344 = vunpack.c.l.s4 1934713408
        %v2345 = vunpack.c.0.s8 %v2344
        %v2346 = vlaneseq
        %v2347 = vshrl.u32 %v2346, 7
        %v2348 = vsub.s32 %v2345, %v2347
        %v2349 = vrot.slane %v2326, %v2348
        %v2351 = vunpack.c.l.s4 1934713408
        %v2352 = vunpack.c.0.s8 %v2351
        %v2353 = vlaneseq
        %v2354 = vshrl.u32 %v2353, 7
        %v2355 = vsub.s32 %v2352, %v2354
        %v2356 = vrot.slane %v2342, %v2355
        %v2357 = vcombine.high %v2334, 0.0
        %v2358 = vcombine.high %v2341, 0.0
        %v2359 = vcombine.high %v2349, 0.0
        %v2360 = vcombine.high %v2356, 0.0
        %2362 = vrot.lane.b32.xlu0 %v2308, 16
        %v2363 = vpop.permute.xlu0 %2362
        %2366 = vrot.lane.b32.xlu0 %v2292, 32
        %v2367 = vpop.permute.xlu0 %2366
        %2370 = vrot.lane.b32.xlu0 %v2309, 48
        %v2371 = vpop.permute.xlu0 %2370
        %2374 = vrot.lane.b32.xlu0 %v2300, 64
        %v2375 = vpop.permute.xlu0 %2374
        %2378 = vrot.lane.b32.xlu0 %v2310, 80
        %v2379 = vpop.permute.xlu0 %2378
        %2382 = vrot.lane.b32.xlu0 %v2307, 96
        %v2383 = vpop.permute.xlu0 %2382
        %2386 = vrot.lane.b32.xlu0 %v2311, 112
        %v2387 = vpop.permute.xlu0 %2386
        %2390 = vrot.lane.b32.xlu0 %v2357, 16
        %v2391 = vpop.permute.xlu0 %2390
        %2394 = vrot.lane.b32.xlu0 %v2341, 32
        %v2395 = vpop.permute.xlu0 %2394
        %2398 = vrot.lane.b32.xlu0 %v2358, 48
        %v2399 = vpop.permute.xlu0 %2398
        %2402 = vrot.lane.b32.xlu0 %v2349, 64
        %v2403 = vpop.permute.xlu0 %2402
        %2406 = vrot.lane.b32.xlu0 %v2359, 80
        %v2407 = vpop.permute.xlu0 %2406
        %2410 = vrot.lane.b32.xlu0 %v2356, 96
        %v2411 = vpop.permute.xlu0 %2410
        %2414 = vrot.lane.b32.xlu0 %v2360, 112
        %v2415 = vpop.permute.xlu0 %2414
        %v2417 = vsel %vm329, %v2285, %v2363
        %v2418 = vsel %vm331, %v2417, %v2367
        %v2419 = vsel %vm333, %v2418, %v2371
        %v2420 = vsel %vm335, %v2419, %v2375
        %v2421 = vsel %vm337, %v2420, %v2379
        %v2422 = vsel %vm339, %v2421, %v2383
        %v2423 = vsel %vm341, %v2422, %v2387
        %v2424 = vsel %vm329, %v2334, %v2391
        %v2425 = vsel %vm331, %v2424, %v2395
        %v2426 = vsel %vm333, %v2425, %v2399
        %v2427 = vsel %vm335, %v2426, %v2403
        %v2428 = vsel %vm337, %v2427, %v2407
        %v2429 = vsel %vm339, %v2428, %v2411
        %v2430 = vsel %vm341, %v2429, %v2415
        %2433 = vrot.lane.b32.xlu0 %v2261, 127
        %v2434 = vpop.permute.xlu0 %2433
        %2435 = vrot.lane.b32.xlu0 %v2262, 127
        %v2436 = vpop.permute.xlu0 %2435
        %v2439 = vcombine.high %v2434, 0.0
        %v2441 = vunpack.c.l.s4 1983009808
        %v2442 = vunpack.c.0.s8 %v2441
        %v2443 = vlaneseq
        %v2444 = vshrl.u32 %v2443, 7
        %v2445 = vsub.s32 %v2442, %v2444
        %v2446 = vrot.slane %v2434, %v2445
        %v2448 = vunpack.c.l.s4 1983009808
        %v2449 = vunpack.c.0.s8 %v2448
        %v2450 = vlaneseq
        %v2451 = vshrl.u32 %v2450, 7
        %v2452 = vsub.s32 %v2449, %v2451
        %v2453 = vrot.slane %v2439, %v2452
        %v2454 = vcombine.high %v2446, 0.0
        %v2456 = vunpack.c.l.s4 1934713408
        %v2457 = vunpack.c.0.s8 %v2456
        %v2458 = vlaneseq
        %v2459 = vshrl.u32 %v2458, 7
        %v2460 = vsub.s32 %v2457, %v2459
        %v2461 = vrot.slane %v2446, %v2460
        %v2463 = vunpack.c.l.s4 1934713408
        %v2464 = vunpack.c.0.s8 %v2463
        %v2465 = vlaneseq
        %v2466 = vshrl.u32 %v2465, 7
        %v2467 = vsub.s32 %v2464, %v2466
        %v2468 = vrot.slane %v2454, %v2467
        %v2469 = vcombine.high %v2453, 0.0
        %v2471 = vunpack.c.l.s4 1934713408
        %v2472 = vunpack.c.0.s8 %v2471
        %v2473 = vlaneseq
        %v2474 = vshrl.u32 %v2473, 7
        %v2475 = vsub.s32 %v2472, %v2474
        %v2476 = vrot.slane %v2453, %v2475
        %v2478 = vunpack.c.l.s4 1934713408
        %v2479 = vunpack.c.0.s8 %v2478
        %v2480 = vlaneseq
        %v2481 = vshrl.u32 %v2480, 7
        %v2482 = vsub.s32 %v2479, %v2481
        %v2483 = vrot.slane %v2469, %v2482
        %v2484 = vcombine.high %v2461, 0.0
        %v2485 = vcombine.high %v2468, 0.0
        %v2486 = vcombine.high %v2476, 0.0
        %v2487 = vcombine.high %v2483, 0.0
        %v2488 = vcombine.high %v2436, 0.0
        %v2490 = vunpack.c.l.s4 1983009808
        %v2491 = vunpack.c.0.s8 %v2490
        %v2492 = vlaneseq
        %v2493 = vshrl.u32 %v2492, 7
        %v2494 = vsub.s32 %v2491, %v2493
        %v2495 = vrot.slane %v2436, %v2494
        %v2497 = vunpack.c.l.s4 1983009808
        %v2498 = vunpack.c.0.s8 %v2497
        %v2499 = vlaneseq
        %v2500 = vshrl.u32 %v2499, 7
        %v2501 = vsub.s32 %v2498, %v2500
        %v2502 = vrot.slane %v2488, %v2501
        %v2503 = vcombine.high %v2495, 0.0
        %v2505 = vunpack.c.l.s4 1934713408
        %v2506 = vunpack.c.0.s8 %v2505
        %v2507 = vlaneseq
        %v2508 = vshrl.u32 %v2507, 7
        %v2509 = vsub.s32 %v2506, %v2508
        %v2510 = vrot.slane %v2495, %v2509
        %v2512 = vunpack.c.l.s4 1934713408
        %v2513 = vunpack.c.0.s8 %v2512
        %v2514 = vlaneseq
        %v2515 = vshrl.u32 %v2514, 7
        %v2516 = vsub.s32 %v2513, %v2515
        %v2517 = vrot.slane %v2503, %v2516
        %v2518 = vcombine.high %v2502, 0.0
        %v2520 = vunpack.c.l.s4 1934713408
        %v2521 = vunpack.c.0.s8 %v2520
        %v2522 = vlaneseq
        %v2523 = vshrl.u32 %v2522, 7
        %v2524 = vsub.s32 %v2521, %v2523
        %v2525 = vrot.slane %v2502, %v2524
        %v2527 = vunpack.c.l.s4 1934713408
        %v2528 = vunpack.c.0.s8 %v2527
        %v2529 = vlaneseq
        %v2530 = vshrl.u32 %v2529, 7
        %v2531 = vsub.s32 %v2528, %v2530
        %v2532 = vrot.slane %v2518, %v2531
        %v2533 = vcombine.high %v2510, 0.0
        %v2534 = vcombine.high %v2517, 0.0
        %v2535 = vcombine.high %v2525, 0.0
        %v2536 = vcombine.high %v2532, 0.0
        %2538 = vrot.lane.b32.xlu0 %v2484, 16
        %v2539 = vpop.permute.xlu0 %2538
        %2542 = vrot.lane.b32.xlu0 %v2468, 32
        %v2543 = vpop.permute.xlu0 %2542
        %2546 = vrot.lane.b32.xlu0 %v2485, 48
        %v2547 = vpop.permute.xlu0 %2546
        %2550 = vrot.lane.b32.xlu0 %v2476, 64
        %v2551 = vpop.permute.xlu0 %2550
        %2554 = vrot.lane.b32.xlu0 %v2486, 80
        %v2555 = vpop.permute.xlu0 %2554
        %2558 = vrot.lane.b32.xlu0 %v2483, 96
        %v2559 = vpop.permute.xlu0 %2558
        %2562 = vrot.lane.b32.xlu0 %v2487, 112
        %v2563 = vpop.permute.xlu0 %2562
        %2566 = vrot.lane.b32.xlu0 %v2533, 16
        %v2567 = vpop.permute.xlu0 %2566
        %2570 = vrot.lane.b32.xlu0 %v2517, 32
        %v2571 = vpop.permute.xlu0 %2570
        %2574 = vrot.lane.b32.xlu0 %v2534, 48
        %v2575 = vpop.permute.xlu0 %2574
        %2578 = vrot.lane.b32.xlu0 %v2525, 64
        %v2579 = vpop.permute.xlu0 %2578
        %2582 = vrot.lane.b32.xlu0 %v2535, 80
        %v2583 = vpop.permute.xlu0 %2582
        %2586 = vrot.lane.b32.xlu0 %v2532, 96
        %v2587 = vpop.permute.xlu0 %2586
        %2590 = vrot.lane.b32.xlu0 %v2536, 112
        %v2591 = vpop.permute.xlu0 %2590
        %v2593 = vsel %vm329, %v2461, %v2539
        %v2594 = vsel %vm331, %v2593, %v2543
        %v2595 = vsel %vm333, %v2594, %v2547
        %v2596 = vsel %vm335, %v2595, %v2551
        %v2597 = vsel %vm337, %v2596, %v2555
        %v2598 = vsel %vm339, %v2597, %v2559
        %v2599 = vsel %vm341, %v2598, %v2563
        %v2600 = vsel %vm329, %v2510, %v2567
        %v2601 = vsel %vm331, %v2600, %v2571
        %v2602 = vsel %vm333, %v2601, %v2575
        %v2603 = vsel %vm335, %v2602, %v2579
        %v2604 = vsel %vm337, %v2603, %v2583
        %v2605 = vsel %vm339, %v2604, %v2587
        %v2606 = vsel %vm341, %v2605, %v2591
        %2607 = vrot.lane.b32.xlu0 %v2261, 126
        %v2608 = vpop.permute.xlu0 %2607
        %2609 = vrot.lane.b32.xlu0 %v2262, 126
        %v2610 = vpop.permute.xlu0 %2609
        %v2613 = vcombine.high %v2608, 0.0
        %v2615 = vunpack.c.l.s4 1983009808
        %v2616 = vunpack.c.0.s8 %v2615
        %v2617 = vlaneseq
        %v2618 = vshrl.u32 %v2617, 7
        %v2619 = vsub.s32 %v2616, %v2618
        %v2620 = vrot.slane %v2608, %v2619
        %v2622 = vunpack.c.l.s4 1983009808
        %v2623 = vunpack.c.0.s8 %v2622
        %v2624 = vlaneseq
        %v2625 = vshrl.u32 %v2624, 7
        %v2626 = vsub.s32 %v2623, %v2625
        %v2627 = vrot.slane %v2613, %v2626
        %v2628 = vcombine.high %v2620, 0.0
        %v2630 = vunpack.c.l.s4 1934713408
        %v2631 = vunpack.c.0.s8 %v2630
        %v2632 = vlaneseq
        %v2633 = vshrl.u32 %v2632, 7
        %v2634 = vsub.s32 %v2631, %v2633
        %v2635 = vrot.slane %v2620, %v2634
        %v2637 = vunpack.c.l.s4 1934713408
        %v2638 = vunpack.c.0.s8 %v2637
        %v2639 = vlaneseq
        %v2640 = vshrl.u32 %v2639, 7
        %v2641 = vsub.s32 %v2638, %v2640
        %v2642 = vrot.slane %v2628, %v2641
        %v2643 = vcombine.high %v2627, 0.0
        %v2645 = vunpack.c.l.s4 1934713408
        %v2646 = vunpack.c.0.s8 %v2645
        %v2647 = vlaneseq
        %v2648 = vshrl.u32 %v2647, 7
        %v2649 = vsub.s32 %v2646, %v2648
        %v2650 = vrot.slane %v2627, %v2649
        %v2652 = vunpack.c.l.s4 1934713408
        %v2653 = vunpack.c.0.s8 %v2652
        %v2654 = vlaneseq
        %v2655 = vshrl.u32 %v2654, 7
        %v2656 = vsub.s32 %v2653, %v2655
        %v2657 = vrot.slane %v2643, %v2656
        %v2658 = vcombine.high %v2635, 0.0
        %v2659 = vcombine.high %v2642, 0.0
        %v2660 = vcombine.high %v2650, 0.0
        %v2661 = vcombine.high %v2657, 0.0
        %v2662 = vcombine.high %v2610, 0.0
        %v2664 = vunpack.c.l.s4 1983009808
        %v2665 = vunpack.c.0.s8 %v2664
        %v2666 = vlaneseq
        %v2667 = vshrl.u32 %v2666, 7
        %v2668 = vsub.s32 %v2665, %v2667
        %v2669 = vrot.slane %v2610, %v2668
        %v2671 = vunpack.c.l.s4 1983009808
        %v2672 = vunpack.c.0.s8 %v2671
        %v2673 = vlaneseq
        %v2674 = vshrl.u32 %v2673, 7
        %v2675 = vsub.s32 %v2672, %v2674
        %v2676 = vrot.slane %v2662, %v2675
        %v2677 = vcombine.high %v2669, 0.0
        %v2679 = vunpack.c.l.s4 1934713408
        %v2680 = vunpack.c.0.s8 %v2679
        %v2681 = vlaneseq
        %v2682 = vshrl.u32 %v2681, 7
        %v2683 = vsub.s32 %v2680, %v2682
        %v2684 = vrot.slane %v2669, %v2683
        %v2686 = vunpack.c.l.s4 1934713408
        %v2687 = vunpack.c.0.s8 %v2686
        %v2688 = vlaneseq
        %v2689 = vshrl.u32 %v2688, 7
        %v2690 = vsub.s32 %v2687, %v2689
        %v2691 = vrot.slane %v2677, %v2690
        %v2692 = vcombine.high %v2676, 0.0
        %v2694 = vunpack.c.l.s4 1934713408
        %v2695 = vunpack.c.0.s8 %v2694
        %v2696 = vlaneseq
        %v2697 = vshrl.u32 %v2696, 7
        %v2698 = vsub.s32 %v2695, %v2697
        %v2699 = vrot.slane %v2676, %v2698
        %v2701 = vunpack.c.l.s4 1934713408
        %v2702 = vunpack.c.0.s8 %v2701
        %v2703 = vlaneseq
        %v2704 = vshrl.u32 %v2703, 7
        %v2705 = vsub.s32 %v2702, %v2704
        %v2706 = vrot.slane %v2692, %v2705
        %v2707 = vcombine.high %v2684, 0.0
        %v2708 = vcombine.high %v2691, 0.0
        %v2709 = vcombine.high %v2699, 0.0
        %v2710 = vcombine.high %v2706, 0.0
        %2712 = vrot.lane.b32.xlu0 %v2658, 16
        %v2713 = vpop.permute.xlu0 %2712
        %2716 = vrot.lane.b32.xlu0 %v2642, 32
        %v2717 = vpop.permute.xlu0 %2716
        %2720 = vrot.lane.b32.xlu0 %v2659, 48
        %v2721 = vpop.permute.xlu0 %2720
        %2724 = vrot.lane.b32.xlu0 %v2650, 64
        %v2725 = vpop.permute.xlu0 %2724
        %2728 = vrot.lane.b32.xlu0 %v2660, 80
        %v2729 = vpop.permute.xlu0 %2728
        %2732 = vrot.lane.b32.xlu0 %v2657, 96
        %v2733 = vpop.permute.xlu0 %2732
        %2736 = vrot.lane.b32.xlu0 %v2661, 112
        %v2737 = vpop.permute.xlu0 %2736
        %2740 = vrot.lane.b32.xlu0 %v2707, 16
        %v2741 = vpop.permute.xlu0 %2740
        %2744 = vrot.lane.b32.xlu0 %v2691, 32
        %v2745 = vpop.permute.xlu0 %2744
        %2748 = vrot.lane.b32.xlu0 %v2708, 48
        %v2749 = vpop.permute.xlu0 %2748
        %2752 = vrot.lane.b32.xlu0 %v2699, 64
        %v2753 = vpop.permute.xlu0 %2752
        %2756 = vrot.lane.b32.xlu0 %v2709, 80
        %v2757 = vpop.permute.xlu0 %2756
        %2760 = vrot.lane.b32.xlu0 %v2706, 96
        %v2761 = vpop.permute.xlu0 %2760
        %2764 = vrot.lane.b32.xlu0 %v2710, 112
        %v2765 = vpop.permute.xlu0 %2764
        %v2767 = vsel %vm329, %v2635, %v2713
        %v2768 = vsel %vm331, %v2767, %v2717
        %v2769 = vsel %vm333, %v2768, %v2721
        %v2770 = vsel %vm335, %v2769, %v2725
        %v2771 = vsel %vm337, %v2770, %v2729
        %v2772 = vsel %vm339, %v2771, %v2733
        %v2773 = vsel %vm341, %v2772, %v2737
        %v2774 = vsel %vm329, %v2684, %v2741
        %v2775 = vsel %vm331, %v2774, %v2745
        %v2776 = vsel %vm333, %v2775, %v2749
        %v2777 = vsel %vm335, %v2776, %v2753
        %v2778 = vsel %vm337, %v2777, %v2757
        %v2779 = vsel %vm339, %v2778, %v2761
        %v2780 = vsel %vm341, %v2779, %v2765
        %v2781 = vld [vmem:[%s1740 + $0x2] sm:$0xff]
        %v2782 = vld [vmem:[%s1740 + $0xa] sm:$0xff]
        %v2783 = vcombine.high %v2781, 0.0
        %v2785 = vunpack.c.l.s4 1983009808
        %v2786 = vunpack.c.0.s8 %v2785
        %v2787 = vlaneseq
        %v2788 = vshrl.u32 %v2787, 7
        %v2789 = vsub.s32 %v2786, %v2788
        %v2790 = vrot.slane %v2781, %v2789
        %v2792 = vunpack.c.l.s4 1983009808
        %v2793 = vunpack.c.0.s8 %v2792
        %v2794 = vlaneseq
        %v2795 = vshrl.u32 %v2794, 7
        %v2796 = vsub.s32 %v2793, %v2795
        %v2797 = vrot.slane %v2783, %v2796
        %v2798 = vcombine.high %v2790, 0.0
        %v2800 = vunpack.c.l.s4 1934713408
        %v2801 = vunpack.c.0.s8 %v2800
        %v2802 = vlaneseq
        %v2803 = vshrl.u32 %v2802, 7
        %v2804 = vsub.s32 %v2801, %v2803
        %v2805 = vrot.slane %v2790, %v2804
        %v2807 = vunpack.c.l.s4 1934713408
        %v2808 = vunpack.c.0.s8 %v2807
        %v2809 = vlaneseq
        %v2810 = vshrl.u32 %v2809, 7
        %v2811 = vsub.s32 %v2808, %v2810
        %v2812 = vrot.slane %v2798, %v2811
        %v2813 = vcombine.high %v2797, 0.0
        %v2815 = vunpack.c.l.s4 1934713408
        %v2816 = vunpack.c.0.s8 %v2815
        %v2817 = vlaneseq
        %v2818 = vshrl.u32 %v2817, 7
        %v2819 = vsub.s32 %v2816, %v2818
        %v2820 = vrot.slane %v2797, %v2819
        %v2822 = vunpack.c.l.s4 1934713408
        %v2823 = vunpack.c.0.s8 %v2822
        %v2824 = vlaneseq
        %v2825 = vshrl.u32 %v2824, 7
        %v2826 = vsub.s32 %v2823, %v2825
        %v2827 = vrot.slane %v2813, %v2826
        %v2828 = vcombine.high %v2805, 0.0
        %v2829 = vcombine.high %v2812, 0.0
        %v2830 = vcombine.high %v2820, 0.0
        %v2831 = vcombine.high %v2827, 0.0
        %v2832 = vcombine.high %v2782, 0.0
        %v2834 = vunpack.c.l.s4 1983009808
        %v2835 = vunpack.c.0.s8 %v2834
        %v2836 = vlaneseq
        %v2837 = vshrl.u32 %v2836, 7
        %v2838 = vsub.s32 %v2835, %v2837
        %v2839 = vrot.slane %v2782, %v2838
        %v2841 = vunpack.c.l.s4 1983009808
        %v2842 = vunpack.c.0.s8 %v2841
        %v2843 = vlaneseq
        %v2844 = vshrl.u32 %v2843, 7
        %v2845 = vsub.s32 %v2842, %v2844
        %v2846 = vrot.slane %v2832, %v2845
        %v2847 = vcombine.high %v2839, 0.0
        %v2849 = vunpack.c.l.s4 1934713408
        %v2850 = vunpack.c.0.s8 %v2849
        %v2851 = vlaneseq
        %v2852 = vshrl.u32 %v2851, 7
        %v2853 = vsub.s32 %v2850, %v2852
        %v2854 = vrot.slane %v2839, %v2853
        %v2856 = vunpack.c.l.s4 1934713408
        %v2857 = vunpack.c.0.s8 %v2856
        %v2858 = vlaneseq
        %v2859 = vshrl.u32 %v2858, 7
        %v2860 = vsub.s32 %v2857, %v2859
        %v2861 = vrot.slane %v2847, %v2860
        %v2862 = vcombine.high %v2846, 0.0
        %v2864 = vunpack.c.l.s4 1934713408
        %v2865 = vunpack.c.0.s8 %v2864
        %v2866 = vlaneseq
        %v2867 = vshrl.u32 %v2866, 7
        %v2868 = vsub.s32 %v2865, %v2867
        %v2869 = vrot.slane %v2846, %v2868
        %v2871 = vunpack.c.l.s4 1934713408
        %v2872 = vunpack.c.0.s8 %v2871
        %v2873 = vlaneseq
        %v2874 = vshrl.u32 %v2873, 7
        %v2875 = vsub.s32 %v2872, %v2874
        %v2876 = vrot.slane %v2862, %v2875
        %v2877 = vcombine.high %v2854, 0.0
        %v2878 = vcombine.high %v2861, 0.0
        %v2879 = vcombine.high %v2869, 0.0
        %v2880 = vcombine.high %v2876, 0.0
        %2882 = vrot.lane.b32.xlu0 %v2828, 16
        %v2883 = vpop.permute.xlu0 %2882
        %2886 = vrot.lane.b32.xlu0 %v2812, 32
        %v2887 = vpop.permute.xlu0 %2886
        %2890 = vrot.lane.b32.xlu0 %v2829, 48
        %v2891 = vpop.permute.xlu0 %2890
        %2894 = vrot.lane.b32.xlu0 %v2820, 64
        %v2895 = vpop.permute.xlu0 %2894
        %2898 = vrot.lane.b32.xlu0 %v2830, 80
        %v2899 = vpop.permute.xlu0 %2898
        %2902 = vrot.lane.b32.xlu0 %v2827, 96
        %v2903 = vpop.permute.xlu0 %2902
        %2906 = vrot.lane.b32.xlu0 %v2831, 112
        %v2907 = vpop.permute.xlu0 %2906
        %2910 = vrot.lane.b32.xlu0 %v2877, 16
        %v2911 = vpop.permute.xlu0 %2910
        %2914 = vrot.lane.b32.xlu0 %v2861, 32
        %v2915 = vpop.permute.xlu0 %2914
        %2918 = vrot.lane.b32.xlu0 %v2878, 48
        %v2919 = vpop.permute.xlu0 %2918
        %2922 = vrot.lane.b32.xlu0 %v2869, 64
        %v2923 = vpop.permute.xlu0 %2922
        %2926 = vrot.lane.b32.xlu0 %v2879, 80
        %v2927 = vpop.permute.xlu0 %2926
        %2930 = vrot.lane.b32.xlu0 %v2876, 96
        %v2931 = vpop.permute.xlu0 %2930
        %2934 = vrot.lane.b32.xlu0 %v2880, 112
        %v2935 = vpop.permute.xlu0 %2934
        %v2937 = vsel %vm329, %v2805, %v2883
        %v2938 = vsel %vm331, %v2937, %v2887
        %v2939 = vsel %vm333, %v2938, %v2891
        %v2940 = vsel %vm335, %v2939, %v2895
        %v2941 = vsel %vm337, %v2940, %v2899
        %v2942 = vsel %vm339, %v2941, %v2903
        %v2943 = vsel %vm341, %v2942, %v2907
        %v2944 = vsel %vm329, %v2854, %v2911
        %v2945 = vsel %vm331, %v2944, %v2915
        %v2946 = vsel %vm333, %v2945, %v2919
        %v2947 = vsel %vm335, %v2946, %v2923
        %v2948 = vsel %vm337, %v2947, %v2927
        %v2949 = vsel %vm339, %v2948, %v2931
        %v2950 = vsel %vm341, %v2949, %v2935
        %2953 = vrot.lane.b32.xlu0 %v2781, 127
        %v2954 = vpop.permute.xlu0 %2953
        %2955 = vrot.lane.b32.xlu0 %v2782, 127
        %v2956 = vpop.permute.xlu0 %2955
        %v2959 = vcombine.high %v2954, 0.0
        %v2961 = vunpack.c.l.s4 1983009808
        %v2962 = vunpack.c.0.s8 %v2961
        %v2963 = vlaneseq
        %v2964 = vshrl.u32 %v2963, 7
        %v2965 = vsub.s32 %v2962, %v2964
        %v2966 = vrot.slane %v2954, %v2965
        %v2968 = vunpack.c.l.s4 1983009808
        %v2969 = vunpack.c.0.s8 %v2968
        %v2970 = vlaneseq
        %v2971 = vshrl.u32 %v2970, 7
        %v2972 = vsub.s32 %v2969, %v2971
        %v2973 = vrot.slane %v2959, %v2972
        %v2974 = vcombine.high %v2966, 0.0
        %v2976 = vunpack.c.l.s4 1934713408
        %v2977 = vunpack.c.0.s8 %v2976
        %v2978 = vlaneseq
        %v2979 = vshrl.u32 %v2978, 7
        %v2980 = vsub.s32 %v2977, %v2979
        %v2981 = vrot.slane %v2966, %v2980
        %v2983 = vunpack.c.l.s4 1934713408
        %v2984 = vunpack.c.0.s8 %v2983
        %v2985 = vlaneseq
        %v2986 = vshrl.u32 %v2985, 7
        %v2987 = vsub.s32 %v2984, %v2986
        %v2988 = vrot.slane %v2974, %v2987
        %v2989 = vcombine.high %v2973, 0.0
        %v2991 = vunpack.c.l.s4 1934713408
        %v2992 = vunpack.c.0.s8 %v2991
        %v2993 = vlaneseq
        %v2994 = vshrl.u32 %v2993, 7
        %v2995 = vsub.s32 %v2992, %v2994
        %v2996 = vrot.slane %v2973, %v2995
        %v2998 = vunpack.c.l.s4 1934713408
        %v2999 = vunpack.c.0.s8 %v2998
        %v3000 = vlaneseq
        %v3001 = vshrl.u32 %v3000, 7
        %v3002 = vsub.s32 %v2999, %v3001
        %v3003 = vrot.slane %v2989, %v3002
        %v3004 = vcombine.high %v2981, 0.0
        %v3005 = vcombine.high %v2988, 0.0
        %v3006 = vcombine.high %v2996, 0.0
        %v3007 = vcombine.high %v3003, 0.0
        %v3008 = vcombine.high %v2956, 0.0
        %v3010 = vunpack.c.l.s4 1983009808
        %v3011 = vunpack.c.0.s8 %v3010
        %v3012 = vlaneseq
        %v3013 = vshrl.u32 %v3012, 7
        %v3014 = vsub.s32 %v3011, %v3013
        %v3015 = vrot.slane %v2956, %v3014
        %v3017 = vunpack.c.l.s4 1983009808
        %v3018 = vunpack.c.0.s8 %v3017
        %v3019 = vlaneseq
        %v3020 = vshrl.u32 %v3019, 7
        %v3021 = vsub.s32 %v3018, %v3020
        %v3022 = vrot.slane %v3008, %v3021
        %v3023 = vcombine.high %v3015, 0.0
        %v3025 = vunpack.c.l.s4 1934713408
        %v3026 = vunpack.c.0.s8 %v3025
        %v3027 = vlaneseq
        %v3028 = vshrl.u32 %v3027, 7
        %v3029 = vsub.s32 %v3026, %v3028
        %v3030 = vrot.slane %v3015, %v3029
        %v3032 = vunpack.c.l.s4 1934713408
        %v3033 = vunpack.c.0.s8 %v3032
        %v3034 = vlaneseq
        %v3035 = vshrl.u32 %v3034, 7
        %v3036 = vsub.s32 %v3033, %v3035
        %v3037 = vrot.slane %v3023, %v3036
        %v3038 = vcombine.high %v3022, 0.0
        %v3040 = vunpack.c.l.s4 1934713408
        %v3041 = vunpack.c.0.s8 %v3040
        %v3042 = vlaneseq
        %v3043 = vshrl.u32 %v3042, 7
        %v3044 = vsub.s32 %v3041, %v3043
        %v3045 = vrot.slane %v3022, %v3044
        %v3047 = vunpack.c.l.s4 1934713408
        %v3048 = vunpack.c.0.s8 %v3047
        %v3049 = vlaneseq
        %v3050 = vshrl.u32 %v3049, 7
        %v3051 = vsub.s32 %v3048, %v3050
        %v3052 = vrot.slane %v3038, %v3051
        %v3053 = vcombine.high %v3030, 0.0
        %v3054 = vcombine.high %v3037, 0.0
        %v3055 = vcombine.high %v3045, 0.0
        %v3056 = vcombine.high %v3052, 0.0
        %3058 = vrot.lane.b32.xlu0 %v3004, 16
        %v3059 = vpop.permute.xlu0 %3058
        %3062 = vrot.lane.b32.xlu0 %v2988, 32
        %v3063 = vpop.permute.xlu0 %3062
        %3066 = vrot.lane.b32.xlu0 %v3005, 48
        %v3067 = vpop.permute.xlu0 %3066
        %3070 = vrot.lane.b32.xlu0 %v2996, 64
        %v3071 = vpop.permute.xlu0 %3070
        %3074 = vrot.lane.b32.xlu0 %v3006, 80
        %v3075 = vpop.permute.xlu0 %3074
        %3078 = vrot.lane.b32.xlu0 %v3003, 96
        %v3079 = vpop.permute.xlu0 %3078
        %3082 = vrot.lane.b32.xlu0 %v3007, 112
        %v3083 = vpop.permute.xlu0 %3082
        %3086 = vrot.lane.b32.xlu0 %v3053, 16
        %v3087 = vpop.permute.xlu0 %3086
        %3090 = vrot.lane.b32.xlu0 %v3037, 32
        %v3091 = vpop.permute.xlu0 %3090
        %3094 = vrot.lane.b32.xlu0 %v3054, 48
        %v3095 = vpop.permute.xlu0 %3094
        %3098 = vrot.lane.b32.xlu0 %v3045, 64
        %v3099 = vpop.permute.xlu0 %3098
        %3102 = vrot.lane.b32.xlu0 %v3055, 80
        %v3103 = vpop.permute.xlu0 %3102
        %3106 = vrot.lane.b32.xlu0 %v3052, 96
        %v3107 = vpop.permute.xlu0 %3106
        %3110 = vrot.lane.b32.xlu0 %v3056, 112
        %v3111 = vpop.permute.xlu0 %3110
        %v3113 = vsel %vm329, %v2981, %v3059
        %v3114 = vsel %vm331, %v3113, %v3063
        %v3115 = vsel %vm333, %v3114, %v3067
        %v3116 = vsel %vm335, %v3115, %v3071
        %v3117 = vsel %vm337, %v3116, %v3075
        %v3118 = vsel %vm339, %v3117, %v3079
        %v3119 = vsel %vm341, %v3118, %v3083
        %v3120 = vsel %vm329, %v3030, %v3087
        %v3121 = vsel %vm331, %v3120, %v3091
        %v3122 = vsel %vm333, %v3121, %v3095
        %v3123 = vsel %vm335, %v3122, %v3099
        %v3124 = vsel %vm337, %v3123, %v3103
        %v3125 = vsel %vm339, %v3124, %v3107
        %v3126 = vsel %vm341, %v3125, %v3111
        %3127 = vrot.lane.b32.xlu0 %v2781, 126
        %v3128 = vpop.permute.xlu0 %3127
        %3129 = vrot.lane.b32.xlu0 %v2782, 126
        %v3130 = vpop.permute.xlu0 %3129
        %v3133 = vcombine.high %v3128, 0.0
        %v3135 = vunpack.c.l.s4 1983009808
        %v3136 = vunpack.c.0.s8 %v3135
        %v3137 = vlaneseq
        %v3138 = vshrl.u32 %v3137, 7
        %v3139 = vsub.s32 %v3136, %v3138
        %v3140 = vrot.slane %v3128, %v3139
        %v3142 = vunpack.c.l.s4 1983009808
        %v3143 = vunpack.c.0.s8 %v3142
        %v3144 = vlaneseq
        %v3145 = vshrl.u32 %v3144, 7
        %v3146 = vsub.s32 %v3143, %v3145
        %v3147 = vrot.slane %v3133, %v3146
        %v3148 = vcombine.high %v3140, 0.0
        %v3150 = vunpack.c.l.s4 1934713408
        %v3151 = vunpack.c.0.s8 %v3150
        %v3152 = vlaneseq
        %v3153 = vshrl.u32 %v3152, 7
        %v3154 = vsub.s32 %v3151, %v3153
        %v3155 = vrot.slane %v3140, %v3154
        %v3157 = vunpack.c.l.s4 1934713408
        %v3158 = vunpack.c.0.s8 %v3157
        %v3159 = vlaneseq
        %v3160 = vshrl.u32 %v3159, 7
        %v3161 = vsub.s32 %v3158, %v3160
        %v3162 = vrot.slane %v3148, %v3161
        %v3163 = vcombine.high %v3147, 0.0
        %v3165 = vunpack.c.l.s4 1934713408
        %v3166 = vunpack.c.0.s8 %v3165
        %v3167 = vlaneseq
        %v3168 = vshrl.u32 %v3167, 7
        %v3169 = vsub.s32 %v3166, %v3168
        %v3170 = vrot.slane %v3147, %v3169
        %v3172 = vunpack.c.l.s4 1934713408
        %v3173 = vunpack.c.0.s8 %v3172
        %v3174 = vlaneseq
        %v3175 = vshrl.u32 %v3174, 7
        %v3176 = vsub.s32 %v3173, %v3175
        %v3177 = vrot.slane %v3163, %v3176
        %v3178 = vcombine.high %v3155, 0.0
        %v3179 = vcombine.high %v3162, 0.0
        %v3180 = vcombine.high %v3170, 0.0
        %v3181 = vcombine.high %v3177, 0.0
        %v3182 = vcombine.high %v3130, 0.0
        %v3184 = vunpack.c.l.s4 1983009808
        %v3185 = vunpack.c.0.s8 %v3184
        %v3186 = vlaneseq
        %v3187 = vshrl.u32 %v3186, 7
        %v3188 = vsub.s32 %v3185, %v3187
        %v3189 = vrot.slane %v3130, %v3188
        %v3191 = vunpack.c.l.s4 1983009808
        %v3192 = vunpack.c.0.s8 %v3191
        %v3193 = vlaneseq
        %v3194 = vshrl.u32 %v3193, 7
        %v3195 = vsub.s32 %v3192, %v3194
        %v3196 = vrot.slane %v3182, %v3195
        %v3197 = vcombine.high %v3189, 0.0
        %v3199 = vunpack.c.l.s4 1934713408
        %v3200 = vunpack.c.0.s8 %v3199
        %v3201 = vlaneseq
        %v3202 = vshrl.u32 %v3201, 7
        %v3203 = vsub.s32 %v3200, %v3202
        %v3204 = vrot.slane %v3189, %v3203
        %v3206 = vunpack.c.l.s4 1934713408
        %v3207 = vunpack.c.0.s8 %v3206
        %v3208 = vlaneseq
        %v3209 = vshrl.u32 %v3208, 7
        %v3210 = vsub.s32 %v3207, %v3209
        %v3211 = vrot.slane %v3197, %v3210
        %v3212 = vcombine.high %v3196, 0.0
        %v3214 = vunpack.c.l.s4 1934713408
        %v3215 = vunpack.c.0.s8 %v3214
        %v3216 = vlaneseq
        %v3217 = vshrl.u32 %v3216, 7
        %v3218 = vsub.s32 %v3215, %v3217
        %v3219 = vrot.slane %v3196, %v3218
        %v3221 = vunpack.c.l.s4 1934713408
        %v3222 = vunpack.c.0.s8 %v3221
        %v3223 = vlaneseq
        %v3224 = vshrl.u32 %v3223, 7
        %v3225 = vsub.s32 %v3222, %v3224
        %v3226 = vrot.slane %v3212, %v3225
        %v3227 = vcombine.high %v3204, 0.0
        %v3228 = vcombine.high %v3211, 0.0
        %v3229 = vcombine.high %v3219, 0.0
        %v3230 = vcombine.high %v3226, 0.0
        %3232 = vrot.lane.b32.xlu0 %v3178, 16
        %v3233 = vpop.permute.xlu0 %3232
        %3236 = vrot.lane.b32.xlu0 %v3162, 32
        %v3237 = vpop.permute.xlu0 %3236
        %3240 = vrot.lane.b32.xlu0 %v3179, 48
        %v3241 = vpop.permute.xlu0 %3240
        %3244 = vrot.lane.b32.xlu0 %v3170, 64
        %v3245 = vpop.permute.xlu0 %3244
        %3248 = vrot.lane.b32.xlu0 %v3180, 80
        %v3249 = vpop.permute.xlu0 %3248
        %3252 = vrot.lane.b32.xlu0 %v3177, 96
        %v3253 = vpop.permute.xlu0 %3252
        %3256 = vrot.lane.b32.xlu0 %v3181, 112
        %v3257 = vpop.permute.xlu0 %3256
        %3260 = vrot.lane.b32.xlu0 %v3227, 16
        %v3261 = vpop.permute.xlu0 %3260
        %3264 = vrot.lane.b32.xlu0 %v3211, 32
        %v3265 = vpop.permute.xlu0 %3264
        %3268 = vrot.lane.b32.xlu0 %v3228, 48
        %v3269 = vpop.permute.xlu0 %3268
        %3272 = vrot.lane.b32.xlu0 %v3219, 64
        %v3273 = vpop.permute.xlu0 %3272
        %3276 = vrot.lane.b32.xlu0 %v3229, 80
        %v3277 = vpop.permute.xlu0 %3276
        %3280 = vrot.lane.b32.xlu0 %v3226, 96
        %v3281 = vpop.permute.xlu0 %3280
        %3284 = vrot.lane.b32.xlu0 %v3230, 112
        %v3285 = vpop.permute.xlu0 %3284
        %v3287 = vsel %vm329, %v3155, %v3233
        %v3288 = vsel %vm331, %v3287, %v3237
        %v3289 = vsel %vm333, %v3288, %v3241
        %v3290 = vsel %vm335, %v3289, %v3245
        %v3291 = vsel %vm337, %v3290, %v3249
        %v3292 = vsel %vm339, %v3291, %v3253
        %v3293 = vsel %vm341, %v3292, %v3257
        %v3294 = vsel %vm329, %v3204, %v3261
        %v3295 = vsel %vm331, %v3294, %v3265
        %v3296 = vsel %vm333, %v3295, %v3269
        %v3297 = vsel %vm335, %v3296, %v3273
        %v3298 = vsel %vm337, %v3297, %v3277
        %v3299 = vsel %vm339, %v3298, %v3281
        %v3300 = vsel %vm341, %v3299, %v3285
        %s3301 = scalar_lea.vmem %s168, 48
        %v3302 = vld [vmem:[%s3301] sm:$0xff]
        %v3303 = vld [vmem:[%s3301 + $0x8] sm:$0xff]
        %v3304 = vcombine.high %v3302, 0.0
        %v3306 = vunpack.c.l.s4 1983009808
        %v3307 = vunpack.c.0.s8 %v3306
        %v3308 = vlaneseq
        %v3309 = vshrl.u32 %v3308, 7
        %v3310 = vsub.s32 %v3307, %v3309
        %v3311 = vrot.slane %v3302, %v3310
        %v3313 = vunpack.c.l.s4 1983009808
        %v3314 = vunpack.c.0.s8 %v3313
        %v3315 = vlaneseq
        %v3316 = vshrl.u32 %v3315, 7
        %v3317 = vsub.s32 %v3314, %v3316
        %v3318 = vrot.slane %v3304, %v3317
        %v3319 = vcombine.high %v3311, 0.0
        %v3321 = vunpack.c.l.s4 1934713408
        %v3322 = vunpack.c.0.s8 %v3321
        %v3323 = vlaneseq
        %v3324 = vshrl.u32 %v3323, 7
        %v3325 = vsub.s32 %v3322, %v3324
        %v3326 = vrot.slane %v3311, %v3325
        %v3328 = vunpack.c.l.s4 1934713408
        %v3329 = vunpack.c.0.s8 %v3328
        %v3330 = vlaneseq
        %v3331 = vshrl.u32 %v3330, 7
        %v3332 = vsub.s32 %v3329, %v3331
        %v3333 = vrot.slane %v3319, %v3332
        %v3334 = vcombine.high %v3318, 0.0
        %v3336 = vunpack.c.l.s4 1934713408
        %v3337 = vunpack.c.0.s8 %v3336
        %v3338 = vlaneseq
        %v3339 = vshrl.u32 %v3338, 7
        %v3340 = vsub.s32 %v3337, %v3339
        %v3341 = vrot.slane %v3318, %v3340
        %v3343 = vunpack.c.l.s4 1934713408
        %v3344 = vunpack.c.0.s8 %v3343
        %v3345 = vlaneseq
        %v3346 = vshrl.u32 %v3345, 7
        %v3347 = vsub.s32 %v3344, %v3346
        %v3348 = vrot.slane %v3334, %v3347
        %v3349 = vcombine.high %v3326, 0.0
        %v3350 = vcombine.high %v3333, 0.0
        %v3351 = vcombine.high %v3341, 0.0
        %v3352 = vcombine.high %v3348, 0.0
        %v3353 = vcombine.high %v3303, 0.0
        %v3355 = vunpack.c.l.s4 1983009808
        %v3356 = vunpack.c.0.s8 %v3355
        %v3357 = vlaneseq
        %v3358 = vshrl.u32 %v3357, 7
        %v3359 = vsub.s32 %v3356, %v3358
        %v3360 = vrot.slane %v3303, %v3359
        %v3362 = vunpack.c.l.s4 1983009808
        %v3363 = vunpack.c.0.s8 %v3362
        %v3364 = vlaneseq
        %v3365 = vshrl.u32 %v3364, 7
        %v3366 = vsub.s32 %v3363, %v3365
        %v3367 = vrot.slane %v3353, %v3366
        %v3368 = vcombine.high %v3360, 0.0
        %v3370 = vunpack.c.l.s4 1934713408
        %v3371 = vunpack.c.0.s8 %v3370
        %v3372 = vlaneseq
        %v3373 = vshrl.u32 %v3372, 7
        %v3374 = vsub.s32 %v3371, %v3373
        %v3375 = vrot.slane %v3360, %v3374
        %v3377 = vunpack.c.l.s4 1934713408
        %v3378 = vunpack.c.0.s8 %v3377
        %v3379 = vlaneseq
        %v3380 = vshrl.u32 %v3379, 7
        %v3381 = vsub.s32 %v3378, %v3380
        %v3382 = vrot.slane %v3368, %v3381
        %v3383 = vcombine.high %v3367, 0.0
        %v3385 = vunpack.c.l.s4 1934713408
        %v3386 = vunpack.c.0.s8 %v3385
        %v3387 = vlaneseq
        %v3388 = vshrl.u32 %v3387, 7
        %v3389 = vsub.s32 %v3386, %v3388
        %v3390 = vrot.slane %v3367, %v3389
        %v3392 = vunpack.c.l.s4 1934713408
        %v3393 = vunpack.c.0.s8 %v3392
        %v3394 = vlaneseq
        %v3395 = vshrl.u32 %v3394, 7
        %v3396 = vsub.s32 %v3393, %v3395
        %v3397 = vrot.slane %v3383, %v3396
        %v3398 = vcombine.high %v3375, 0.0
        %v3399 = vcombine.high %v3382, 0.0
        %v3400 = vcombine.high %v3390, 0.0
        %v3401 = vcombine.high %v3397, 0.0
        %3403 = vrot.lane.b32.xlu0 %v3349, 16
        %v3404 = vpop.permute.xlu0 %3403
        %3407 = vrot.lane.b32.xlu0 %v3333, 32
        %v3408 = vpop.permute.xlu0 %3407
        %3411 = vrot.lane.b32.xlu0 %v3350, 48
        %v3412 = vpop.permute.xlu0 %3411
        %3415 = vrot.lane.b32.xlu0 %v3341, 64
        %v3416 = vpop.permute.xlu0 %3415
        %3419 = vrot.lane.b32.xlu0 %v3351, 80
        %v3420 = vpop.permute.xlu0 %3419
        %3423 = vrot.lane.b32.xlu0 %v3348, 96
        %v3424 = vpop.permute.xlu0 %3423
        %3427 = vrot.lane.b32.xlu0 %v3352, 112
        %v3428 = vpop.permute.xlu0 %3427
        %3431 = vrot.lane.b32.xlu0 %v3398, 16
        %v3432 = vpop.permute.xlu0 %3431
        %3435 = vrot.lane.b32.xlu0 %v3382, 32
        %v3436 = vpop.permute.xlu0 %3435
        %3439 = vrot.lane.b32.xlu0 %v3399, 48
        %v3440 = vpop.permute.xlu0 %3439
        %3443 = vrot.lane.b32.xlu0 %v3390, 64
        %v3444 = vpop.permute.xlu0 %3443
        %3447 = vrot.lane.b32.xlu0 %v3400, 80
        %v3448 = vpop.permute.xlu0 %3447
        %3451 = vrot.lane.b32.xlu0 %v3397, 96
        %v3452 = vpop.permute.xlu0 %3451
        %3455 = vrot.lane.b32.xlu0 %v3401, 112
        %v3456 = vpop.permute.xlu0 %3455
        %v3458 = vsel %vm329, %v3326, %v3404
        %v3459 = vsel %vm331, %v3458, %v3408
        %v3460 = vsel %vm333, %v3459, %v3412
        %v3461 = vsel %vm335, %v3460, %v3416
        %v3462 = vsel %vm337, %v3461, %v3420
        %v3463 = vsel %vm339, %v3462, %v3424
        %v3464 = vsel %vm341, %v3463, %v3428
        %v3465 = vsel %vm329, %v3375, %v3432
        %v3466 = vsel %vm331, %v3465, %v3436
        %v3467 = vsel %vm333, %v3466, %v3440
        %v3468 = vsel %vm335, %v3467, %v3444
        %v3469 = vsel %vm337, %v3468, %v3448
        %v3470 = vsel %vm339, %v3469, %v3452
        %v3471 = vsel %vm341, %v3470, %v3456
        %3474 = vrot.lane.b32.xlu0 %v3302, 127
        %v3475 = vpop.permute.xlu0 %3474
        %3476 = vrot.lane.b32.xlu0 %v3303, 127
        %v3477 = vpop.permute.xlu0 %3476
        %v3480 = vcombine.high %v3475, 0.0
        %v3482 = vunpack.c.l.s4 1983009808
        %v3483 = vunpack.c.0.s8 %v3482
        %v3484 = vlaneseq
        %v3485 = vshrl.u32 %v3484, 7
        %v3486 = vsub.s32 %v3483, %v3485
        %v3487 = vrot.slane %v3475, %v3486
        %v3489 = vunpack.c.l.s4 1983009808
        %v3490 = vunpack.c.0.s8 %v3489
        %v3491 = vlaneseq
        %v3492 = vshrl.u32 %v3491, 7
        %v3493 = vsub.s32 %v3490, %v3492
        %v3494 = vrot.slane %v3480, %v3493
        %v3495 = vcombine.high %v3487, 0.0
        %v3497 = vunpack.c.l.s4 1934713408
        %v3498 = vunpack.c.0.s8 %v3497
        %v3499 = vlaneseq
        %v3500 = vshrl.u32 %v3499, 7
        %v3501 = vsub.s32 %v3498, %v3500
        %v3502 = vrot.slane %v3487, %v3501
        %v3504 = vunpack.c.l.s4 1934713408
        %v3505 = vunpack.c.0.s8 %v3504
        %v3506 = vlaneseq
        %v3507 = vshrl.u32 %v3506, 7
        %v3508 = vsub.s32 %v3505, %v3507
        %v3509 = vrot.slane %v3495, %v3508
        %v3510 = vcombine.high %v3494, 0.0
        %v3512 = vunpack.c.l.s4 1934713408
        %v3513 = vunpack.c.0.s8 %v3512
        %v3514 = vlaneseq
        %v3515 = vshrl.u32 %v3514, 7
        %v3516 = vsub.s32 %v3513, %v3515
        %v3517 = vrot.slane %v3494, %v3516
        %v3519 = vunpack.c.l.s4 1934713408
        %v3520 = vunpack.c.0.s8 %v3519
        %v3521 = vlaneseq
        %v3522 = vshrl.u32 %v3521, 7
        %v3523 = vsub.s32 %v3520, %v3522
        %v3524 = vrot.slane %v3510, %v3523
        %v3525 = vcombine.high %v3502, 0.0
        %v3526 = vcombine.high %v3509, 0.0
        %v3527 = vcombine.high %v3517, 0.0
        %v3528 = vcombine.high %v3524, 0.0
        %v3529 = vcombine.high %v3477, 0.0
        %v3531 = vunpack.c.l.s4 1983009808
        %v3532 = vunpack.c.0.s8 %v3531
        %v3533 = vlaneseq
        %v3534 = vshrl.u32 %v3533, 7
        %v3535 = vsub.s32 %v3532, %v3534
        %v3536 = vrot.slane %v3477, %v3535
        %v3538 = vunpack.c.l.s4 1983009808
        %v3539 = vunpack.c.0.s8 %v3538
        %v3540 = vlaneseq
        %v3541 = vshrl.u32 %v3540, 7
        %v3542 = vsub.s32 %v3539, %v3541
        %v3543 = vrot.slane %v3529, %v3542
        %v3544 = vcombine.high %v3536, 0.0
        %v3546 = vunpack.c.l.s4 1934713408
        %v3547 = vunpack.c.0.s8 %v3546
        %v3548 = vlaneseq
        %v3549 = vshrl.u32 %v3548, 7
        %v3550 = vsub.s32 %v3547, %v3549
        %v3551 = vrot.slane %v3536, %v3550
        %v3553 = vunpack.c.l.s4 1934713408
        %v3554 = vunpack.c.0.s8 %v3553
        %v3555 = vlaneseq
        %v3556 = vshrl.u32 %v3555, 7
        %v3557 = vsub.s32 %v3554, %v3556
        %v3558 = vrot.slane %v3544, %v3557
        %v3559 = vcombine.high %v3543, 0.0
        %v3561 = vunpack.c.l.s4 1934713408
        %v3562 = vunpack.c.0.s8 %v3561
        %v3563 = vlaneseq
        %v3564 = vshrl.u32 %v3563, 7
        %v3565 = vsub.s32 %v3562, %v3564
        %v3566 = vrot.slane %v3543, %v3565
        %v3568 = vunpack.c.l.s4 1934713408
        %v3569 = vunpack.c.0.s8 %v3568
        %v3570 = vlaneseq
        %v3571 = vshrl.u32 %v3570, 7
        %v3572 = vsub.s32 %v3569, %v3571
        %v3573 = vrot.slane %v3559, %v3572
        %v3574 = vcombine.high %v3551, 0.0
        %v3575 = vcombine.high %v3558, 0.0
        %v3576 = vcombine.high %v3566, 0.0
        %v3577 = vcombine.high %v3573, 0.0
        %3579 = vrot.lane.b32.xlu0 %v3525, 16
        %v3580 = vpop.permute.xlu0 %3579
        %3583 = vrot.lane.b32.xlu0 %v3509, 32
        %v3584 = vpop.permute.xlu0 %3583
        %3587 = vrot.lane.b32.xlu0 %v3526, 48
        %v3588 = vpop.permute.xlu0 %3587
        %3591 = vrot.lane.b32.xlu0 %v3517, 64
        %v3592 = vpop.permute.xlu0 %3591
        %3595 = vrot.lane.b32.xlu0 %v3527, 80
        %v3596 = vpop.permute.xlu0 %3595
        %3599 = vrot.lane.b32.xlu0 %v3524, 96
        %v3600 = vpop.permute.xlu0 %3599
        %3603 = vrot.lane.b32.xlu0 %v3528, 112
        %v3604 = vpop.permute.xlu0 %3603
        %3607 = vrot.lane.b32.xlu0 %v3574, 16
        %v3608 = vpop.permute.xlu0 %3607
        %3611 = vrot.lane.b32.xlu0 %v3558, 32
        %v3612 = vpop.permute.xlu0 %3611
        %3615 = vrot.lane.b32.xlu0 %v3575, 48
        %v3616 = vpop.permute.xlu0 %3615
        %3619 = vrot.lane.b32.xlu0 %v3566, 64
        %v3620 = vpop.permute.xlu0 %3619
        %3623 = vrot.lane.b32.xlu0 %v3576, 80
        %v3624 = vpop.permute.xlu0 %3623
        %3627 = vrot.lane.b32.xlu0 %v3573, 96
        %v3628 = vpop.permute.xlu0 %3627
        %3631 = vrot.lane.b32.xlu0 %v3577, 112
        %v3632 = vpop.permute.xlu0 %3631
        %v3634 = vsel %vm329, %v3502, %v3580
        %v3635 = vsel %vm331, %v3634, %v3584
        %v3636 = vsel %vm333, %v3635, %v3588
        %v3637 = vsel %vm335, %v3636, %v3592
        %v3638 = vsel %vm337, %v3637, %v3596
        %v3639 = vsel %vm339, %v3638, %v3600
        %v3640 = vsel %vm341, %v3639, %v3604
        %v3641 = vsel %vm329, %v3551, %v3608
        %v3642 = vsel %vm331, %v3641, %v3612
        %v3643 = vsel %vm333, %v3642, %v3616
        %v3644 = vsel %vm335, %v3643, %v3620
        %v3645 = vsel %vm337, %v3644, %v3624
        %v3646 = vsel %vm339, %v3645, %v3628
        %v3647 = vsel %vm341, %v3646, %v3632
        %3648 = vrot.lane.b32.xlu0 %v3302, 126
        %v3649 = vpop.permute.xlu0 %3648
        %3650 = vrot.lane.b32.xlu0 %v3303, 126
        %v3651 = vpop.permute.xlu0 %3650
        %v3654 = vcombine.high %v3649, 0.0
        %v3656 = vunpack.c.l.s4 1983009808
        %v3657 = vunpack.c.0.s8 %v3656
        %v3658 = vlaneseq
        %v3659 = vshrl.u32 %v3658, 7
        %v3660 = vsub.s32 %v3657, %v3659
        %v3661 = vrot.slane %v3649, %v3660
        %v3663 = vunpack.c.l.s4 1983009808
        %v3664 = vunpack.c.0.s8 %v3663
        %v3665 = vlaneseq
        %v3666 = vshrl.u32 %v3665, 7
        %v3667 = vsub.s32 %v3664, %v3666
        %v3668 = vrot.slane %v3654, %v3667
        %v3669 = vcombine.high %v3661, 0.0
        %v3671 = vunpack.c.l.s4 1934713408
        %v3672 = vunpack.c.0.s8 %v3671
        %v3673 = vlaneseq
        %v3674 = vshrl.u32 %v3673, 7
        %v3675 = vsub.s32 %v3672, %v3674
        %v3676 = vrot.slane %v3661, %v3675
        %v3678 = vunpack.c.l.s4 1934713408
        %v3679 = vunpack.c.0.s8 %v3678
        %v3680 = vlaneseq
        %v3681 = vshrl.u32 %v3680, 7
        %v3682 = vsub.s32 %v3679, %v3681
        %v3683 = vrot.slane %v3669, %v3682
        %v3684 = vcombine.high %v3668, 0.0
        %v3686 = vunpack.c.l.s4 1934713408
        %v3687 = vunpack.c.0.s8 %v3686
        %v3688 = vlaneseq
        %v3689 = vshrl.u32 %v3688, 7
        %v3690 = vsub.s32 %v3687, %v3689
        %v3691 = vrot.slane %v3668, %v3690
        %v3693 = vunpack.c.l.s4 1934713408
        %v3694 = vunpack.c.0.s8 %v3693
        %v3695 = vlaneseq
        %v3696 = vshrl.u32 %v3695, 7
        %v3697 = vsub.s32 %v3694, %v3696
        %v3698 = vrot.slane %v3684, %v3697
        %v3699 = vcombine.high %v3676, 0.0
        %v3700 = vcombine.high %v3683, 0.0
        %v3701 = vcombine.high %v3691, 0.0
        %v3702 = vcombine.high %v3698, 0.0
        %v3703 = vcombine.high %v3651, 0.0
        %v3705 = vunpack.c.l.s4 1983009808
        %v3706 = vunpack.c.0.s8 %v3705
        %v3707 = vlaneseq
        %v3708 = vshrl.u32 %v3707, 7
        %v3709 = vsub.s32 %v3706, %v3708
        %v3710 = vrot.slane %v3651, %v3709
        %v3712 = vunpack.c.l.s4 1983009808
        %v3713 = vunpack.c.0.s8 %v3712
        %v3714 = vlaneseq
        %v3715 = vshrl.u32 %v3714, 7
        %v3716 = vsub.s32 %v3713, %v3715
        %v3717 = vrot.slane %v3703, %v3716
        %v3718 = vcombine.high %v3710, 0.0
        %v3720 = vunpack.c.l.s4 1934713408
        %v3721 = vunpack.c.0.s8 %v3720
        %v3722 = vlaneseq
        %v3723 = vshrl.u32 %v3722, 7
        %v3724 = vsub.s32 %v3721, %v3723
        %v3725 = vrot.slane %v3710, %v3724
        %v3727 = vunpack.c.l.s4 1934713408
        %v3728 = vunpack.c.0.s8 %v3727
        %v3729 = vlaneseq
        %v3730 = vshrl.u32 %v3729, 7
        %v3731 = vsub.s32 %v3728, %v3730
        %v3732 = vrot.slane %v3718, %v3731
        %v3733 = vcombine.high %v3717, 0.0
        %v3735 = vunpack.c.l.s4 1934713408
        %v3736 = vunpack.c.0.s8 %v3735
        %v3737 = vlaneseq
        %v3738 = vshrl.u32 %v3737, 7
        %v3739 = vsub.s32 %v3736, %v3738
        %v3740 = vrot.slane %v3717, %v3739
        %v3742 = vunpack.c.l.s4 1934713408
        %v3743 = vunpack.c.0.s8 %v3742
        %v3744 = vlaneseq
        %v3745 = vshrl.u32 %v3744, 7
        %v3746 = vsub.s32 %v3743, %v3745
        %v3747 = vrot.slane %v3733, %v3746
        %v3748 = vcombine.high %v3725, 0.0
        %v3749 = vcombine.high %v3732, 0.0
        %v3750 = vcombine.high %v3740, 0.0
        %v3751 = vcombine.high %v3747, 0.0
        %3753 = vrot.lane.b32.xlu0 %v3699, 16
        %v3754 = vpop.permute.xlu0 %3753
        %3757 = vrot.lane.b32.xlu0 %v3683, 32
        %v3758 = vpop.permute.xlu0 %3757
        %3761 = vrot.lane.b32.xlu0 %v3700, 48
        %v3762 = vpop.permute.xlu0 %3761
        %3765 = vrot.lane.b32.xlu0 %v3691, 64
        %v3766 = vpop.permute.xlu0 %3765
        %3769 = vrot.lane.b32.xlu0 %v3701, 80
        %v3770 = vpop.permute.xlu0 %3769
        %3773 = vrot.lane.b32.xlu0 %v3698, 96
        %v3774 = vpop.permute.xlu0 %3773
        %3777 = vrot.lane.b32.xlu0 %v3702, 112
        %v3778 = vpop.permute.xlu0 %3777
        %3781 = vrot.lane.b32.xlu0 %v3748, 16
        %v3782 = vpop.permute.xlu0 %3781
        %3785 = vrot.lane.b32.xlu0 %v3732, 32
        %v3786 = vpop.permute.xlu0 %3785
        %3789 = vrot.lane.b32.xlu0 %v3749, 48
        %v3790 = vpop.permute.xlu0 %3789
        %3793 = vrot.lane.b32.xlu0 %v3740, 64
        %v3794 = vpop.permute.xlu0 %3793
        %3797 = vrot.lane.b32.xlu0 %v3750, 80
        %v3798 = vpop.permute.xlu0 %3797
        %3801 = vrot.lane.b32.xlu0 %v3747, 96
        %v3802 = vpop.permute.xlu0 %3801
        %3805 = vrot.lane.b32.xlu0 %v3751, 112
        %v3806 = vpop.permute.xlu0 %3805
        %v3808 = vsel %vm329, %v3676, %v3754
        %v3809 = vsel %vm331, %v3808, %v3758
        %v3810 = vsel %vm333, %v3809, %v3762
        %v3811 = vsel %vm335, %v3810, %v3766
        %v3812 = vsel %vm337, %v3811, %v3770
        %v3813 = vsel %vm339, %v3812, %v3774
        %v3814 = vsel %vm341, %v3813, %v3778
        %v3815 = vsel %vm329, %v3725, %v3782
        %v3816 = vsel %vm331, %v3815, %v3786
        %v3817 = vsel %vm333, %v3816, %v3790
        %v3818 = vsel %vm335, %v3817, %v3794
        %v3819 = vsel %vm337, %v3818, %v3798
        %v3820 = vsel %vm339, %v3819, %v3802
        %v3821 = vsel %vm341, %v3820, %v3806
        %v3822 = vld [vmem:[%s3301 + $0x1] sm:$0xff]
        %v3823 = vld [vmem:[%s3301 + $0x9] sm:$0xff]
        %v3824 = vcombine.high %v3822, 0.0
        %v3826 = vunpack.c.l.s4 1983009808
        %v3827 = vunpack.c.0.s8 %v3826
        %v3828 = vlaneseq
        %v3829 = vshrl.u32 %v3828, 7
        %v3830 = vsub.s32 %v3827, %v3829
        %v3831 = vrot.slane %v3822, %v3830
        %v3833 = vunpack.c.l.s4 1983009808
        %v3834 = vunpack.c.0.s8 %v3833
        %v3835 = vlaneseq
        %v3836 = vshrl.u32 %v3835, 7
        %v3837 = vsub.s32 %v3834, %v3836
        %v3838 = vrot.slane %v3824, %v3837
        %v3839 = vcombine.high %v3831, 0.0
        %v3841 = vunpack.c.l.s4 1934713408
        %v3842 = vunpack.c.0.s8 %v3841
        %v3843 = vlaneseq
        %v3844 = vshrl.u32 %v3843, 7
        %v3845 = vsub.s32 %v3842, %v3844
        %v3846 = vrot.slane %v3831, %v3845
        %v3848 = vunpack.c.l.s4 1934713408
        %v3849 = vunpack.c.0.s8 %v3848
        %v3850 = vlaneseq
        %v3851 = vshrl.u32 %v3850, 7
        %v3852 = vsub.s32 %v3849, %v3851
        %v3853 = vrot.slane %v3839, %v3852
        %v3854 = vcombine.high %v3838, 0.0
        %v3856 = vunpack.c.l.s4 1934713408
        %v3857 = vunpack.c.0.s8 %v3856
        %v3858 = vlaneseq
        %v3859 = vshrl.u32 %v3858, 7
        %v3860 = vsub.s32 %v3857, %v3859
        %v3861 = vrot.slane %v3838, %v3860
        %v3863 = vunpack.c.l.s4 1934713408
        %v3864 = vunpack.c.0.s8 %v3863
        %v3865 = vlaneseq
        %v3866 = vshrl.u32 %v3865, 7
        %v3867 = vsub.s32 %v3864, %v3866
        %v3868 = vrot.slane %v3854, %v3867
        %v3869 = vcombine.high %v3846, 0.0
        %v3870 = vcombine.high %v3853, 0.0
        %v3871 = vcombine.high %v3861, 0.0
        %v3872 = vcombine.high %v3868, 0.0
        %v3873 = vcombine.high %v3823, 0.0
        %v3875 = vunpack.c.l.s4 1983009808
        %v3876 = vunpack.c.0.s8 %v3875
        %v3877 = vlaneseq
        %v3878 = vshrl.u32 %v3877, 7
        %v3879 = vsub.s32 %v3876, %v3878
        %v3880 = vrot.slane %v3823, %v3879
        %v3882 = vunpack.c.l.s4 1983009808
        %v3883 = vunpack.c.0.s8 %v3882
        %v3884 = vlaneseq
        %v3885 = vshrl.u32 %v3884, 7
        %v3886 = vsub.s32 %v3883, %v3885
        %v3887 = vrot.slane %v3873, %v3886
        %v3888 = vcombine.high %v3880, 0.0
        %v3890 = vunpack.c.l.s4 1934713408
        %v3891 = vunpack.c.0.s8 %v3890
        %v3892 = vlaneseq
        %v3893 = vshrl.u32 %v3892, 7
        %v3894 = vsub.s32 %v3891, %v3893
        %v3895 = vrot.slane %v3880, %v3894
        %v3897 = vunpack.c.l.s4 1934713408
        %v3898 = vunpack.c.0.s8 %v3897
        %v3899 = vlaneseq
        %v3900 = vshrl.u32 %v3899, 7
        %v3901 = vsub.s32 %v3898, %v3900
        %v3902 = vrot.slane %v3888, %v3901
        %v3903 = vcombine.high %v3887, 0.0
        %v3905 = vunpack.c.l.s4 1934713408
        %v3906 = vunpack.c.0.s8 %v3905
        %v3907 = vlaneseq
        %v3908 = vshrl.u32 %v3907, 7
        %v3909 = vsub.s32 %v3906, %v3908
        %v3910 = vrot.slane %v3887, %v3909
        %v3912 = vunpack.c.l.s4 1934713408
        %v3913 = vunpack.c.0.s8 %v3912
        %v3914 = vlaneseq
        %v3915 = vshrl.u32 %v3914, 7
        %v3916 = vsub.s32 %v3913, %v3915
        %v3917 = vrot.slane %v3903, %v3916
        %v3918 = vcombine.high %v3895, 0.0
        %v3919 = vcombine.high %v3902, 0.0
        %v3920 = vcombine.high %v3910, 0.0
        %v3921 = vcombine.high %v3917, 0.0
        %3923 = vrot.lane.b32.xlu0 %v3869, 16
        %v3924 = vpop.permute.xlu0 %3923
        %3927 = vrot.lane.b32.xlu0 %v3853, 32
        %v3928 = vpop.permute.xlu0 %3927
        %3931 = vrot.lane.b32.xlu0 %v3870, 48
        %v3932 = vpop.permute.xlu0 %3931
        %3935 = vrot.lane.b32.xlu0 %v3861, 64
        %v3936 = vpop.permute.xlu0 %3935
        %3939 = vrot.lane.b32.xlu0 %v3871, 80
        %v3940 = vpop.permute.xlu0 %3939
        %3943 = vrot.lane.b32.xlu0 %v3868, 96
        %v3944 = vpop.permute.xlu0 %3943
        %3947 = vrot.lane.b32.xlu0 %v3872, 112
        %v3948 = vpop.permute.xlu0 %3947
        %3951 = vrot.lane.b32.xlu0 %v3918, 16
        %v3952 = vpop.permute.xlu0 %3951
        %3955 = vrot.lane.b32.xlu0 %v3902, 32
        %v3956 = vpop.permute.xlu0 %3955
        %3959 = vrot.lane.b32.xlu0 %v3919, 48
        %v3960 = vpop.permute.xlu0 %3959
        %3963 = vrot.lane.b32.xlu0 %v3910, 64
        %v3964 = vpop.permute.xlu0 %3963
        %3967 = vrot.lane.b32.xlu0 %v3920, 80
        %v3968 = vpop.permute.xlu0 %3967
        %3971 = vrot.lane.b32.xlu0 %v3917, 96
        %v3972 = vpop.permute.xlu0 %3971
        %3975 = vrot.lane.b32.xlu0 %v3921, 112
        %v3976 = vpop.permute.xlu0 %3975
        %v3978 = vsel %vm329, %v3846, %v3924
        %v3979 = vsel %vm331, %v3978, %v3928
        %v3980 = vsel %vm333, %v3979, %v3932
        %v3981 = vsel %vm335, %v3980, %v3936
        %v3982 = vsel %vm337, %v3981, %v3940
        %v3983 = vsel %vm339, %v3982, %v3944
        %v3984 = vsel %vm341, %v3983, %v3948
        %v3985 = vsel %vm329, %v3895, %v3952
        %v3986 = vsel %vm331, %v3985, %v3956
        %v3987 = vsel %vm333, %v3986, %v3960
        %v3988 = vsel %vm335, %v3987, %v3964
        %v3989 = vsel %vm337, %v3988, %v3968
        %v3990 = vsel %vm339, %v3989, %v3972
        %v3991 = vsel %vm341, %v3990, %v3976
        %3994 = vrot.lane.b32.xlu0 %v3822, 127
        %v3995 = vpop.permute.xlu0 %3994
        %3996 = vrot.lane.b32.xlu0 %v3823, 127
        %v3997 = vpop.permute.xlu0 %3996
        %v4000 = vcombine.high %v3995, 0.0
        %v4002 = vunpack.c.l.s4 1983009808
        %v4003 = vunpack.c.0.s8 %v4002
        %v4004 = vlaneseq
        %v4005 = vshrl.u32 %v4004, 7
        %v4006 = vsub.s32 %v4003, %v4005
        %v4007 = vrot.slane %v3995, %v4006
        %v4009 = vunpack.c.l.s4 1983009808
        %v4010 = vunpack.c.0.s8 %v4009
        %v4011 = vlaneseq
        %v4012 = vshrl.u32 %v4011, 7
        %v4013 = vsub.s32 %v4010, %v4012
        %v4014 = vrot.slane %v4000, %v4013
        %v4015 = vcombine.high %v4007, 0.0
        %v4017 = vunpack.c.l.s4 1934713408
        %v4018 = vunpack.c.0.s8 %v4017
        %v4019 = vlaneseq
        %v4020 = vshrl.u32 %v4019, 7
        %v4021 = vsub.s32 %v4018, %v4020
        %v4022 = vrot.slane %v4007, %v4021
        %v4024 = vunpack.c.l.s4 1934713408
        %v4025 = vunpack.c.0.s8 %v4024
        %v4026 = vlaneseq
        %v4027 = vshrl.u32 %v4026, 7
        %v4028 = vsub.s32 %v4025, %v4027
        %v4029 = vrot.slane %v4015, %v4028
        %v4030 = vcombine.high %v4014, 0.0
        %v4032 = vunpack.c.l.s4 1934713408
        %v4033 = vunpack.c.0.s8 %v4032
        %v4034 = vlaneseq
        %v4035 = vshrl.u32 %v4034, 7
        %v4036 = vsub.s32 %v4033, %v4035
        %v4037 = vrot.slane %v4014, %v4036
        %v4039 = vunpack.c.l.s4 1934713408
        %v4040 = vunpack.c.0.s8 %v4039
        %v4041 = vlaneseq
        %v4042 = vshrl.u32 %v4041, 7
        %v4043 = vsub.s32 %v4040, %v4042
        %v4044 = vrot.slane %v4030, %v4043
        %v4045 = vcombine.high %v4022, 0.0
        %v4046 = vcombine.high %v4029, 0.0
        %v4047 = vcombine.high %v4037, 0.0
        %v4048 = vcombine.high %v4044, 0.0
        %v4049 = vcombine.high %v3997, 0.0
        %v4051 = vunpack.c.l.s4 1983009808
        %v4052 = vunpack.c.0.s8 %v4051
        %v4053 = vlaneseq
        %v4054 = vshrl.u32 %v4053, 7
        %v4055 = vsub.s32 %v4052, %v4054
        %v4056 = vrot.slane %v3997, %v4055
        %v4058 = vunpack.c.l.s4 1983009808
        %v4059 = vunpack.c.0.s8 %v4058
        %v4060 = vlaneseq
        %v4061 = vshrl.u32 %v4060, 7
        %v4062 = vsub.s32 %v4059, %v4061
        %v4063 = vrot.slane %v4049, %v4062
        %v4064 = vcombine.high %v4056, 0.0
        %v4066 = vunpack.c.l.s4 1934713408
        %v4067 = vunpack.c.0.s8 %v4066
        %v4068 = vlaneseq
        %v4069 = vshrl.u32 %v4068, 7
        %v4070 = vsub.s32 %v4067, %v4069
        %v4071 = vrot.slane %v4056, %v4070
        %v4073 = vunpack.c.l.s4 1934713408
        %v4074 = vunpack.c.0.s8 %v4073
        %v4075 = vlaneseq
        %v4076 = vshrl.u32 %v4075, 7
        %v4077 = vsub.s32 %v4074, %v4076
        %v4078 = vrot.slane %v4064, %v4077
        %v4079 = vcombine.high %v4063, 0.0
        %v4081 = vunpack.c.l.s4 1934713408
        %v4082 = vunpack.c.0.s8 %v4081
        %v4083 = vlaneseq
        %v4084 = vshrl.u32 %v4083, 7
        %v4085 = vsub.s32 %v4082, %v4084
        %v4086 = vrot.slane %v4063, %v4085
        %v4088 = vunpack.c.l.s4 1934713408
        %v4089 = vunpack.c.0.s8 %v4088
        %v4090 = vlaneseq
        %v4091 = vshrl.u32 %v4090, 7
        %v4092 = vsub.s32 %v4089, %v4091
        %v4093 = vrot.slane %v4079, %v4092
        %v4094 = vcombine.high %v4071, 0.0
        %v4095 = vcombine.high %v4078, 0.0
        %v4096 = vcombine.high %v4086, 0.0
        %v4097 = vcombine.high %v4093, 0.0
        %4099 = vrot.lane.b32.xlu0 %v4045, 16
        %v4100 = vpop.permute.xlu0 %4099
        %4103 = vrot.lane.b32.xlu0 %v4029, 32
        %v4104 = vpop.permute.xlu0 %4103
        %4107 = vrot.lane.b32.xlu0 %v4046, 48
        %v4108 = vpop.permute.xlu0 %4107
        %4111 = vrot.lane.b32.xlu0 %v4037, 64
        %v4112 = vpop.permute.xlu0 %4111
        %4115 = vrot.lane.b32.xlu0 %v4047, 80
        %v4116 = vpop.permute.xlu0 %4115
        %4119 = vrot.lane.b32.xlu0 %v4044, 96
        %v4120 = vpop.permute.xlu0 %4119
        %4123 = vrot.lane.b32.xlu0 %v4048, 112
        %v4124 = vpop.permute.xlu0 %4123
        %4127 = vrot.lane.b32.xlu0 %v4094, 16
        %v4128 = vpop.permute.xlu0 %4127
        %4131 = vrot.lane.b32.xlu0 %v4078, 32
        %v4132 = vpop.permute.xlu0 %4131
        %4135 = vrot.lane.b32.xlu0 %v4095, 48
        %v4136 = vpop.permute.xlu0 %4135
        %4139 = vrot.lane.b32.xlu0 %v4086, 64
        %v4140 = vpop.permute.xlu0 %4139
        %4143 = vrot.lane.b32.xlu0 %v4096, 80
        %v4144 = vpop.permute.xlu0 %4143
        %4147 = vrot.lane.b32.xlu0 %v4093, 96
        %v4148 = vpop.permute.xlu0 %4147
        %4151 = vrot.lane.b32.xlu0 %v4097, 112
        %v4152 = vpop.permute.xlu0 %4151
        %v4154 = vsel %vm329, %v4022, %v4100
        %v4155 = vsel %vm331, %v4154, %v4104
        %v4156 = vsel %vm333, %v4155, %v4108
        %v4157 = vsel %vm335, %v4156, %v4112
        %v4158 = vsel %vm337, %v4157, %v4116
        %v4159 = vsel %vm339, %v4158, %v4120
        %v4160 = vsel %vm341, %v4159, %v4124
        %v4161 = vsel %vm329, %v4071, %v4128
        %v4162 = vsel %vm331, %v4161, %v4132
        %v4163 = vsel %vm333, %v4162, %v4136
        %v4164 = vsel %vm335, %v4163, %v4140
        %v4165 = vsel %vm337, %v4164, %v4144
        %v4166 = vsel %vm339, %v4165, %v4148
        %v4167 = vsel %vm341, %v4166, %v4152
        %4168 = vrot.lane.b32.xlu0 %v3822, 126
        %v4169 = vpop.permute.xlu0 %4168
        %4170 = vrot.lane.b32.xlu0 %v3823, 126
        %v4171 = vpop.permute.xlu0 %4170
        %v4174 = vcombine.high %v4169, 0.0
        %v4176 = vunpack.c.l.s4 1983009808
        %v4177 = vunpack.c.0.s8 %v4176
        %v4178 = vlaneseq
        %v4179 = vshrl.u32 %v4178, 7
        %v4180 = vsub.s32 %v4177, %v4179
        %v4181 = vrot.slane %v4169, %v4180
        %v4183 = vunpack.c.l.s4 1983009808
        %v4184 = vunpack.c.0.s8 %v4183
        %v4185 = vlaneseq
        %v4186 = vshrl.u32 %v4185, 7
        %v4187 = vsub.s32 %v4184, %v4186
        %v4188 = vrot.slane %v4174, %v4187
        %v4189 = vcombine.high %v4181, 0.0
        %v4191 = vunpack.c.l.s4 1934713408
        %v4192 = vunpack.c.0.s8 %v4191
        %v4193 = vlaneseq
        %v4194 = vshrl.u32 %v4193, 7
        %v4195 = vsub.s32 %v4192, %v4194
        %v4196 = vrot.slane %v4181, %v4195
        %v4198 = vunpack.c.l.s4 1934713408
        %v4199 = vunpack.c.0.s8 %v4198
        %v4200 = vlaneseq
        %v4201 = vshrl.u32 %v4200, 7
        %v4202 = vsub.s32 %v4199, %v4201
        %v4203 = vrot.slane %v4189, %v4202
        %v4204 = vcombine.high %v4188, 0.0
        %v4206 = vunpack.c.l.s4 1934713408
        %v4207 = vunpack.c.0.s8 %v4206
        %v4208 = vlaneseq
        %v4209 = vshrl.u32 %v4208, 7
        %v4210 = vsub.s32 %v4207, %v4209
        %v4211 = vrot.slane %v4188, %v4210
        %v4213 = vunpack.c.l.s4 1934713408
        %v4214 = vunpack.c.0.s8 %v4213
        %v4215 = vlaneseq
        %v4216 = vshrl.u32 %v4215, 7
        %v4217 = vsub.s32 %v4214, %v4216
        %v4218 = vrot.slane %v4204, %v4217
        %v4219 = vcombine.high %v4196, 0.0
        %v4220 = vcombine.high %v4203, 0.0
        %v4221 = vcombine.high %v4211, 0.0
        %v4222 = vcombine.high %v4218, 0.0
        %v4223 = vcombine.high %v4171, 0.0
        %v4225 = vunpack.c.l.s4 1983009808
        %v4226 = vunpack.c.0.s8 %v4225
        %v4227 = vlaneseq
        %v4228 = vshrl.u32 %v4227, 7
        %v4229 = vsub.s32 %v4226, %v4228
        %v4230 = vrot.slane %v4171, %v4229
        %v4232 = vunpack.c.l.s4 1983009808
        %v4233 = vunpack.c.0.s8 %v4232
        %v4234 = vlaneseq
        %v4235 = vshrl.u32 %v4234, 7
        %v4236 = vsub.s32 %v4233, %v4235
        %v4237 = vrot.slane %v4223, %v4236
        %v4238 = vcombine.high %v4230, 0.0
        %v4240 = vunpack.c.l.s4 1934713408
        %v4241 = vunpack.c.0.s8 %v4240
        %v4242 = vlaneseq
        %v4243 = vshrl.u32 %v4242, 7
        %v4244 = vsub.s32 %v4241, %v4243
        %v4245 = vrot.slane %v4230, %v4244
        %v4247 = vunpack.c.l.s4 1934713408
        %v4248 = vunpack.c.0.s8 %v4247
        %v4249 = vlaneseq
        %v4250 = vshrl.u32 %v4249, 7
        %v4251 = vsub.s32 %v4248, %v4250
        %v4252 = vrot.slane %v4238, %v4251
        %v4253 = vcombine.high %v4237, 0.0
        %v4255 = vunpack.c.l.s4 1934713408
        %v4256 = vunpack.c.0.s8 %v4255
        %v4257 = vlaneseq
        %v4258 = vshrl.u32 %v4257, 7
        %v4259 = vsub.s32 %v4256, %v4258
        %v4260 = vrot.slane %v4237, %v4259
        %v4262 = vunpack.c.l.s4 1934713408
        %v4263 = vunpack.c.0.s8 %v4262
        %v4264 = vlaneseq
        %v4265 = vshrl.u32 %v4264, 7
        %v4266 = vsub.s32 %v4263, %v4265
        %v4267 = vrot.slane %v4253, %v4266
        %v4268 = vcombine.high %v4245, 0.0
        %v4269 = vcombine.high %v4252, 0.0
        %v4270 = vcombine.high %v4260, 0.0
        %v4271 = vcombine.high %v4267, 0.0
        %4273 = vrot.lane.b32.xlu0 %v4219, 16
        %v4274 = vpop.permute.xlu0 %4273
        %4277 = vrot.lane.b32.xlu0 %v4203, 32
        %v4278 = vpop.permute.xlu0 %4277
        %4281 = vrot.lane.b32.xlu0 %v4220, 48
        %v4282 = vpop.permute.xlu0 %4281
        %4285 = vrot.lane.b32.xlu0 %v4211, 64
        %v4286 = vpop.permute.xlu0 %4285
        %4289 = vrot.lane.b32.xlu0 %v4221, 80
        %v4290 = vpop.permute.xlu0 %4289
        %4293 = vrot.lane.b32.xlu0 %v4218, 96
        %v4294 = vpop.permute.xlu0 %4293
        %4297 = vrot.lane.b32.xlu0 %v4222, 112
        %v4298 = vpop.permute.xlu0 %4297
        %4301 = vrot.lane.b32.xlu0 %v4268, 16
        %v4302 = vpop.permute.xlu0 %4301
        %4305 = vrot.lane.b32.xlu0 %v4252, 32
        %v4306 = vpop.permute.xlu0 %4305
        %4309 = vrot.lane.b32.xlu0 %v4269, 48
        %v4310 = vpop.permute.xlu0 %4309
        %4313 = vrot.lane.b32.xlu0 %v4260, 64
        %v4314 = vpop.permute.xlu0 %4313
        %4317 = vrot.lane.b32.xlu0 %v4270, 80
        %v4318 = vpop.permute.xlu0 %4317
        %4321 = vrot.lane.b32.xlu0 %v4267, 96
        %v4322 = vpop.permute.xlu0 %4321
        %4325 = vrot.lane.b32.xlu0 %v4271, 112
        %v4326 = vpop.permute.xlu0 %4325
        %v4328 = vsel %vm329, %v4196, %v4274
        %v4329 = vsel %vm331, %v4328, %v4278
        %v4330 = vsel %vm333, %v4329, %v4282
        %v4331 = vsel %vm335, %v4330, %v4286
        %v4332 = vsel %vm337, %v4331, %v4290
        %v4333 = vsel %vm339, %v4332, %v4294
        %v4334 = vsel %vm341, %v4333, %v4298
        %v4335 = vsel %vm329, %v4245, %v4302
        %v4336 = vsel %vm331, %v4335, %v4306
        %v4337 = vsel %vm333, %v4336, %v4310
        %v4338 = vsel %vm335, %v4337, %v4314
        %v4339 = vsel %vm337, %v4338, %v4318
        %v4340 = vsel %vm339, %v4339, %v4322
        %v4341 = vsel %vm341, %v4340, %v4326
        %v4342 = vld [vmem:[%s3301 + $0x2] sm:$0xff]
        %v4343 = vld [vmem:[%s3301 + $0xa] sm:$0xff]
        %v4344 = vcombine.high %v4342, 0.0
        %v4346 = vunpack.c.l.s4 1983009808
        %v4347 = vunpack.c.0.s8 %v4346
        %v4348 = vlaneseq
        %v4349 = vshrl.u32 %v4348, 7
        %v4350 = vsub.s32 %v4347, %v4349
        %v4351 = vrot.slane %v4342, %v4350
        %v4353 = vunpack.c.l.s4 1983009808
        %v4354 = vunpack.c.0.s8 %v4353
        %v4355 = vlaneseq
        %v4356 = vshrl.u32 %v4355, 7
        %v4357 = vsub.s32 %v4354, %v4356
        %v4358 = vrot.slane %v4344, %v4357
        %v4359 = vcombine.high %v4351, 0.0
        %v4361 = vunpack.c.l.s4 1934713408
        %v4362 = vunpack.c.0.s8 %v4361
        %v4363 = vlaneseq
        %v4364 = vshrl.u32 %v4363, 7
        %v4365 = vsub.s32 %v4362, %v4364
        %v4366 = vrot.slane %v4351, %v4365
        %v4368 = vunpack.c.l.s4 1934713408
        %v4369 = vunpack.c.0.s8 %v4368
        %v4370 = vlaneseq
        %v4371 = vshrl.u32 %v4370, 7
        %v4372 = vsub.s32 %v4369, %v4371
        %v4373 = vrot.slane %v4359, %v4372
        %v4374 = vcombine.high %v4358, 0.0
        %v4376 = vunpack.c.l.s4 1934713408
        %v4377 = vunpack.c.0.s8 %v4376
        %v4378 = vlaneseq
        %v4379 = vshrl.u32 %v4378, 7
        %v4380 = vsub.s32 %v4377, %v4379
        %v4381 = vrot.slane %v4358, %v4380
        %v4383 = vunpack.c.l.s4 1934713408
        %v4384 = vunpack.c.0.s8 %v4383
        %v4385 = vlaneseq
        %v4386 = vshrl.u32 %v4385, 7
        %v4387 = vsub.s32 %v4384, %v4386
        %v4388 = vrot.slane %v4374, %v4387
        %v4389 = vcombine.high %v4366, 0.0
        %v4390 = vcombine.high %v4373, 0.0
        %v4391 = vcombine.high %v4381, 0.0
        %v4392 = vcombine.high %v4388, 0.0
        %v4393 = vcombine.high %v4343, 0.0
        %v4395 = vunpack.c.l.s4 1983009808
        %v4396 = vunpack.c.0.s8 %v4395
        %v4397 = vlaneseq
        %v4398 = vshrl.u32 %v4397, 7
        %v4399 = vsub.s32 %v4396, %v4398
        %v4400 = vrot.slane %v4343, %v4399
        %v4402 = vunpack.c.l.s4 1983009808
        %v4403 = vunpack.c.0.s8 %v4402
        %v4404 = vlaneseq
        %v4405 = vshrl.u32 %v4404, 7
        %v4406 = vsub.s32 %v4403, %v4405
        %v4407 = vrot.slane %v4393, %v4406
        %v4408 = vcombine.high %v4400, 0.0
        %v4410 = vunpack.c.l.s4 1934713408
        %v4411 = vunpack.c.0.s8 %v4410
        %v4412 = vlaneseq
        %v4413 = vshrl.u32 %v4412, 7
        %v4414 = vsub.s32 %v4411, %v4413
        %v4415 = vrot.slane %v4400, %v4414
        %v4417 = vunpack.c.l.s4 1934713408
        %v4418 = vunpack.c.0.s8 %v4417
        %v4419 = vlaneseq
        %v4420 = vshrl.u32 %v4419, 7
        %v4421 = vsub.s32 %v4418, %v4420
        %v4422 = vrot.slane %v4408, %v4421
        %v4423 = vcombine.high %v4407, 0.0
        %v4425 = vunpack.c.l.s4 1934713408
        %v4426 = vunpack.c.0.s8 %v4425
        %v4427 = vlaneseq
        %v4428 = vshrl.u32 %v4427, 7
        %v4429 = vsub.s32 %v4426, %v4428
        %v4430 = vrot.slane %v4407, %v4429
        %v4432 = vunpack.c.l.s4 1934713408
        %v4433 = vunpack.c.0.s8 %v4432
        %v4434 = vlaneseq
        %v4435 = vshrl.u32 %v4434, 7
        %v4436 = vsub.s32 %v4433, %v4435
        %v4437 = vrot.slane %v4423, %v4436
        %v4438 = vcombine.high %v4415, 0.0
        %v4439 = vcombine.high %v4422, 0.0
        %v4440 = vcombine.high %v4430, 0.0
        %v4441 = vcombine.high %v4437, 0.0
        %4443 = vrot.lane.b32.xlu0 %v4389, 16
        %v4444 = vpop.permute.xlu0 %4443
        %4447 = vrot.lane.b32.xlu0 %v4373, 32
        %v4448 = vpop.permute.xlu0 %4447
        %4451 = vrot.lane.b32.xlu0 %v4390, 48
        %v4452 = vpop.permute.xlu0 %4451
        %4455 = vrot.lane.b32.xlu0 %v4381, 64
        %v4456 = vpop.permute.xlu0 %4455
        %4459 = vrot.lane.b32.xlu0 %v4391, 80
        %v4460 = vpop.permute.xlu0 %4459
        %4463 = vrot.lane.b32.xlu0 %v4388, 96
        %v4464 = vpop.permute.xlu0 %4463
        %4467 = vrot.lane.b32.xlu0 %v4392, 112
        %v4468 = vpop.permute.xlu0 %4467
        %4471 = vrot.lane.b32.xlu0 %v4438, 16
        %v4472 = vpop.permute.xlu0 %4471
        %4475 = vrot.lane.b32.xlu0 %v4422, 32
        %v4476 = vpop.permute.xlu0 %4475
        %4479 = vrot.lane.b32.xlu0 %v4439, 48
        %v4480 = vpop.permute.xlu0 %4479
        %4483 = vrot.lane.b32.xlu0 %v4430, 64
        %v4484 = vpop.permute.xlu0 %4483
        %4487 = vrot.lane.b32.xlu0 %v4440, 80
        %v4488 = vpop.permute.xlu0 %4487
        %4491 = vrot.lane.b32.xlu0 %v4437, 96
        %v4492 = vpop.permute.xlu0 %4491
        %4495 = vrot.lane.b32.xlu0 %v4441, 112
        %v4496 = vpop.permute.xlu0 %4495
        %v4498 = vsel %vm329, %v4366, %v4444
        %v4499 = vsel %vm331, %v4498, %v4448
        %v4500 = vsel %vm333, %v4499, %v4452
        %v4501 = vsel %vm335, %v4500, %v4456
        %v4502 = vsel %vm337, %v4501, %v4460
        %v4503 = vsel %vm339, %v4502, %v4464
        %v4504 = vsel %vm341, %v4503, %v4468
        %v4505 = vsel %vm329, %v4415, %v4472
        %v4506 = vsel %vm331, %v4505, %v4476
        %v4507 = vsel %vm333, %v4506, %v4480
        %v4508 = vsel %vm335, %v4507, %v4484
        %v4509 = vsel %vm337, %v4508, %v4488
        %v4510 = vsel %vm339, %v4509, %v4492
        %v4511 = vsel %vm341, %v4510, %v4496
        %4514 = vrot.lane.b32.xlu0 %v4342, 127
        %v4515 = vpop.permute.xlu0 %4514
        %4516 = vrot.lane.b32.xlu0 %v4343, 127
        %v4517 = vpop.permute.xlu0 %4516
        %v4520 = vcombine.high %v4515, 0.0
        %v4522 = vunpack.c.l.s4 1983009808
        %v4523 = vunpack.c.0.s8 %v4522
        %v4524 = vlaneseq
        %v4525 = vshrl.u32 %v4524, 7
        %v4526 = vsub.s32 %v4523, %v4525
        %v4527 = vrot.slane %v4515, %v4526
        %v4529 = vunpack.c.l.s4 1983009808
        %v4530 = vunpack.c.0.s8 %v4529
        %v4531 = vlaneseq
        %v4532 = vshrl.u32 %v4531, 7
        %v4533 = vsub.s32 %v4530, %v4532
        %v4534 = vrot.slane %v4520, %v4533
        %v4535 = vcombine.high %v4527, 0.0
        %v4537 = vunpack.c.l.s4 1934713408
        %v4538 = vunpack.c.0.s8 %v4537
        %v4539 = vlaneseq
        %v4540 = vshrl.u32 %v4539, 7
        %v4541 = vsub.s32 %v4538, %v4540
        %v4542 = vrot.slane %v4527, %v4541
        %v4544 = vunpack.c.l.s4 1934713408
        %v4545 = vunpack.c.0.s8 %v4544
        %v4546 = vlaneseq
        %v4547 = vshrl.u32 %v4546, 7
        %v4548 = vsub.s32 %v4545, %v4547
        %v4549 = vrot.slane %v4535, %v4548
        %v4550 = vcombine.high %v4534, 0.0
        %v4552 = vunpack.c.l.s4 1934713408
        %v4553 = vunpack.c.0.s8 %v4552
        %v4554 = vlaneseq
        %v4555 = vshrl.u32 %v4554, 7
        %v4556 = vsub.s32 %v4553, %v4555
        %v4557 = vrot.slane %v4534, %v4556
        %v4559 = vunpack.c.l.s4 1934713408
        %v4560 = vunpack.c.0.s8 %v4559
        %v4561 = vlaneseq
        %v4562 = vshrl.u32 %v4561, 7
        %v4563 = vsub.s32 %v4560, %v4562
        %v4564 = vrot.slane %v4550, %v4563
        %v4565 = vcombine.high %v4542, 0.0
        %v4566 = vcombine.high %v4549, 0.0
        %v4567 = vcombine.high %v4557, 0.0
        %v4568 = vcombine.high %v4564, 0.0
        %v4569 = vcombine.high %v4517, 0.0
        %v4571 = vunpack.c.l.s4 1983009808
        %v4572 = vunpack.c.0.s8 %v4571
        %v4573 = vlaneseq
        %v4574 = vshrl.u32 %v4573, 7
        %v4575 = vsub.s32 %v4572, %v4574
        %v4576 = vrot.slane %v4517, %v4575
        %v4578 = vunpack.c.l.s4 1983009808
        %v4579 = vunpack.c.0.s8 %v4578
        %v4580 = vlaneseq
        %v4581 = vshrl.u32 %v4580, 7
        %v4582 = vsub.s32 %v4579, %v4581
        %v4583 = vrot.slane %v4569, %v4582
        %v4584 = vcombine.high %v4576, 0.0
        %v4586 = vunpack.c.l.s4 1934713408
        %v4587 = vunpack.c.0.s8 %v4586
        %v4588 = vlaneseq
        %v4589 = vshrl.u32 %v4588, 7
        %v4590 = vsub.s32 %v4587, %v4589
        %v4591 = vrot.slane %v4576, %v4590
        %v4593 = vunpack.c.l.s4 1934713408
        %v4594 = vunpack.c.0.s8 %v4593
        %v4595 = vlaneseq
        %v4596 = vshrl.u32 %v4595, 7
        %v4597 = vsub.s32 %v4594, %v4596
        %v4598 = vrot.slane %v4584, %v4597
        %v4599 = vcombine.high %v4583, 0.0
        %v4601 = vunpack.c.l.s4 1934713408
        %v4602 = vunpack.c.0.s8 %v4601
        %v4603 = vlaneseq
        %v4604 = vshrl.u32 %v4603, 7
        %v4605 = vsub.s32 %v4602, %v4604
        %v4606 = vrot.slane %v4583, %v4605
        %v4608 = vunpack.c.l.s4 1934713408
        %v4609 = vunpack.c.0.s8 %v4608
        %v4610 = vlaneseq
        %v4611 = vshrl.u32 %v4610, 7
        %v4612 = vsub.s32 %v4609, %v4611
        %v4613 = vrot.slane %v4599, %v4612
        %v4614 = vcombine.high %v4591, 0.0
        %v4615 = vcombine.high %v4598, 0.0
        %v4616 = vcombine.high %v4606, 0.0
        %v4617 = vcombine.high %v4613, 0.0
        %4619 = vrot.lane.b32.xlu0 %v4565, 16
        %v4620 = vpop.permute.xlu0 %4619
        %4623 = vrot.lane.b32.xlu0 %v4549, 32
        %v4624 = vpop.permute.xlu0 %4623
        %4627 = vrot.lane.b32.xlu0 %v4566, 48
        %v4628 = vpop.permute.xlu0 %4627
        %4631 = vrot.lane.b32.xlu0 %v4557, 64
        %v4632 = vpop.permute.xlu0 %4631
        %4635 = vrot.lane.b32.xlu0 %v4567, 80
        %v4636 = vpop.permute.xlu0 %4635
        %4639 = vrot.lane.b32.xlu0 %v4564, 96
        %v4640 = vpop.permute.xlu0 %4639
        %4643 = vrot.lane.b32.xlu0 %v4568, 112
        %v4644 = vpop.permute.xlu0 %4643
        %4647 = vrot.lane.b32.xlu0 %v4614, 16
        %v4648 = vpop.permute.xlu0 %4647
        %4651 = vrot.lane.b32.xlu0 %v4598, 32
        %v4652 = vpop.permute.xlu0 %4651
        %4655 = vrot.lane.b32.xlu0 %v4615, 48
        %v4656 = vpop.permute.xlu0 %4655
        %4659 = vrot.lane.b32.xlu0 %v4606, 64
        %v4660 = vpop.permute.xlu0 %4659
        %4663 = vrot.lane.b32.xlu0 %v4616, 80
        %v4664 = vpop.permute.xlu0 %4663
        %4667 = vrot.lane.b32.xlu0 %v4613, 96
        %v4668 = vpop.permute.xlu0 %4667
        %4671 = vrot.lane.b32.xlu0 %v4617, 112
        %v4672 = vpop.permute.xlu0 %4671
        %v4674 = vsel %vm329, %v4542, %v4620
        %v4675 = vsel %vm331, %v4674, %v4624
        %v4676 = vsel %vm333, %v4675, %v4628
        %v4677 = vsel %vm335, %v4676, %v4632
        %v4678 = vsel %vm337, %v4677, %v4636
        %v4679 = vsel %vm339, %v4678, %v4640
        %v4680 = vsel %vm341, %v4679, %v4644
        %v4681 = vsel %vm329, %v4591, %v4648
        %v4682 = vsel %vm331, %v4681, %v4652
        %v4683 = vsel %vm333, %v4682, %v4656
        %v4684 = vsel %vm335, %v4683, %v4660
        %v4685 = vsel %vm337, %v4684, %v4664
        %v4686 = vsel %vm339, %v4685, %v4668
        %v4687 = vsel %vm341, %v4686, %v4672
        %4688 = vrot.lane.b32.xlu0 %v4342, 126
        %v4689 = vpop.permute.xlu0 %4688
        %4690 = vrot.lane.b32.xlu0 %v4343, 126
        %v4691 = vpop.permute.xlu0 %4690
        %v4694 = vcombine.high %v4689, 0.0
        %v4696 = vunpack.c.l.s4 1983009808
        %v4697 = vunpack.c.0.s8 %v4696
        %v4698 = vlaneseq
        %v4699 = vshrl.u32 %v4698, 7
        %v4700 = vsub.s32 %v4697, %v4699
        %v4701 = vrot.slane %v4689, %v4700
        %v4703 = vunpack.c.l.s4 1983009808
        %v4704 = vunpack.c.0.s8 %v4703
        %v4705 = vlaneseq
        %v4706 = vshrl.u32 %v4705, 7
        %v4707 = vsub.s32 %v4704, %v4706
        %v4708 = vrot.slane %v4694, %v4707
        %v4709 = vcombine.high %v4701, 0.0
        %v4711 = vunpack.c.l.s4 1934713408
        %v4712 = vunpack.c.0.s8 %v4711
        %v4713 = vlaneseq
        %v4714 = vshrl.u32 %v4713, 7
        %v4715 = vsub.s32 %v4712, %v4714
        %v4716 = vrot.slane %v4701, %v4715
        %v4718 = vunpack.c.l.s4 1934713408
        %v4719 = vunpack.c.0.s8 %v4718
        %v4720 = vlaneseq
        %v4721 = vshrl.u32 %v4720, 7
        %v4722 = vsub.s32 %v4719, %v4721
        %v4723 = vrot.slane %v4709, %v4722
        %v4724 = vcombine.high %v4708, 0.0
        %v4726 = vunpack.c.l.s4 1934713408
        %v4727 = vunpack.c.0.s8 %v4726
        %v4728 = vlaneseq
        %v4729 = vshrl.u32 %v4728, 7
        %v4730 = vsub.s32 %v4727, %v4729
        %v4731 = vrot.slane %v4708, %v4730
        %v4733 = vunpack.c.l.s4 1934713408
        %v4734 = vunpack.c.0.s8 %v4733
        %v4735 = vlaneseq
        %v4736 = vshrl.u32 %v4735, 7
        %v4737 = vsub.s32 %v4734, %v4736
        %v4738 = vrot.slane %v4724, %v4737
        %v4739 = vcombine.high %v4716, 0.0
        %v4740 = vcombine.high %v4723, 0.0
        %v4741 = vcombine.high %v4731, 0.0
        %v4742 = vcombine.high %v4738, 0.0
        %v4743 = vcombine.high %v4691, 0.0
        %v4745 = vunpack.c.l.s4 1983009808
        %v4746 = vunpack.c.0.s8 %v4745
        %v4747 = vlaneseq
        %v4748 = vshrl.u32 %v4747, 7
        %v4749 = vsub.s32 %v4746, %v4748
        %v4750 = vrot.slane %v4691, %v4749
        %v4752 = vunpack.c.l.s4 1983009808
        %v4753 = vunpack.c.0.s8 %v4752
        %v4754 = vlaneseq
        %v4755 = vshrl.u32 %v4754, 7
        %v4756 = vsub.s32 %v4753, %v4755
        %v4757 = vrot.slane %v4743, %v4756
        %v4758 = vcombine.high %v4750, 0.0
        %v4760 = vunpack.c.l.s4 1934713408
        %v4761 = vunpack.c.0.s8 %v4760
        %v4762 = vlaneseq
        %v4763 = vshrl.u32 %v4762, 7
        %v4764 = vsub.s32 %v4761, %v4763
        %v4765 = vrot.slane %v4750, %v4764
        %v4767 = vunpack.c.l.s4 1934713408
        %v4768 = vunpack.c.0.s8 %v4767
        %v4769 = vlaneseq
        %v4770 = vshrl.u32 %v4769, 7
        %v4771 = vsub.s32 %v4768, %v4770
        %v4772 = vrot.slane %v4758, %v4771
        %v4773 = vcombine.high %v4757, 0.0
        %v4775 = vunpack.c.l.s4 1934713408
        %v4776 = vunpack.c.0.s8 %v4775
        %v4777 = vlaneseq
        %v4778 = vshrl.u32 %v4777, 7
        %v4779 = vsub.s32 %v4776, %v4778
        %v4780 = vrot.slane %v4757, %v4779
        %v4782 = vunpack.c.l.s4 1934713408
        %v4783 = vunpack.c.0.s8 %v4782
        %v4784 = vlaneseq
        %v4785 = vshrl.u32 %v4784, 7
        %v4786 = vsub.s32 %v4783, %v4785
        %v4787 = vrot.slane %v4773, %v4786
        %v4788 = vcombine.high %v4765, 0.0
        %v4789 = vcombine.high %v4772, 0.0
        %v4790 = vcombine.high %v4780, 0.0
        %v4791 = vcombine.high %v4787, 0.0
        %4793 = vrot.lane.b32.xlu0 %v4739, 16
        %v4794 = vpop.permute.xlu0 %4793
        %4797 = vrot.lane.b32.xlu0 %v4723, 32
        %v4798 = vpop.permute.xlu0 %4797
        %4801 = vrot.lane.b32.xlu0 %v4740, 48
        %v4802 = vpop.permute.xlu0 %4801
        %4805 = vrot.lane.b32.xlu0 %v4731, 64
        %v4806 = vpop.permute.xlu0 %4805
        %4809 = vrot.lane.b32.xlu0 %v4741, 80
        %v4810 = vpop.permute.xlu0 %4809
        %4813 = vrot.lane.b32.xlu0 %v4738, 96
        %v4814 = vpop.permute.xlu0 %4813
        %4817 = vrot.lane.b32.xlu0 %v4742, 112
        %v4818 = vpop.permute.xlu0 %4817
        %4821 = vrot.lane.b32.xlu0 %v4788, 16
        %v4822 = vpop.permute.xlu0 %4821
        %4825 = vrot.lane.b32.xlu0 %v4772, 32
        %v4826 = vpop.permute.xlu0 %4825
        %4829 = vrot.lane.b32.xlu0 %v4789, 48
        %v4830 = vpop.permute.xlu0 %4829
        %4833 = vrot.lane.b32.xlu0 %v4780, 64
        %v4834 = vpop.permute.xlu0 %4833
        %4837 = vrot.lane.b32.xlu0 %v4790, 80
        %v4838 = vpop.permute.xlu0 %4837
        %4841 = vrot.lane.b32.xlu0 %v4787, 96
        %v4842 = vpop.permute.xlu0 %4841
        %4845 = vrot.lane.b32.xlu0 %v4791, 112
        %v4846 = vpop.permute.xlu0 %4845
        %v4848 = vsel %vm329, %v4716, %v4794
        %v4849 = vsel %vm331, %v4848, %v4798
        %v4850 = vsel %vm333, %v4849, %v4802
        %v4851 = vsel %vm335, %v4850, %v4806
        %v4852 = vsel %vm337, %v4851, %v4810
        %v4853 = vsel %vm339, %v4852, %v4814
        %v4854 = vsel %vm341, %v4853, %v4818
        %v4855 = vsel %vm329, %v4765, %v4822
        %v4856 = vsel %vm331, %v4855, %v4826
        %v4857 = vsel %vm333, %v4856, %v4830
        %v4858 = vsel %vm335, %v4857, %v4834
        %v4859 = vsel %vm337, %v4858, %v4838
        %v4860 = vsel %vm339, %v4859, %v4842
        %v4861 = vsel %vm341, %v4860, %v4846
        %s4862 = scalar_lea.vmem %s168, 72
        %v4863 = vld [vmem:[%s4862] sm:$0xff]
        %v4864 = vld [vmem:[%s4862 + $0x8] sm:$0xff]
        %v4865 = vcombine.high %v4863, 0.0
        %v4867 = vunpack.c.l.s4 1983009808
        %v4868 = vunpack.c.0.s8 %v4867
        %v4869 = vlaneseq
        %v4870 = vshrl.u32 %v4869, 7
        %v4871 = vsub.s32 %v4868, %v4870
        %v4872 = vrot.slane %v4863, %v4871
        %v4874 = vunpack.c.l.s4 1983009808
        %v4875 = vunpack.c.0.s8 %v4874
        %v4876 = vlaneseq
        %v4877 = vshrl.u32 %v4876, 7
        %v4878 = vsub.s32 %v4875, %v4877
        %v4879 = vrot.slane %v4865, %v4878
        %v4880 = vcombine.high %v4872, 0.0
        %v4882 = vunpack.c.l.s4 1934713408
        %v4883 = vunpack.c.0.s8 %v4882
        %v4884 = vlaneseq
        %v4885 = vshrl.u32 %v4884, 7
        %v4886 = vsub.s32 %v4883, %v4885
        %v4887 = vrot.slane %v4872, %v4886
        %v4889 = vunpack.c.l.s4 1934713408
        %v4890 = vunpack.c.0.s8 %v4889
        %v4891 = vlaneseq
        %v4892 = vshrl.u32 %v4891, 7
        %v4893 = vsub.s32 %v4890, %v4892
        %v4894 = vrot.slane %v4880, %v4893
        %v4895 = vcombine.high %v4879, 0.0
        %v4897 = vunpack.c.l.s4 1934713408
        %v4898 = vunpack.c.0.s8 %v4897
        %v4899 = vlaneseq
        %v4900 = vshrl.u32 %v4899, 7
        %v4901 = vsub.s32 %v4898, %v4900
        %v4902 = vrot.slane %v4879, %v4901
        %v4904 = vunpack.c.l.s4 1934713408
        %v4905 = vunpack.c.0.s8 %v4904
        %v4906 = vlaneseq
        %v4907 = vshrl.u32 %v4906, 7
        %v4908 = vsub.s32 %v4905, %v4907
        %v4909 = vrot.slane %v4895, %v4908
        %v4910 = vcombine.high %v4887, 0.0
        %v4911 = vcombine.high %v4894, 0.0
        %v4912 = vcombine.high %v4902, 0.0
        %v4913 = vcombine.high %v4909, 0.0
        %v4914 = vcombine.high %v4864, 0.0
        %v4916 = vunpack.c.l.s4 1983009808
        %v4917 = vunpack.c.0.s8 %v4916
        %v4918 = vlaneseq
        %v4919 = vshrl.u32 %v4918, 7
        %v4920 = vsub.s32 %v4917, %v4919
        %v4921 = vrot.slane %v4864, %v4920
        %v4923 = vunpack.c.l.s4 1983009808
        %v4924 = vunpack.c.0.s8 %v4923
        %v4925 = vlaneseq
        %v4926 = vshrl.u32 %v4925, 7
        %v4927 = vsub.s32 %v4924, %v4926
        %v4928 = vrot.slane %v4914, %v4927
        %v4929 = vcombine.high %v4921, 0.0
        %v4931 = vunpack.c.l.s4 1934713408
        %v4932 = vunpack.c.0.s8 %v4931
        %v4933 = vlaneseq
        %v4934 = vshrl.u32 %v4933, 7
        %v4935 = vsub.s32 %v4932, %v4934
        %v4936 = vrot.slane %v4921, %v4935
        %v4938 = vunpack.c.l.s4 1934713408
        %v4939 = vunpack.c.0.s8 %v4938
        %v4940 = vlaneseq
        %v4941 = vshrl.u32 %v4940, 7
        %v4942 = vsub.s32 %v4939, %v4941
        %v4943 = vrot.slane %v4929, %v4942
        %v4944 = vcombine.high %v4928, 0.0
        %v4946 = vunpack.c.l.s4 1934713408
        %v4947 = vunpack.c.0.s8 %v4946
        %v4948 = vlaneseq
        %v4949 = vshrl.u32 %v4948, 7
        %v4950 = vsub.s32 %v4947, %v4949
        %v4951 = vrot.slane %v4928, %v4950
        %v4953 = vunpack.c.l.s4 1934713408
        %v4954 = vunpack.c.0.s8 %v4953
        %v4955 = vlaneseq
        %v4956 = vshrl.u32 %v4955, 7
        %v4957 = vsub.s32 %v4954, %v4956
        %v4958 = vrot.slane %v4944, %v4957
        %v4959 = vcombine.high %v4936, 0.0
        %v4960 = vcombine.high %v4943, 0.0
        %v4961 = vcombine.high %v4951, 0.0
        %v4962 = vcombine.high %v4958, 0.0
        %4964 = vrot.lane.b32.xlu0 %v4910, 16
        %v4965 = vpop.permute.xlu0 %4964
        %4968 = vrot.lane.b32.xlu0 %v4894, 32
        %v4969 = vpop.permute.xlu0 %4968
        %4972 = vrot.lane.b32.xlu0 %v4911, 48
        %v4973 = vpop.permute.xlu0 %4972
        %4976 = vrot.lane.b32.xlu0 %v4902, 64
        %v4977 = vpop.permute.xlu0 %4976
        %4980 = vrot.lane.b32.xlu0 %v4912, 80
        %v4981 = vpop.permute.xlu0 %4980
        %4984 = vrot.lane.b32.xlu0 %v4909, 96
        %v4985 = vpop.permute.xlu0 %4984
        %4988 = vrot.lane.b32.xlu0 %v4913, 112
        %v4989 = vpop.permute.xlu0 %4988
        %4992 = vrot.lane.b32.xlu0 %v4959, 16
        %v4993 = vpop.permute.xlu0 %4992
        %4996 = vrot.lane.b32.xlu0 %v4943, 32
        %v4997 = vpop.permute.xlu0 %4996
        %5000 = vrot.lane.b32.xlu0 %v4960, 48
        %v5001 = vpop.permute.xlu0 %5000
        %5004 = vrot.lane.b32.xlu0 %v4951, 64
        %v5005 = vpop.permute.xlu0 %5004
        %5008 = vrot.lane.b32.xlu0 %v4961, 80
        %v5009 = vpop.permute.xlu0 %5008
        %5012 = vrot.lane.b32.xlu0 %v4958, 96
        %v5013 = vpop.permute.xlu0 %5012
        %5016 = vrot.lane.b32.xlu0 %v4962, 112
        %v5017 = vpop.permute.xlu0 %5016
        %v5019 = vsel %vm329, %v4887, %v4965
        %v5020 = vsel %vm331, %v5019, %v4969
        %v5021 = vsel %vm333, %v5020, %v4973
        %v5022 = vsel %vm335, %v5021, %v4977
        %v5023 = vsel %vm337, %v5022, %v4981
        %v5024 = vsel %vm339, %v5023, %v4985
        %v5025 = vsel %vm341, %v5024, %v4989
        %v5026 = vsel %vm329, %v4936, %v4993
        %v5027 = vsel %vm331, %v5026, %v4997
        %v5028 = vsel %vm333, %v5027, %v5001
        %v5029 = vsel %vm335, %v5028, %v5005
        %v5030 = vsel %vm337, %v5029, %v5009
        %v5031 = vsel %vm339, %v5030, %v5013
        %v5032 = vsel %vm341, %v5031, %v5017
        %5035 = vrot.lane.b32.xlu0 %v4863, 127
        %v5036 = vpop.permute.xlu0 %5035
        %5037 = vrot.lane.b32.xlu0 %v4864, 127
        %v5038 = vpop.permute.xlu0 %5037
        %v5041 = vcombine.high %v5036, 0.0
        %v5043 = vunpack.c.l.s4 1983009808
        %v5044 = vunpack.c.0.s8 %v5043
        %v5045 = vlaneseq
        %v5046 = vshrl.u32 %v5045, 7
        %v5047 = vsub.s32 %v5044, %v5046
        %v5048 = vrot.slane %v5036, %v5047
        %v5050 = vunpack.c.l.s4 1983009808
        %v5051 = vunpack.c.0.s8 %v5050
        %v5052 = vlaneseq
        %v5053 = vshrl.u32 %v5052, 7
        %v5054 = vsub.s32 %v5051, %v5053
        %v5055 = vrot.slane %v5041, %v5054
        %v5056 = vcombine.high %v5048, 0.0
        %v5058 = vunpack.c.l.s4 1934713408
        %v5059 = vunpack.c.0.s8 %v5058
        %v5060 = vlaneseq
        %v5061 = vshrl.u32 %v5060, 7
        %v5062 = vsub.s32 %v5059, %v5061
        %v5063 = vrot.slane %v5048, %v5062
        %v5065 = vunpack.c.l.s4 1934713408
        %v5066 = vunpack.c.0.s8 %v5065
        %v5067 = vlaneseq
        %v5068 = vshrl.u32 %v5067, 7
        %v5069 = vsub.s32 %v5066, %v5068
        %v5070 = vrot.slane %v5056, %v5069
        %v5071 = vcombine.high %v5055, 0.0
        %v5073 = vunpack.c.l.s4 1934713408
        %v5074 = vunpack.c.0.s8 %v5073
        %v5075 = vlaneseq
        %v5076 = vshrl.u32 %v5075, 7
        %v5077 = vsub.s32 %v5074, %v5076
        %v5078 = vrot.slane %v5055, %v5077
        %v5080 = vunpack.c.l.s4 1934713408
        %v5081 = vunpack.c.0.s8 %v5080
        %v5082 = vlaneseq
        %v5083 = vshrl.u32 %v5082, 7
        %v5084 = vsub.s32 %v5081, %v5083
        %v5085 = vrot.slane %v5071, %v5084
        %v5086 = vcombine.high %v5063, 0.0
        %v5087 = vcombine.high %v5070, 0.0
        %v5088 = vcombine.high %v5078, 0.0
        %v5089 = vcombine.high %v5085, 0.0
        %v5090 = vcombine.high %v5038, 0.0
        %v5092 = vunpack.c.l.s4 1983009808
        %v5093 = vunpack.c.0.s8 %v5092
        %v5094 = vlaneseq
        %v5095 = vshrl.u32 %v5094, 7
        %v5096 = vsub.s32 %v5093, %v5095
        %v5097 = vrot.slane %v5038, %v5096
        %v5099 = vunpack.c.l.s4 1983009808
        %v5100 = vunpack.c.0.s8 %v5099
        %v5101 = vlaneseq
        %v5102 = vshrl.u32 %v5101, 7
        %v5103 = vsub.s32 %v5100, %v5102
        %v5104 = vrot.slane %v5090, %v5103
        %v5105 = vcombine.high %v5097, 0.0
        %v5107 = vunpack.c.l.s4 1934713408
        %v5108 = vunpack.c.0.s8 %v5107
        %v5109 = vlaneseq
        %v5110 = vshrl.u32 %v5109, 7
        %v5111 = vsub.s32 %v5108, %v5110
        %v5112 = vrot.slane %v5097, %v5111
        %v5114 = vunpack.c.l.s4 1934713408
        %v5115 = vunpack.c.0.s8 %v5114
        %v5116 = vlaneseq
        %v5117 = vshrl.u32 %v5116, 7
        %v5118 = vsub.s32 %v5115, %v5117
        %v5119 = vrot.slane %v5105, %v5118
        %v5120 = vcombine.high %v5104, 0.0
        %v5122 = vunpack.c.l.s4 1934713408
        %v5123 = vunpack.c.0.s8 %v5122
        %v5124 = vlaneseq
        %v5125 = vshrl.u32 %v5124, 7
        %v5126 = vsub.s32 %v5123, %v5125
        %v5127 = vrot.slane %v5104, %v5126
        %v5129 = vunpack.c.l.s4 1934713408
        %v5130 = vunpack.c.0.s8 %v5129
        %v5131 = vlaneseq
        %v5132 = vshrl.u32 %v5131, 7
        %v5133 = vsub.s32 %v5130, %v5132
        %v5134 = vrot.slane %v5120, %v5133
        %v5135 = vcombine.high %v5112, 0.0
        %v5136 = vcombine.high %v5119, 0.0
        %v5137 = vcombine.high %v5127, 0.0
        %v5138 = vcombine.high %v5134, 0.0
        %5140 = vrot.lane.b32.xlu0 %v5086, 16
        %v5141 = vpop.permute.xlu0 %5140
        %5144 = vrot.lane.b32.xlu0 %v5070, 32
        %v5145 = vpop.permute.xlu0 %5144
        %5148 = vrot.lane.b32.xlu0 %v5087, 48
        %v5149 = vpop.permute.xlu0 %5148
        %5152 = vrot.lane.b32.xlu0 %v5078, 64
        %v5153 = vpop.permute.xlu0 %5152
        %5156 = vrot.lane.b32.xlu0 %v5088, 80
        %v5157 = vpop.permute.xlu0 %5156
        %5160 = vrot.lane.b32.xlu0 %v5085, 96
        %v5161 = vpop.permute.xlu0 %5160
        %5164 = vrot.lane.b32.xlu0 %v5089, 112
        %v5165 = vpop.permute.xlu0 %5164
        %5168 = vrot.lane.b32.xlu0 %v5135, 16
        %v5169 = vpop.permute.xlu0 %5168
        %5172 = vrot.lane.b32.xlu0 %v5119, 32
        %v5173 = vpop.permute.xlu0 %5172
        %5176 = vrot.lane.b32.xlu0 %v5136, 48
        %v5177 = vpop.permute.xlu0 %5176
        %5180 = vrot.lane.b32.xlu0 %v5127, 64
        %v5181 = vpop.permute.xlu0 %5180
        %5184 = vrot.lane.b32.xlu0 %v5137, 80
        %v5185 = vpop.permute.xlu0 %5184
        %5188 = vrot.lane.b32.xlu0 %v5134, 96
        %v5189 = vpop.permute.xlu0 %5188
        %5192 = vrot.lane.b32.xlu0 %v5138, 112
        %v5193 = vpop.permute.xlu0 %5192
        %v5195 = vsel %vm329, %v5063, %v5141
        %v5196 = vsel %vm331, %v5195, %v5145
        %v5197 = vsel %vm333, %v5196, %v5149
        %v5198 = vsel %vm335, %v5197, %v5153
        %v5199 = vsel %vm337, %v5198, %v5157
        %v5200 = vsel %vm339, %v5199, %v5161
        %v5201 = vsel %vm341, %v5200, %v5165
        %v5202 = vsel %vm329, %v5112, %v5169
        %v5203 = vsel %vm331, %v5202, %v5173
        %v5204 = vsel %vm333, %v5203, %v5177
        %v5205 = vsel %vm335, %v5204, %v5181
        %v5206 = vsel %vm337, %v5205, %v5185
        %v5207 = vsel %vm339, %v5206, %v5189
        %v5208 = vsel %vm341, %v5207, %v5193
        %5209 = vrot.lane.b32.xlu0 %v4863, 126
        %v5210 = vpop.permute.xlu0 %5209
        %5211 = vrot.lane.b32.xlu0 %v4864, 126
        %v5212 = vpop.permute.xlu0 %5211
        %v5215 = vcombine.high %v5210, 0.0
        %v5217 = vunpack.c.l.s4 1983009808
        %v5218 = vunpack.c.0.s8 %v5217
        %v5219 = vlaneseq
        %v5220 = vshrl.u32 %v5219, 7
        %v5221 = vsub.s32 %v5218, %v5220
        %v5222 = vrot.slane %v5210, %v5221
        %v5224 = vunpack.c.l.s4 1983009808
        %v5225 = vunpack.c.0.s8 %v5224
        %v5226 = vlaneseq
        %v5227 = vshrl.u32 %v5226, 7
        %v5228 = vsub.s32 %v5225, %v5227
        %v5229 = vrot.slane %v5215, %v5228
        %v5230 = vcombine.high %v5222, 0.0
        %v5232 = vunpack.c.l.s4 1934713408
        %v5233 = vunpack.c.0.s8 %v5232
        %v5234 = vlaneseq
        %v5235 = vshrl.u32 %v5234, 7
        %v5236 = vsub.s32 %v5233, %v5235
        %v5237 = vrot.slane %v5222, %v5236
        %v5239 = vunpack.c.l.s4 1934713408
        %v5240 = vunpack.c.0.s8 %v5239
        %v5241 = vlaneseq
        %v5242 = vshrl.u32 %v5241, 7
        %v5243 = vsub.s32 %v5240, %v5242
        %v5244 = vrot.slane %v5230, %v5243
        %v5245 = vcombine.high %v5229, 0.0
        %v5247 = vunpack.c.l.s4 1934713408
        %v5248 = vunpack.c.0.s8 %v5247
        %v5249 = vlaneseq
        %v5250 = vshrl.u32 %v5249, 7
        %v5251 = vsub.s32 %v5248, %v5250
        %v5252 = vrot.slane %v5229, %v5251
        %v5254 = vunpack.c.l.s4 1934713408
        %v5255 = vunpack.c.0.s8 %v5254
        %v5256 = vlaneseq
        %v5257 = vshrl.u32 %v5256, 7
        %v5258 = vsub.s32 %v5255, %v5257
        %v5259 = vrot.slane %v5245, %v5258
        %v5260 = vcombine.high %v5237, 0.0
        %v5261 = vcombine.high %v5244, 0.0
        %v5262 = vcombine.high %v5252, 0.0
        %v5263 = vcombine.high %v5259, 0.0
        %v5264 = vcombine.high %v5212, 0.0
        %v5266 = vunpack.c.l.s4 1983009808
        %v5267 = vunpack.c.0.s8 %v5266
        %v5268 = vlaneseq
        %v5269 = vshrl.u32 %v5268, 7
        %v5270 = vsub.s32 %v5267, %v5269
        %v5271 = vrot.slane %v5212, %v5270
        %v5273 = vunpack.c.l.s4 1983009808
        %v5274 = vunpack.c.0.s8 %v5273
        %v5275 = vlaneseq
        %v5276 = vshrl.u32 %v5275, 7
        %v5277 = vsub.s32 %v5274, %v5276
        %v5278 = vrot.slane %v5264, %v5277
        %v5279 = vcombine.high %v5271, 0.0
        %v5281 = vunpack.c.l.s4 1934713408
        %v5282 = vunpack.c.0.s8 %v5281
        %v5283 = vlaneseq
        %v5284 = vshrl.u32 %v5283, 7
        %v5285 = vsub.s32 %v5282, %v5284
        %v5286 = vrot.slane %v5271, %v5285
        %v5288 = vunpack.c.l.s4 1934713408
        %v5289 = vunpack.c.0.s8 %v5288
        %v5290 = vlaneseq
        %v5291 = vshrl.u32 %v5290, 7
        %v5292 = vsub.s32 %v5289, %v5291
        %v5293 = vrot.slane %v5279, %v5292
        %v5294 = vcombine.high %v5278, 0.0
        %v5296 = vunpack.c.l.s4 1934713408
        %v5297 = vunpack.c.0.s8 %v5296
        %v5298 = vlaneseq
        %v5299 = vshrl.u32 %v5298, 7
        %v5300 = vsub.s32 %v5297, %v5299
        %v5301 = vrot.slane %v5278, %v5300
        %v5303 = vunpack.c.l.s4 1934713408
        %v5304 = vunpack.c.0.s8 %v5303
        %v5305 = vlaneseq
        %v5306 = vshrl.u32 %v5305, 7
        %v5307 = vsub.s32 %v5304, %v5306
        %v5308 = vrot.slane %v5294, %v5307
        %v5309 = vcombine.high %v5286, 0.0
        %v5310 = vcombine.high %v5293, 0.0
        %v5311 = vcombine.high %v5301, 0.0
        %v5312 = vcombine.high %v5308, 0.0
        %5314 = vrot.lane.b32.xlu0 %v5260, 16
        %v5315 = vpop.permute.xlu0 %5314
        %5318 = vrot.lane.b32.xlu0 %v5244, 32
        %v5319 = vpop.permute.xlu0 %5318
        %5322 = vrot.lane.b32.xlu0 %v5261, 48
        %v5323 = vpop.permute.xlu0 %5322
        %5326 = vrot.lane.b32.xlu0 %v5252, 64
        %v5327 = vpop.permute.xlu0 %5326
        %5330 = vrot.lane.b32.xlu0 %v5262, 80
        %v5331 = vpop.permute.xlu0 %5330
        %5334 = vrot.lane.b32.xlu0 %v5259, 96
        %v5335 = vpop.permute.xlu0 %5334
        %5338 = vrot.lane.b32.xlu0 %v5263, 112
        %v5339 = vpop.permute.xlu0 %5338
        %5342 = vrot.lane.b32.xlu0 %v5309, 16
        %v5343 = vpop.permute.xlu0 %5342
        %5346 = vrot.lane.b32.xlu0 %v5293, 32
        %v5347 = vpop.permute.xlu0 %5346
        %5350 = vrot.lane.b32.xlu0 %v5310, 48
        %v5351 = vpop.permute.xlu0 %5350
        %5354 = vrot.lane.b32.xlu0 %v5301, 64
        %v5355 = vpop.permute.xlu0 %5354
        %5358 = vrot.lane.b32.xlu0 %v5311, 80
        %v5359 = vpop.permute.xlu0 %5358
        %5362 = vrot.lane.b32.xlu0 %v5308, 96
        %v5363 = vpop.permute.xlu0 %5362
        %5366 = vrot.lane.b32.xlu0 %v5312, 112
        %v5367 = vpop.permute.xlu0 %5366
        %v5369 = vsel %vm329, %v5237, %v5315
        %v5370 = vsel %vm331, %v5369, %v5319
        %v5371 = vsel %vm333, %v5370, %v5323
        %v5372 = vsel %vm335, %v5371, %v5327
        %v5373 = vsel %vm337, %v5372, %v5331
        %v5374 = vsel %vm339, %v5373, %v5335
        %v5375 = vsel %vm341, %v5374, %v5339
        %v5376 = vsel %vm329, %v5286, %v5343
        %v5377 = vsel %vm331, %v5376, %v5347
        %v5378 = vsel %vm333, %v5377, %v5351
        %v5379 = vsel %vm335, %v5378, %v5355
        %v5380 = vsel %vm337, %v5379, %v5359
        %v5381 = vsel %vm339, %v5380, %v5363
        %v5382 = vsel %vm341, %v5381, %v5367
        %v5383 = vld [vmem:[%s4862 + $0x1] sm:$0xff]
        %v5384 = vld [vmem:[%s4862 + $0x9] sm:$0xff]
        %v5385 = vcombine.high %v5383, 0.0
        %v5387 = vunpack.c.l.s4 1983009808
        %v5388 = vunpack.c.0.s8 %v5387
        %v5389 = vlaneseq
        %v5390 = vshrl.u32 %v5389, 7
        %v5391 = vsub.s32 %v5388, %v5390
        %v5392 = vrot.slane %v5383, %v5391
        %v5394 = vunpack.c.l.s4 1983009808
        %v5395 = vunpack.c.0.s8 %v5394
        %v5396 = vlaneseq
        %v5397 = vshrl.u32 %v5396, 7
        %v5398 = vsub.s32 %v5395, %v5397
        %v5399 = vrot.slane %v5385, %v5398
        %v5400 = vcombine.high %v5392, 0.0
        %v5402 = vunpack.c.l.s4 1934713408
        %v5403 = vunpack.c.0.s8 %v5402
        %v5404 = vlaneseq
        %v5405 = vshrl.u32 %v5404, 7
        %v5406 = vsub.s32 %v5403, %v5405
        %v5407 = vrot.slane %v5392, %v5406
        %v5409 = vunpack.c.l.s4 1934713408
        %v5410 = vunpack.c.0.s8 %v5409
        %v5411 = vlaneseq
        %v5412 = vshrl.u32 %v5411, 7
        %v5413 = vsub.s32 %v5410, %v5412
        %v5414 = vrot.slane %v5400, %v5413
        %v5415 = vcombine.high %v5399, 0.0
        %v5417 = vunpack.c.l.s4 1934713408
        %v5418 = vunpack.c.0.s8 %v5417
        %v5419 = vlaneseq
        %v5420 = vshrl.u32 %v5419, 7
        %v5421 = vsub.s32 %v5418, %v5420
        %v5422 = vrot.slane %v5399, %v5421
        %v5424 = vunpack.c.l.s4 1934713408
        %v5425 = vunpack.c.0.s8 %v5424
        %v5426 = vlaneseq
        %v5427 = vshrl.u32 %v5426, 7
        %v5428 = vsub.s32 %v5425, %v5427
        %v5429 = vrot.slane %v5415, %v5428
        %v5430 = vcombine.high %v5407, 0.0
        %v5431 = vcombine.high %v5414, 0.0
        %v5432 = vcombine.high %v5422, 0.0
        %v5433 = vcombine.high %v5429, 0.0
        %v5434 = vcombine.high %v5384, 0.0
        %v5436 = vunpack.c.l.s4 1983009808
        %v5437 = vunpack.c.0.s8 %v5436
        %v5438 = vlaneseq
        %v5439 = vshrl.u32 %v5438, 7
        %v5440 = vsub.s32 %v5437, %v5439
        %v5441 = vrot.slane %v5384, %v5440
        %v5443 = vunpack.c.l.s4 1983009808
        %v5444 = vunpack.c.0.s8 %v5443
        %v5445 = vlaneseq
        %v5446 = vshrl.u32 %v5445, 7
        %v5447 = vsub.s32 %v5444, %v5446
        %v5448 = vrot.slane %v5434, %v5447
        %v5449 = vcombine.high %v5441, 0.0
        %v5451 = vunpack.c.l.s4 1934713408
        %v5452 = vunpack.c.0.s8 %v5451
        %v5453 = vlaneseq
        %v5454 = vshrl.u32 %v5453, 7
        %v5455 = vsub.s32 %v5452, %v5454
        %v5456 = vrot.slane %v5441, %v5455
        %v5458 = vunpack.c.l.s4 1934713408
        %v5459 = vunpack.c.0.s8 %v5458
        %v5460 = vlaneseq
        %v5461 = vshrl.u32 %v5460, 7
        %v5462 = vsub.s32 %v5459, %v5461
        %v5463 = vrot.slane %v5449, %v5462
        %v5464 = vcombine.high %v5448, 0.0
        %v5466 = vunpack.c.l.s4 1934713408
        %v5467 = vunpack.c.0.s8 %v5466
        %v5468 = vlaneseq
        %v5469 = vshrl.u32 %v5468, 7
        %v5470 = vsub.s32 %v5467, %v5469
        %v5471 = vrot.slane %v5448, %v5470
        %v5473 = vunpack.c.l.s4 1934713408
        %v5474 = vunpack.c.0.s8 %v5473
        %v5475 = vlaneseq
        %v5476 = vshrl.u32 %v5475, 7
        %v5477 = vsub.s32 %v5474, %v5476
        %v5478 = vrot.slane %v5464, %v5477
        %v5479 = vcombine.high %v5456, 0.0
        %v5480 = vcombine.high %v5463, 0.0
        %v5481 = vcombine.high %v5471, 0.0
        %v5482 = vcombine.high %v5478, 0.0
        %5484 = vrot.lane.b32.xlu0 %v5430, 16
        %v5485 = vpop.permute.xlu0 %5484
        %5488 = vrot.lane.b32.xlu0 %v5414, 32
        %v5489 = vpop.permute.xlu0 %5488
        %5492 = vrot.lane.b32.xlu0 %v5431, 48
        %v5493 = vpop.permute.xlu0 %5492
        %5496 = vrot.lane.b32.xlu0 %v5422, 64
        %v5497 = vpop.permute.xlu0 %5496
        %5500 = vrot.lane.b32.xlu0 %v5432, 80
        %v5501 = vpop.permute.xlu0 %5500
        %5504 = vrot.lane.b32.xlu0 %v5429, 96
        %v5505 = vpop.permute.xlu0 %5504
        %5508 = vrot.lane.b32.xlu0 %v5433, 112
        %v5509 = vpop.permute.xlu0 %5508
        %5512 = vrot.lane.b32.xlu0 %v5479, 16
        %v5513 = vpop.permute.xlu0 %5512
        %5516 = vrot.lane.b32.xlu0 %v5463, 32
        %v5517 = vpop.permute.xlu0 %5516
        %5520 = vrot.lane.b32.xlu0 %v5480, 48
        %v5521 = vpop.permute.xlu0 %5520
        %5524 = vrot.lane.b32.xlu0 %v5471, 64
        %v5525 = vpop.permute.xlu0 %5524
        %5528 = vrot.lane.b32.xlu0 %v5481, 80
        %v5529 = vpop.permute.xlu0 %5528
        %5532 = vrot.lane.b32.xlu0 %v5478, 96
        %v5533 = vpop.permute.xlu0 %5532
        %5536 = vrot.lane.b32.xlu0 %v5482, 112
        %v5537 = vpop.permute.xlu0 %5536
        %v5539 = vsel %vm329, %v5407, %v5485
        %v5540 = vsel %vm331, %v5539, %v5489
        %v5541 = vsel %vm333, %v5540, %v5493
        %v5542 = vsel %vm335, %v5541, %v5497
        %v5543 = vsel %vm337, %v5542, %v5501
        %v5544 = vsel %vm339, %v5543, %v5505
        %v5545 = vsel %vm341, %v5544, %v5509
        %v5546 = vsel %vm329, %v5456, %v5513
        %v5547 = vsel %vm331, %v5546, %v5517
        %v5548 = vsel %vm333, %v5547, %v5521
        %v5549 = vsel %vm335, %v5548, %v5525
        %v5550 = vsel %vm337, %v5549, %v5529
        %v5551 = vsel %vm339, %v5550, %v5533
        %v5552 = vsel %vm341, %v5551, %v5537
        %5555 = vrot.lane.b32.xlu0 %v5383, 127
        %v5556 = vpop.permute.xlu0 %5555
        %5557 = vrot.lane.b32.xlu0 %v5384, 127
        %v5558 = vpop.permute.xlu0 %5557
        %v5561 = vcombine.high %v5556, 0.0
        %v5563 = vunpack.c.l.s4 1983009808
        %v5564 = vunpack.c.0.s8 %v5563
        %v5565 = vlaneseq
        %v5566 = vshrl.u32 %v5565, 7
        %v5567 = vsub.s32 %v5564, %v5566
        %v5568 = vrot.slane %v5556, %v5567
        %v5570 = vunpack.c.l.s4 1983009808
        %v5571 = vunpack.c.0.s8 %v5570
        %v5572 = vlaneseq
        %v5573 = vshrl.u32 %v5572, 7
        %v5574 = vsub.s32 %v5571, %v5573
        %v5575 = vrot.slane %v5561, %v5574
        %v5576 = vcombine.high %v5568, 0.0
        %v5578 = vunpack.c.l.s4 1934713408
        %v5579 = vunpack.c.0.s8 %v5578
        %v5580 = vlaneseq
        %v5581 = vshrl.u32 %v5580, 7
        %v5582 = vsub.s32 %v5579, %v5581
        %v5583 = vrot.slane %v5568, %v5582
        %v5585 = vunpack.c.l.s4 1934713408
        %v5586 = vunpack.c.0.s8 %v5585
        %v5587 = vlaneseq
        %v5588 = vshrl.u32 %v5587, 7
        %v5589 = vsub.s32 %v5586, %v5588
        %v5590 = vrot.slane %v5576, %v5589
        %v5591 = vcombine.high %v5575, 0.0
        %v5593 = vunpack.c.l.s4 1934713408
        %v5594 = vunpack.c.0.s8 %v5593
        %v5595 = vlaneseq
        %v5596 = vshrl.u32 %v5595, 7
        %v5597 = vsub.s32 %v5594, %v5596
        %v5598 = vrot.slane %v5575, %v5597
        %v5600 = vunpack.c.l.s4 1934713408
        %v5601 = vunpack.c.0.s8 %v5600
        %v5602 = vlaneseq
        %v5603 = vshrl.u32 %v5602, 7
        %v5604 = vsub.s32 %v5601, %v5603
        %v5605 = vrot.slane %v5591, %v5604
        %v5606 = vcombine.high %v5583, 0.0
        %v5607 = vcombine.high %v5590, 0.0
        %v5608 = vcombine.high %v5598, 0.0
        %v5609 = vcombine.high %v5605, 0.0
        %v5610 = vcombine.high %v5558, 0.0
        %v5612 = vunpack.c.l.s4 1983009808
        %v5613 = vunpack.c.0.s8 %v5612
        %v5614 = vlaneseq
        %v5615 = vshrl.u32 %v5614, 7
        %v5616 = vsub.s32 %v5613, %v5615
        %v5617 = vrot.slane %v5558, %v5616
        %v5619 = vunpack.c.l.s4 1983009808
        %v5620 = vunpack.c.0.s8 %v5619
        %v5621 = vlaneseq
        %v5622 = vshrl.u32 %v5621, 7
        %v5623 = vsub.s32 %v5620, %v5622
        %v5624 = vrot.slane %v5610, %v5623
        %v5625 = vcombine.high %v5617, 0.0
        %v5627 = vunpack.c.l.s4 1934713408
        %v5628 = vunpack.c.0.s8 %v5627
        %v5629 = vlaneseq
        %v5630 = vshrl.u32 %v5629, 7
        %v5631 = vsub.s32 %v5628, %v5630
        %v5632 = vrot.slane %v5617, %v5631
        %v5634 = vunpack.c.l.s4 1934713408
        %v5635 = vunpack.c.0.s8 %v5634
        %v5636 = vlaneseq
        %v5637 = vshrl.u32 %v5636, 7
        %v5638 = vsub.s32 %v5635, %v5637
        %v5639 = vrot.slane %v5625, %v5638
        %v5640 = vcombine.high %v5624, 0.0
        %v5642 = vunpack.c.l.s4 1934713408
        %v5643 = vunpack.c.0.s8 %v5642
        %v5644 = vlaneseq
        %v5645 = vshrl.u32 %v5644, 7
        %v5646 = vsub.s32 %v5643, %v5645
        %v5647 = vrot.slane %v5624, %v5646
        %v5649 = vunpack.c.l.s4 1934713408
        %v5650 = vunpack.c.0.s8 %v5649
        %v5651 = vlaneseq
        %v5652 = vshrl.u32 %v5651, 7
        %v5653 = vsub.s32 %v5650, %v5652
        %v5654 = vrot.slane %v5640, %v5653
        %v5655 = vcombine.high %v5632, 0.0
        %v5656 = vcombine.high %v5639, 0.0
        %v5657 = vcombine.high %v5647, 0.0
        %v5658 = vcombine.high %v5654, 0.0
        %5660 = vrot.lane.b32.xlu0 %v5606, 16
        %v5661 = vpop.permute.xlu0 %5660
        %5664 = vrot.lane.b32.xlu0 %v5590, 32
        %v5665 = vpop.permute.xlu0 %5664
        %5668 = vrot.lane.b32.xlu0 %v5607, 48
        %v5669 = vpop.permute.xlu0 %5668
        %5672 = vrot.lane.b32.xlu0 %v5598, 64
        %v5673 = vpop.permute.xlu0 %5672
        %5676 = vrot.lane.b32.xlu0 %v5608, 80
        %v5677 = vpop.permute.xlu0 %5676
        %5680 = vrot.lane.b32.xlu0 %v5605, 96
        %v5681 = vpop.permute.xlu0 %5680
        %5684 = vrot.lane.b32.xlu0 %v5609, 112
        %v5685 = vpop.permute.xlu0 %5684
        %5688 = vrot.lane.b32.xlu0 %v5655, 16
        %v5689 = vpop.permute.xlu0 %5688
        %5692 = vrot.lane.b32.xlu0 %v5639, 32
        %v5693 = vpop.permute.xlu0 %5692
        %5696 = vrot.lane.b32.xlu0 %v5656, 48
        %v5697 = vpop.permute.xlu0 %5696
        %5700 = vrot.lane.b32.xlu0 %v5647, 64
        %v5701 = vpop.permute.xlu0 %5700
        %5704 = vrot.lane.b32.xlu0 %v5657, 80
        %v5705 = vpop.permute.xlu0 %5704
        %5708 = vrot.lane.b32.xlu0 %v5654, 96
        %v5709 = vpop.permute.xlu0 %5708
        %5712 = vrot.lane.b32.xlu0 %v5658, 112
        %v5713 = vpop.permute.xlu0 %5712
        %v5715 = vsel %vm329, %v5583, %v5661
        %v5716 = vsel %vm331, %v5715, %v5665
        %v5717 = vsel %vm333, %v5716, %v5669
        %v5718 = vsel %vm335, %v5717, %v5673
        %v5719 = vsel %vm337, %v5718, %v5677
        %v5720 = vsel %vm339, %v5719, %v5681
        %v5721 = vsel %vm341, %v5720, %v5685
        %v5722 = vsel %vm329, %v5632, %v5689
        %v5723 = vsel %vm331, %v5722, %v5693
        %v5724 = vsel %vm333, %v5723, %v5697
        %v5725 = vsel %vm335, %v5724, %v5701
        %v5726 = vsel %vm337, %v5725, %v5705
        %v5727 = vsel %vm339, %v5726, %v5709
        %v5728 = vsel %vm341, %v5727, %v5713
        %5729 = vrot.lane.b32.xlu0 %v5383, 126
        %v5730 = vpop.permute.xlu0 %5729
        %5731 = vrot.lane.b32.xlu0 %v5384, 126
        %v5732 = vpop.permute.xlu0 %5731
        %v5735 = vcombine.high %v5730, 0.0
        %v5737 = vunpack.c.l.s4 1983009808
        %v5738 = vunpack.c.0.s8 %v5737
        %v5739 = vlaneseq
        %v5740 = vshrl.u32 %v5739, 7
        %v5741 = vsub.s32 %v5738, %v5740
        %v5742 = vrot.slane %v5730, %v5741
        %v5744 = vunpack.c.l.s4 1983009808
        %v5745 = vunpack.c.0.s8 %v5744
        %v5746 = vlaneseq
        %v5747 = vshrl.u32 %v5746, 7
        %v5748 = vsub.s32 %v5745, %v5747
        %v5749 = vrot.slane %v5735, %v5748
        %v5750 = vcombine.high %v5742, 0.0
        %v5752 = vunpack.c.l.s4 1934713408
        %v5753 = vunpack.c.0.s8 %v5752
        %v5754 = vlaneseq
        %v5755 = vshrl.u32 %v5754, 7
        %v5756 = vsub.s32 %v5753, %v5755
        %v5757 = vrot.slane %v5742, %v5756
        %v5759 = vunpack.c.l.s4 1934713408
        %v5760 = vunpack.c.0.s8 %v5759
        %v5761 = vlaneseq
        %v5762 = vshrl.u32 %v5761, 7
        %v5763 = vsub.s32 %v5760, %v5762
        %v5764 = vrot.slane %v5750, %v5763
        %v5765 = vcombine.high %v5749, 0.0
        %v5767 = vunpack.c.l.s4 1934713408
        %v5768 = vunpack.c.0.s8 %v5767
        %v5769 = vlaneseq
        %v5770 = vshrl.u32 %v5769, 7
        %v5771 = vsub.s32 %v5768, %v5770
        %v5772 = vrot.slane %v5749, %v5771
        %v5774 = vunpack.c.l.s4 1934713408
        %v5775 = vunpack.c.0.s8 %v5774
        %v5776 = vlaneseq
        %v5777 = vshrl.u32 %v5776, 7
        %v5778 = vsub.s32 %v5775, %v5777
        %v5779 = vrot.slane %v5765, %v5778
        %v5780 = vcombine.high %v5757, 0.0
        %v5781 = vcombine.high %v5764, 0.0
        %v5782 = vcombine.high %v5772, 0.0
        %v5783 = vcombine.high %v5779, 0.0
        %v5784 = vcombine.high %v5732, 0.0
        %v5786 = vunpack.c.l.s4 1983009808
        %v5787 = vunpack.c.0.s8 %v5786
        %v5788 = vlaneseq
        %v5789 = vshrl.u32 %v5788, 7
        %v5790 = vsub.s32 %v5787, %v5789
        %v5791 = vrot.slane %v5732, %v5790
        %v5793 = vunpack.c.l.s4 1983009808
        %v5794 = vunpack.c.0.s8 %v5793
        %v5795 = vlaneseq
        %v5796 = vshrl.u32 %v5795, 7
        %v5797 = vsub.s32 %v5794, %v5796
        %v5798 = vrot.slane %v5784, %v5797
        %v5799 = vcombine.high %v5791, 0.0
        %v5801 = vunpack.c.l.s4 1934713408
        %v5802 = vunpack.c.0.s8 %v5801
        %v5803 = vlaneseq
        %v5804 = vshrl.u32 %v5803, 7
        %v5805 = vsub.s32 %v5802, %v5804
        %v5806 = vrot.slane %v5791, %v5805
        %v5808 = vunpack.c.l.s4 1934713408
        %v5809 = vunpack.c.0.s8 %v5808
        %v5810 = vlaneseq
        %v5811 = vshrl.u32 %v5810, 7
        %v5812 = vsub.s32 %v5809, %v5811
        %v5813 = vrot.slane %v5799, %v5812
        %v5814 = vcombine.high %v5798, 0.0
        %v5816 = vunpack.c.l.s4 1934713408
        %v5817 = vunpack.c.0.s8 %v5816
        %v5818 = vlaneseq
        %v5819 = vshrl.u32 %v5818, 7
        %v5820 = vsub.s32 %v5817, %v5819
        %v5821 = vrot.slane %v5798, %v5820
        %v5823 = vunpack.c.l.s4 1934713408
        %v5824 = vunpack.c.0.s8 %v5823
        %v5825 = vlaneseq
        %v5826 = vshrl.u32 %v5825, 7
        %v5827 = vsub.s32 %v5824, %v5826
        %v5828 = vrot.slane %v5814, %v5827
        %v5829 = vcombine.high %v5806, 0.0
        %v5830 = vcombine.high %v5813, 0.0
        %v5831 = vcombine.high %v5821, 0.0
        %v5832 = vcombine.high %v5828, 0.0
        %5834 = vrot.lane.b32.xlu0 %v5780, 16
        %v5835 = vpop.permute.xlu0 %5834
        %5838 = vrot.lane.b32.xlu0 %v5764, 32
        %v5839 = vpop.permute.xlu0 %5838
        %5842 = vrot.lane.b32.xlu0 %v5781, 48
        %v5843 = vpop.permute.xlu0 %5842
        %5846 = vrot.lane.b32.xlu0 %v5772, 64
        %v5847 = vpop.permute.xlu0 %5846
        %5850 = vrot.lane.b32.xlu0 %v5782, 80
        %v5851 = vpop.permute.xlu0 %5850
        %5854 = vrot.lane.b32.xlu0 %v5779, 96
        %v5855 = vpop.permute.xlu0 %5854
        %5858 = vrot.lane.b32.xlu0 %v5783, 112
        %v5859 = vpop.permute.xlu0 %5858
        %5862 = vrot.lane.b32.xlu0 %v5829, 16
        %v5863 = vpop.permute.xlu0 %5862
        %5866 = vrot.lane.b32.xlu0 %v5813, 32
        %v5867 = vpop.permute.xlu0 %5866
        %5870 = vrot.lane.b32.xlu0 %v5830, 48
        %v5871 = vpop.permute.xlu0 %5870
        %5874 = vrot.lane.b32.xlu0 %v5821, 64
        %v5875 = vpop.permute.xlu0 %5874
        %5878 = vrot.lane.b32.xlu0 %v5831, 80
        %v5879 = vpop.permute.xlu0 %5878
        %5882 = vrot.lane.b32.xlu0 %v5828, 96
        %v5883 = vpop.permute.xlu0 %5882
        %5886 = vrot.lane.b32.xlu0 %v5832, 112
        %v5887 = vpop.permute.xlu0 %5886
        %v5889 = vsel %vm329, %v5757, %v5835
        %v5890 = vsel %vm331, %v5889, %v5839
        %v5891 = vsel %vm333, %v5890, %v5843
        %v5892 = vsel %vm335, %v5891, %v5847
        %v5893 = vsel %vm337, %v5892, %v5851
        %v5894 = vsel %vm339, %v5893, %v5855
        %v5895 = vsel %vm341, %v5894, %v5859
        %v5896 = vsel %vm329, %v5806, %v5863
        %v5897 = vsel %vm331, %v5896, %v5867
        %v5898 = vsel %vm333, %v5897, %v5871
        %v5899 = vsel %vm335, %v5898, %v5875
        %v5900 = vsel %vm337, %v5899, %v5879
        %v5901 = vsel %vm339, %v5900, %v5883
        %v5902 = vsel %vm341, %v5901, %v5887
        %v5903 = vld [vmem:[%s4862 + $0x2] sm:$0xff]
        %v5904 = vld [vmem:[%s4862 + $0xa] sm:$0xff]
        %v5905 = vcombine.high %v5903, 0.0
        %v5907 = vunpack.c.l.s4 1983009808
        %v5908 = vunpack.c.0.s8 %v5907
        %v5909 = vlaneseq
        %v5910 = vshrl.u32 %v5909, 7
        %v5911 = vsub.s32 %v5908, %v5910
        %v5912 = vrot.slane %v5903, %v5911
        %v5914 = vunpack.c.l.s4 1983009808
        %v5915 = vunpack.c.0.s8 %v5914
        %v5916 = vlaneseq
        %v5917 = vshrl.u32 %v5916, 7
        %v5918 = vsub.s32 %v5915, %v5917
        %v5919 = vrot.slane %v5905, %v5918
        %v5920 = vcombine.high %v5912, 0.0
        %v5922 = vunpack.c.l.s4 1934713408
        %v5923 = vunpack.c.0.s8 %v5922
        %v5924 = vlaneseq
        %v5925 = vshrl.u32 %v5924, 7
        %v5926 = vsub.s32 %v5923, %v5925
        %v5927 = vrot.slane %v5912, %v5926
        %v5929 = vunpack.c.l.s4 1934713408
        %v5930 = vunpack.c.0.s8 %v5929
        %v5931 = vlaneseq
        %v5932 = vshrl.u32 %v5931, 7
        %v5933 = vsub.s32 %v5930, %v5932
        %v5934 = vrot.slane %v5920, %v5933
        %v5935 = vcombine.high %v5919, 0.0
        %v5937 = vunpack.c.l.s4 1934713408
        %v5938 = vunpack.c.0.s8 %v5937
        %v5939 = vlaneseq
        %v5940 = vshrl.u32 %v5939, 7
        %v5941 = vsub.s32 %v5938, %v5940
        %v5942 = vrot.slane %v5919, %v5941
        %v5944 = vunpack.c.l.s4 1934713408
        %v5945 = vunpack.c.0.s8 %v5944
        %v5946 = vlaneseq
        %v5947 = vshrl.u32 %v5946, 7
        %v5948 = vsub.s32 %v5945, %v5947
        %v5949 = vrot.slane %v5935, %v5948
        %v5950 = vcombine.high %v5927, 0.0
        %v5951 = vcombine.high %v5934, 0.0
        %v5952 = vcombine.high %v5942, 0.0
        %v5953 = vcombine.high %v5949, 0.0
        %v5954 = vcombine.high %v5904, 0.0
        %v5956 = vunpack.c.l.s4 1983009808
        %v5957 = vunpack.c.0.s8 %v5956
        %v5958 = vlaneseq
        %v5959 = vshrl.u32 %v5958, 7
        %v5960 = vsub.s32 %v5957, %v5959
        %v5961 = vrot.slane %v5904, %v5960
        %v5963 = vunpack.c.l.s4 1983009808
        %v5964 = vunpack.c.0.s8 %v5963
        %v5965 = vlaneseq
        %v5966 = vshrl.u32 %v5965, 7
        %v5967 = vsub.s32 %v5964, %v5966
        %v5968 = vrot.slane %v5954, %v5967
        %v5969 = vcombine.high %v5961, 0.0
        %v5971 = vunpack.c.l.s4 1934713408
        %v5972 = vunpack.c.0.s8 %v5971
        %v5973 = vlaneseq
        %v5974 = vshrl.u32 %v5973, 7
        %v5975 = vsub.s32 %v5972, %v5974
        %v5976 = vrot.slane %v5961, %v5975
        %v5978 = vunpack.c.l.s4 1934713408
        %v5979 = vunpack.c.0.s8 %v5978
        %v5980 = vlaneseq
        %v5981 = vshrl.u32 %v5980, 7
        %v5982 = vsub.s32 %v5979, %v5981
        %v5983 = vrot.slane %v5969, %v5982
        %v5984 = vcombine.high %v5968, 0.0
        %v5986 = vunpack.c.l.s4 1934713408
        %v5987 = vunpack.c.0.s8 %v5986
        %v5988 = vlaneseq
        %v5989 = vshrl.u32 %v5988, 7
        %v5990 = vsub.s32 %v5987, %v5989
        %v5991 = vrot.slane %v5968, %v5990
        %v5993 = vunpack.c.l.s4 1934713408
        %v5994 = vunpack.c.0.s8 %v5993
        %v5995 = vlaneseq
        %v5996 = vshrl.u32 %v5995, 7
        %v5997 = vsub.s32 %v5994, %v5996
        %v5998 = vrot.slane %v5984, %v5997
        %v5999 = vcombine.high %v5976, 0.0
        %v6000 = vcombine.high %v5983, 0.0
        %v6001 = vcombine.high %v5991, 0.0
        %v6002 = vcombine.high %v5998, 0.0
        %6004 = vrot.lane.b32.xlu0 %v5950, 16
        %v6005 = vpop.permute.xlu0 %6004
        %6008 = vrot.lane.b32.xlu0 %v5934, 32
        %v6009 = vpop.permute.xlu0 %6008
        %6012 = vrot.lane.b32.xlu0 %v5951, 48
        %v6013 = vpop.permute.xlu0 %6012
        %6016 = vrot.lane.b32.xlu0 %v5942, 64
        %v6017 = vpop.permute.xlu0 %6016
        %6020 = vrot.lane.b32.xlu0 %v5952, 80
        %v6021 = vpop.permute.xlu0 %6020
        %6024 = vrot.lane.b32.xlu0 %v5949, 96
        %v6025 = vpop.permute.xlu0 %6024
        %6028 = vrot.lane.b32.xlu0 %v5953, 112
        %v6029 = vpop.permute.xlu0 %6028
        %6032 = vrot.lane.b32.xlu0 %v5999, 16
        %v6033 = vpop.permute.xlu0 %6032
        %6036 = vrot.lane.b32.xlu0 %v5983, 32
        %v6037 = vpop.permute.xlu0 %6036
        %6040 = vrot.lane.b32.xlu0 %v6000, 48
        %v6041 = vpop.permute.xlu0 %6040
        %6044 = vrot.lane.b32.xlu0 %v5991, 64
        %v6045 = vpop.permute.xlu0 %6044
        %6048 = vrot.lane.b32.xlu0 %v6001, 80
        %v6049 = vpop.permute.xlu0 %6048
        %6052 = vrot.lane.b32.xlu0 %v5998, 96
        %v6053 = vpop.permute.xlu0 %6052
        %6056 = vrot.lane.b32.xlu0 %v6002, 112
        %v6057 = vpop.permute.xlu0 %6056
        %v6059 = vsel %vm329, %v5927, %v6005
        %v6060 = vsel %vm331, %v6059, %v6009
        %v6061 = vsel %vm333, %v6060, %v6013
        %v6062 = vsel %vm335, %v6061, %v6017
        %v6063 = vsel %vm337, %v6062, %v6021
        %v6064 = vsel %vm339, %v6063, %v6025
        %v6065 = vsel %vm341, %v6064, %v6029
        %v6066 = vsel %vm329, %v5976, %v6033
        %v6067 = vsel %vm331, %v6066, %v6037
        %v6068 = vsel %vm333, %v6067, %v6041
        %v6069 = vsel %vm335, %v6068, %v6045
        %v6070 = vsel %vm337, %v6069, %v6049
        %v6071 = vsel %vm339, %v6070, %v6053
        %v6072 = vsel %vm341, %v6071, %v6057
        %6075 = vrot.lane.b32.xlu0 %v5903, 127
        %v6076 = vpop.permute.xlu0 %6075
        %6077 = vrot.lane.b32.xlu0 %v5904, 127
        %v6078 = vpop.permute.xlu0 %6077
        %v6081 = vcombine.high %v6076, 0.0
        %v6083 = vunpack.c.l.s4 1983009808
        %v6084 = vunpack.c.0.s8 %v6083
        %v6085 = vlaneseq
        %v6086 = vshrl.u32 %v6085, 7
        %v6087 = vsub.s32 %v6084, %v6086
        %v6088 = vrot.slane %v6076, %v6087
        %v6090 = vunpack.c.l.s4 1983009808
        %v6091 = vunpack.c.0.s8 %v6090
        %v6092 = vlaneseq
        %v6093 = vshrl.u32 %v6092, 7
        %v6094 = vsub.s32 %v6091, %v6093
        %v6095 = vrot.slane %v6081, %v6094
        %v6096 = vcombine.high %v6088, 0.0
        %v6098 = vunpack.c.l.s4 1934713408
        %v6099 = vunpack.c.0.s8 %v6098
        %v6100 = vlaneseq
        %v6101 = vshrl.u32 %v6100, 7
        %v6102 = vsub.s32 %v6099, %v6101
        %v6103 = vrot.slane %v6088, %v6102
        %v6105 = vunpack.c.l.s4 1934713408
        %v6106 = vunpack.c.0.s8 %v6105
        %v6107 = vlaneseq
        %v6108 = vshrl.u32 %v6107, 7
        %v6109 = vsub.s32 %v6106, %v6108
        %v6110 = vrot.slane %v6096, %v6109
        %v6111 = vcombine.high %v6095, 0.0
        %v6113 = vunpack.c.l.s4 1934713408
        %v6114 = vunpack.c.0.s8 %v6113
        %v6115 = vlaneseq
        %v6116 = vshrl.u32 %v6115, 7
        %v6117 = vsub.s32 %v6114, %v6116
        %v6118 = vrot.slane %v6095, %v6117
        %v6120 = vunpack.c.l.s4 1934713408
        %v6121 = vunpack.c.0.s8 %v6120
        %v6122 = vlaneseq
        %v6123 = vshrl.u32 %v6122, 7
        %v6124 = vsub.s32 %v6121, %v6123
        %v6125 = vrot.slane %v6111, %v6124
        %v6126 = vcombine.high %v6103, 0.0
        %v6127 = vcombine.high %v6110, 0.0
        %v6128 = vcombine.high %v6118, 0.0
        %v6129 = vcombine.high %v6125, 0.0
        %v6130 = vcombine.high %v6078, 0.0
        %v6132 = vunpack.c.l.s4 1983009808
        %v6133 = vunpack.c.0.s8 %v6132
        %v6134 = vlaneseq
        %v6135 = vshrl.u32 %v6134, 7
        %v6136 = vsub.s32 %v6133, %v6135
        %v6137 = vrot.slane %v6078, %v6136
        %v6139 = vunpack.c.l.s4 1983009808
        %v6140 = vunpack.c.0.s8 %v6139
        %v6141 = vlaneseq
        %v6142 = vshrl.u32 %v6141, 7
        %v6143 = vsub.s32 %v6140, %v6142
        %v6144 = vrot.slane %v6130, %v6143
        %v6145 = vcombine.high %v6137, 0.0
        %v6147 = vunpack.c.l.s4 1934713408
        %v6148 = vunpack.c.0.s8 %v6147
        %v6149 = vlaneseq
        %v6150 = vshrl.u32 %v6149, 7
        %v6151 = vsub.s32 %v6148, %v6150
        %v6152 = vrot.slane %v6137, %v6151
        %v6154 = vunpack.c.l.s4 1934713408
        %v6155 = vunpack.c.0.s8 %v6154
        %v6156 = vlaneseq
        %v6157 = vshrl.u32 %v6156, 7
        %v6158 = vsub.s32 %v6155, %v6157
        %v6159 = vrot.slane %v6145, %v6158
        %v6160 = vcombine.high %v6144, 0.0
        %v6162 = vunpack.c.l.s4 1934713408
        %v6163 = vunpack.c.0.s8 %v6162
        %v6164 = vlaneseq
        %v6165 = vshrl.u32 %v6164, 7
        %v6166 = vsub.s32 %v6163, %v6165
        %v6167 = vrot.slane %v6144, %v6166
        %v6169 = vunpack.c.l.s4 1934713408
        %v6170 = vunpack.c.0.s8 %v6169
        %v6171 = vlaneseq
        %v6172 = vshrl.u32 %v6171, 7
        %v6173 = vsub.s32 %v6170, %v6172
        %v6174 = vrot.slane %v6160, %v6173
        %v6175 = vcombine.high %v6152, 0.0
        %v6176 = vcombine.high %v6159, 0.0
        %v6177 = vcombine.high %v6167, 0.0
        %v6178 = vcombine.high %v6174, 0.0
        %6180 = vrot.lane.b32.xlu0 %v6126, 16
        %v6181 = vpop.permute.xlu0 %6180
        %6184 = vrot.lane.b32.xlu0 %v6110, 32
        %v6185 = vpop.permute.xlu0 %6184
        %6188 = vrot.lane.b32.xlu0 %v6127, 48
        %v6189 = vpop.permute.xlu0 %6188
        %6192 = vrot.lane.b32.xlu0 %v6118, 64
        %v6193 = vpop.permute.xlu0 %6192
        %6196 = vrot.lane.b32.xlu0 %v6128, 80
        %v6197 = vpop.permute.xlu0 %6196
        %6200 = vrot.lane.b32.xlu0 %v6125, 96
        %v6201 = vpop.permute.xlu0 %6200
        %6204 = vrot.lane.b32.xlu0 %v6129, 112
        %v6205 = vpop.permute.xlu0 %6204
        %6208 = vrot.lane.b32.xlu0 %v6175, 16
        %v6209 = vpop.permute.xlu0 %6208
        %6212 = vrot.lane.b32.xlu0 %v6159, 32
        %v6213 = vpop.permute.xlu0 %6212
        %6216 = vrot.lane.b32.xlu0 %v6176, 48
        %v6217 = vpop.permute.xlu0 %6216
        %6220 = vrot.lane.b32.xlu0 %v6167, 64
        %v6221 = vpop.permute.xlu0 %6220
        %6224 = vrot.lane.b32.xlu0 %v6177, 80
        %v6225 = vpop.permute.xlu0 %6224
        %6228 = vrot.lane.b32.xlu0 %v6174, 96
        %v6229 = vpop.permute.xlu0 %6228
        %6232 = vrot.lane.b32.xlu0 %v6178, 112
        %v6233 = vpop.permute.xlu0 %6232
        %v6235 = vsel %vm329, %v6103, %v6181
        %v6236 = vsel %vm331, %v6235, %v6185
        %v6237 = vsel %vm333, %v6236, %v6189
        %v6238 = vsel %vm335, %v6237, %v6193
        %v6239 = vsel %vm337, %v6238, %v6197
        %v6240 = vsel %vm339, %v6239, %v6201
        %v6241 = vsel %vm341, %v6240, %v6205
        %v6242 = vsel %vm329, %v6152, %v6209
        %v6243 = vsel %vm331, %v6242, %v6213
        %v6244 = vsel %vm333, %v6243, %v6217
        %v6245 = vsel %vm335, %v6244, %v6221
        %v6246 = vsel %vm337, %v6245, %v6225
        %v6247 = vsel %vm339, %v6246, %v6229
        %v6248 = vsel %vm341, %v6247, %v6233
        %6249 = vrot.lane.b32.xlu0 %v5903, 126
        %v6250 = vpop.permute.xlu0 %6249
        %6251 = vrot.lane.b32.xlu0 %v5904, 126
        %v6252 = vpop.permute.xlu0 %6251
        %v6255 = vcombine.high %v6250, 0.0
        %v6257 = vunpack.c.l.s4 1983009808
        %v6258 = vunpack.c.0.s8 %v6257
        %v6259 = vlaneseq
        %v6260 = vshrl.u32 %v6259, 7
        %v6261 = vsub.s32 %v6258, %v6260
        %v6262 = vrot.slane %v6250, %v6261
        %v6264 = vunpack.c.l.s4 1983009808
        %v6265 = vunpack.c.0.s8 %v6264
        %v6266 = vlaneseq
        %v6267 = vshrl.u32 %v6266, 7
        %v6268 = vsub.s32 %v6265, %v6267
        %v6269 = vrot.slane %v6255, %v6268
        %v6270 = vcombine.high %v6262, 0.0
        %v6272 = vunpack.c.l.s4 1934713408
        %v6273 = vunpack.c.0.s8 %v6272
        %v6274 = vlaneseq
        %v6275 = vshrl.u32 %v6274, 7
        %v6276 = vsub.s32 %v6273, %v6275
        %v6277 = vrot.slane %v6262, %v6276
        %v6279 = vunpack.c.l.s4 1934713408
        %v6280 = vunpack.c.0.s8 %v6279
        %v6281 = vlaneseq
        %v6282 = vshrl.u32 %v6281, 7
        %v6283 = vsub.s32 %v6280, %v6282
        %v6284 = vrot.slane %v6270, %v6283
        %v6285 = vcombine.high %v6269, 0.0
        %v6287 = vunpack.c.l.s4 1934713408
        %v6288 = vunpack.c.0.s8 %v6287
        %v6289 = vlaneseq
        %v6290 = vshrl.u32 %v6289, 7
        %v6291 = vsub.s32 %v6288, %v6290
        %v6292 = vrot.slane %v6269, %v6291
        %v6294 = vunpack.c.l.s4 1934713408
        %v6295 = vunpack.c.0.s8 %v6294
        %v6296 = vlaneseq
        %v6297 = vshrl.u32 %v6296, 7
        %v6298 = vsub.s32 %v6295, %v6297
        %v6299 = vrot.slane %v6285, %v6298
        %v6300 = vcombine.high %v6277, 0.0
        %v6301 = vcombine.high %v6284, 0.0
        %v6302 = vcombine.high %v6292, 0.0
        %v6303 = vcombine.high %v6299, 0.0
        %v6304 = vcombine.high %v6252, 0.0
        %v6306 = vunpack.c.l.s4 1983009808
        %v6307 = vunpack.c.0.s8 %v6306
        %v6308 = vlaneseq
        %v6309 = vshrl.u32 %v6308, 7
        %v6310 = vsub.s32 %v6307, %v6309
        %v6311 = vrot.slane %v6252, %v6310
        %v6313 = vunpack.c.l.s4 1983009808
        %v6314 = vunpack.c.0.s8 %v6313
        %v6315 = vlaneseq
        %v6316 = vshrl.u32 %v6315, 7
        %v6317 = vsub.s32 %v6314, %v6316
        %v6318 = vrot.slane %v6304, %v6317
        %v6319 = vcombine.high %v6311, 0.0
        %v6321 = vunpack.c.l.s4 1934713408
        %v6322 = vunpack.c.0.s8 %v6321
        %v6323 = vlaneseq
        %v6324 = vshrl.u32 %v6323, 7
        %v6325 = vsub.s32 %v6322, %v6324
        %v6326 = vrot.slane %v6311, %v6325
        %v6328 = vunpack.c.l.s4 1934713408
        %v6329 = vunpack.c.0.s8 %v6328
        %v6330 = vlaneseq
        %v6331 = vshrl.u32 %v6330, 7
        %v6332 = vsub.s32 %v6329, %v6331
        %v6333 = vrot.slane %v6319, %v6332
        %v6334 = vcombine.high %v6318, 0.0
        %v6336 = vunpack.c.l.s4 1934713408
        %v6337 = vunpack.c.0.s8 %v6336
        %v6338 = vlaneseq
        %v6339 = vshrl.u32 %v6338, 7
        %v6340 = vsub.s32 %v6337, %v6339
        %v6341 = vrot.slane %v6318, %v6340
        %v6343 = vunpack.c.l.s4 1934713408
        %v6344 = vunpack.c.0.s8 %v6343
        %v6345 = vlaneseq
        %v6346 = vshrl.u32 %v6345, 7
        %v6347 = vsub.s32 %v6344, %v6346
        %v6348 = vrot.slane %v6334, %v6347
        %v6349 = vcombine.high %v6326, 0.0
        %v6350 = vcombine.high %v6333, 0.0
        %v6351 = vcombine.high %v6341, 0.0
        %v6352 = vcombine.high %v6348, 0.0
        %6354 = vrot.lane.b32.xlu0 %v6300, 16
        %v6355 = vpop.permute.xlu0 %6354
        %6358 = vrot.lane.b32.xlu0 %v6284, 32
        %v6359 = vpop.permute.xlu0 %6358
        %6362 = vrot.lane.b32.xlu0 %v6301, 48
        %v6363 = vpop.permute.xlu0 %6362
        %6366 = vrot.lane.b32.xlu0 %v6292, 64
        %v6367 = vpop.permute.xlu0 %6366
        %6370 = vrot.lane.b32.xlu0 %v6302, 80
        %v6371 = vpop.permute.xlu0 %6370
        %6374 = vrot.lane.b32.xlu0 %v6299, 96
        %v6375 = vpop.permute.xlu0 %6374
        %6378 = vrot.lane.b32.xlu0 %v6303, 112
        %v6379 = vpop.permute.xlu0 %6378
        %6382 = vrot.lane.b32.xlu0 %v6349, 16
        %v6383 = vpop.permute.xlu0 %6382
        %6386 = vrot.lane.b32.xlu0 %v6333, 32
        %v6387 = vpop.permute.xlu0 %6386
        %6390 = vrot.lane.b32.xlu0 %v6350, 48
        %v6391 = vpop.permute.xlu0 %6390
        %6394 = vrot.lane.b32.xlu0 %v6341, 64
        %v6395 = vpop.permute.xlu0 %6394
        %6398 = vrot.lane.b32.xlu0 %v6351, 80
        %v6399 = vpop.permute.xlu0 %6398
        %6402 = vrot.lane.b32.xlu0 %v6348, 96
        %v6403 = vpop.permute.xlu0 %6402
        %6406 = vrot.lane.b32.xlu0 %v6352, 112
        %v6407 = vpop.permute.xlu0 %6406
        %v6409 = vsel %vm329, %v6277, %v6355
        %v6410 = vsel %vm331, %v6409, %v6359
        %v6411 = vsel %vm333, %v6410, %v6363
        %v6412 = vsel %vm335, %v6411, %v6367
        %v6413 = vsel %vm337, %v6412, %v6371
        %v6414 = vsel %vm339, %v6413, %v6375
        %v6415 = vsel %vm341, %v6414, %v6379
        %v6416 = vsel %vm329, %v6326, %v6383
        %v6417 = vsel %vm331, %v6416, %v6387
        %v6418 = vsel %vm333, %v6417, %v6391
        %v6419 = vsel %vm335, %v6418, %v6395
        %v6420 = vsel %vm337, %v6419, %v6399
        %v6421 = vsel %vm339, %v6420, %v6403
        %v6422 = vsel %vm341, %v6421, %v6407
        %v6425 = vrot.slane %v518, 7
        %v6426 = vrot.slane %v525, 7
        %v6431 = vrot.slane %v692, 6
        %v6432 = vrot.slane %v699, 6
        %v6437 = vrot.slane %v862, 5
        %v6438 = vrot.slane %v869, 5
        %v6443 = vrot.slane %v1038, 4
        %v6444 = vrot.slane %v1045, 4
        %v6449 = vrot.slane %v1212, 3
        %v6450 = vrot.slane %v1219, 3
        %v6455 = vrot.slane %v1382, 2
        %v6456 = vrot.slane %v1389, 2
        %v6461 = vrot.slane %v1558, 1
        %v6462 = vrot.slane %v1565, 1
        %v6467 = vrot.slane %v1903, 7
        %v6468 = vrot.slane %v1910, 7
        %v6473 = vrot.slane %v2079, 6
        %v6474 = vrot.slane %v2086, 6
        %v6479 = vrot.slane %v2253, 5
        %v6480 = vrot.slane %v2260, 5
        %v6485 = vrot.slane %v2423, 4
        %v6486 = vrot.slane %v2430, 4
        %v6491 = vrot.slane %v2599, 3
        %v6492 = vrot.slane %v2606, 3
        %v6497 = vrot.slane %v2773, 2
        %v6498 = vrot.slane %v2780, 2
        %v6503 = vrot.slane %v2943, 1
        %v6504 = vrot.slane %v2950, 1
        %vm6507 = vcmask 1040384
        %v6508 = vsel %vm6507, %v342, %v6425
        %v6509 = vsel %vm6507, %v349, %v6426
        %vm6510 = vcmask 1041408
        %v6511 = vsel %vm6510, %v6508, %v6431
        %v6512 = vsel %vm6510, %v6509, %v6432
        %vm6513 = vcmask 1042432
        %v6514 = vsel %vm6513, %v6511, %v6437
        %v6515 = vsel %vm6513, %v6512, %v6438
        %vm6516 = vcmask 1043456
        %v6517 = vsel %vm6516, %v6514, %v6443
        %v6518 = vsel %vm6516, %v6515, %v6444
        %vm6519 = vcmask 1044480
        %v6520 = vsel %vm6519, %v6517, %v6449
        %v6521 = vsel %vm6519, %v6518, %v6450
        %vm6522 = vcmask 1045504
        %v6523 = vsel %vm6522, %v6520, %v6455
        %v6524 = vsel %vm6522, %v6521, %v6456
        %vm6525 = vcmask 1046528
        %v6526 = vsel %vm6525, %v6523, %v6461
        %v6527 = vsel %vm6525, %v6524, %v6462
        %v6528 = vsel %vm6507, %v1732, %v6467
        %v6529 = vsel %vm6507, %v1739, %v6468
        %v6530 = vsel %vm6510, %v6528, %v6473
        %v6531 = vsel %vm6510, %v6529, %v6474
        %v6532 = vsel %vm6513, %v6530, %v6479
        %v6533 = vsel %vm6513, %v6531, %v6480
        %v6534 = vsel %vm6516, %v6532, %v6485
        %v6535 = vsel %vm6516, %v6533, %v6486
        %v6536 = vsel %vm6519, %v6534, %v6491
        %v6537 = vsel %vm6519, %v6535, %v6492
        %v6538 = vsel %vm6522, %v6536, %v6497
        %v6539 = vsel %vm6522, %v6537, %v6498
        %v6540 = vsel %vm6525, %v6538, %v6503
        %v6541 = vsel %vm6525, %v6539, %v6504
        %v6544 = vrot.slane %v3293, 7
        %v6545 = vrot.slane %v3300, 7
        %v6550 = vrot.slane %v3464, 6
        %v6551 = vrot.slane %v3471, 6
        %v6556 = vrot.slane %v3640, 5
        %v6557 = vrot.slane %v3647, 5
        %v6562 = vrot.slane %v3814, 4
        %v6563 = vrot.slane %v3821, 4
        %v6568 = vrot.slane %v3984, 3
        %v6569 = vrot.slane %v3991, 3
        %v6574 = vrot.slane %v4160, 2
        %v6575 = vrot.slane %v4167, 2
        %v6580 = vrot.slane %v4334, 1
        %v6581 = vrot.slane %v4341, 1
        %v6586 = vrot.slane %v4680, 7
        %v6587 = vrot.slane %v4687, 7
        %v6592 = vrot.slane %v4854, 6
        %v6593 = vrot.slane %v4861, 6
        %v6598 = vrot.slane %v5025, 5
        %v6599 = vrot.slane %v5032, 5
        %v6604 = vrot.slane %v5201, 4
        %v6605 = vrot.slane %v5208, 4
        %v6610 = vrot.slane %v5375, 3
        %v6611 = vrot.slane %v5382, 3
        %v6616 = vrot.slane %v5545, 2
        %v6617 = vrot.slane %v5552, 2
        %v6622 = vrot.slane %v5721, 1
        %v6623 = vrot.slane %v5728, 1
        %v6626 = vsel %vm6507, %v3119, %v6544
        %v6627 = vsel %vm6507, %v3126, %v6545
        %v6628 = vsel %vm6510, %v6626, %v6550
        %v6629 = vsel %vm6510, %v6627, %v6551
        %v6630 = vsel %vm6513, %v6628, %v6556
        %v6631 = vsel %vm6513, %v6629, %v6557
        %v6632 = vsel %vm6516, %v6630, %v6562
        %v6633 = vsel %vm6516, %v6631, %v6563
        %v6634 = vsel %vm6519, %v6632, %v6568
        %v6635 = vsel %vm6519, %v6633, %v6569
        %v6636 = vsel %vm6522, %v6634, %v6574
        %v6637 = vsel %vm6522, %v6635, %v6575
        %v6638 = vsel %vm6525, %v6636, %v6580
        %v6639 = vsel %vm6525, %v6637, %v6581
        %v6640 = vsel %vm6507, %v4504, %v6586
        %v6641 = vsel %vm6507, %v4511, %v6587
        %v6642 = vsel %vm6510, %v6640, %v6592
        %v6643 = vsel %vm6510, %v6641, %v6593
        %v6644 = vsel %vm6513, %v6642, %v6598
        %v6645 = vsel %vm6513, %v6643, %v6599
        %v6646 = vsel %vm6516, %v6644, %v6604
        %v6647 = vsel %vm6516, %v6645, %v6605
        %v6648 = vsel %vm6519, %v6646, %v6610
        %v6649 = vsel %vm6519, %v6647, %v6611
        %v6650 = vsel %vm6522, %v6648, %v6616
        %v6651 = vsel %vm6522, %v6649, %v6617
        %v6652 = vsel %vm6525, %v6650, %v6622
        %v6653 = vsel %vm6525, %v6651, %v6623
        %v6656 = vrot.slane %v6065, 7
        %v6657 = vrot.slane %v6072, 7
        %v6662 = vrot.slane %v6241, 6
        %v6663 = vrot.slane %v6248, 6
        %v6668 = vrot.slane %v6415, 5
        %v6669 = vrot.slane %v6422, 5
        %v6672 = vsel %vm6507, %v5895, %v6656
        %v6673 = vsel %vm6507, %v5902, %v6657
        %v6674 = vsel %vm6510, %v6672, %v6662
        %v6675 = vsel %vm6510, %v6673, %v6663
        %v6676 = vsel %vm6513, %v6674, %v6668
        %v6677 = vsel %vm6513, %v6675, %v6669
        %v6678 = vld [vmem:[%s172] sm:$0xff]
        %vm6679 = vcmask 293888
        %v6681 = vsel %vm6679, %v6678, 0
        %v6684 = vsel %vm6516, %v6676, 0
        %v6687 = vsel %vm6516, %v6677, 0
        %6689 = vmatprep.subr.mxu0 0.0
        %6690 = vmatpush1.msra.mxu0 0.0
        %6691 = vmatprep.subr.mxu0 0.0
        %6692 = vmatpush1.msra.mxu0 0.0
        %6693 = vmatprep.subr.mxu0 0.0
        %6694 = vmatpush1.msra.mxu0 0.0
        %6695 = vmatprep.subr.mxu0 0.0
        %6696 = vmatpush1.msra.mxu0 0.0
        %6697 = vmatprep.subr.mxu0 0.0
        %6698 = vmatpush1.msra.mxu0 0.0
        %6699 = vmatprep.subr.mxu0 0.0
        %6700 = vmatpush1.msra.mxu0 0.0
        %6701 = vmatprep.subr.mxu0 0.0
        %6702 = vmatpush1.msra.mxu0 0.0
        %6703 = vmatprep.subr.mxu0 0.0
        %6704 = vmatpush1.msra.mxu0 0.0
        %6705 = vmatprep.subr.mxu0 0.0
        %6706 = vmatpush1.msra.mxu0 0.0
        %6707 = vmatprep.subr.mxu0 0.0
        %6708 = vmatpush1.msra.mxu0 0.0
        %6709 = vmatprep.subr.mxu0 0.0
        %6710 = vmatpush1.msra.mxu0 0.0
        %6711 = vmatprep.subr.mxu0 %v6687
        %6712 = vmatpush1.msra.mxu0 %v6684
        %6713 = vmatprep.subr.mxu0 %v6653
        %6714 = vmatpush1.msra.mxu0 %v6652
        %6715 = vmatprep.subr.mxu0 %v6639
        %6716 = vmatpush1.msra.mxu0 %v6638
        %6717 = vmatprep.subr.mxu0 %v6541
        %6718 = vmatpush1.msra.mxu0 %v6540
        %6719 = vmatprep.subr.mxu0 %v6527
        %6720 = vmatpush1.msra.mxu0 %v6526
        %6721 = vmatprep.subr.mxu0 0.0
        %6722 = vmatpush2.msra.mxu0 0.0
        %6723 = vmatprep.subr.mxu0 0.0
        %6724 = vmatpush2.msra.mxu0 0.0
        %6725 = vmatprep.subr.mxu0 0.0
        %6726 = vmatpush2.msra.mxu0 0.0
        %6727 = vmatprep.subr.mxu0 0.0
        %6728 = vmatpush2.msra.mxu0 0.0
        %6729 = vmatprep.subr.mxu0 0.0
        %6730 = vmatpush2.msra.mxu0 0.0
        %6731 = vmatprep.subr.mxu0 0.0
        %6732 = vmatpush2.msra.mxu0 0.0
        %6733 = vmatprep.subr.mxu0 0.0
        %6734 = vmatpush2.msra.mxu0 0.0
        %6735 = vmatprep.subr.mxu0 0.0
        %6736 = vmatpush2.msra.mxu0 0.0
        %6737 = vmatprep.subr.mxu0 0.0
        %6738 = vmatpush2.msra.mxu0 0.0
        %6739 = vmatprep.subr.mxu0 0.0
        %6740 = vmatpush2.msra.mxu0 0.0
        %6741 = vmatprep.subr.mxu0 0.0
        %6742 = vmatpush2.msra.mxu0 0.0
        %6743 = vmatprep.subr.mxu0 0.0
        %6744 = vmatpush2.msra.mxu0 0.0
        %6745 = vmatprep.subr.mxu0 0.0
        %6746 = vmatpush2.msra.mxu0 0.0
        %6747 = vmatprep.subr.mxu0 0.0
        %6748 = vmatpush2.msra.mxu0 0.0
        %6749 = vmatprep.subr.mxu0 0.0
        %6750 = vmatpush2.msra.mxu0 0.0
        %6751 = vmatprep.subr.mxu0 0.0
        %6752 = vmatpush2.msra.mxu0 0.0
        %6753 = vmatprep.mubr.f32.mxu0 0.0
        %6754 = vmatmul.mubr.f32.gmra.mxu0 %v6681
        %v6755 = vpop.f32.mrf.mxu0
        %v6756 = vadd.f32 0.0, %v6755
        %v6757 = vpop.f32.mrf.mxu0
        %v6758 = vadd.f32 0.0, %v6757
        %6759 = vdwg.mxu0
        %v6762 = vcombine.low %v6756, %v6758
        %v6763 = vcombine.high %v6756, %v6758
        %v6765 = vunpack.c.l.s4 1966171168
        %v6766 = vunpack.c.0.s8 %v6765
        %v6767 = vlaneseq
        %v6768 = vshrl.u32 %v6767, 7
        %v6769 = vsub.s32 %v6766, %v6768
        %v6770 = vrot.slane %v6762, %v6769
        %v6772 = vunpack.c.l.s4 1966171168
        %v6773 = vunpack.c.0.s8 %v6772
        %v6774 = vlaneseq
        %v6775 = vshrl.u32 %v6774, 7
        %v6776 = vsub.s32 %v6773, %v6775
        %v6777 = vrot.slane %v6763, %v6776
        %v6778 = vcombine.high %v6770, %v6770
        %v6779 = vcombine.high %v6777, %v6777
        %v6781 = vunpack.c.l.s4 1966171168
        %v6782 = vunpack.c.0.s8 %v6781
        %v6783 = vlaneseq
        %v6784 = vshrl.u32 %v6783, 7
        %v6785 = vsub.s32 %v6782, %v6784
        %v6786 = vrot.slane %v6770, %v6785
        %v6788 = vunpack.c.l.s4 1966171168
        %v6789 = vunpack.c.0.s8 %v6788
        %v6790 = vlaneseq
        %v6791 = vshrl.u32 %v6790, 7
        %v6792 = vsub.s32 %v6789, %v6791
        %v6793 = vrot.slane %v6777, %v6792
        %v6795 = vunpack.c.l.s4 1966171168
        %v6796 = vunpack.c.0.s8 %v6795
        %v6797 = vlaneseq
        %v6798 = vshrl.u32 %v6797, 7
        %v6799 = vsub.s32 %v6796, %v6798
        %v6800 = vrot.slane %v6778, %v6799
        %v6802 = vunpack.c.l.s4 1966171168
        %v6803 = vunpack.c.0.s8 %v6802
        %v6804 = vlaneseq
        %v6805 = vshrl.u32 %v6804, 7
        %v6806 = vsub.s32 %v6803, %v6805
        %v6807 = vrot.slane %v6779, %v6806
        %v6808 = vcombine.high %v6786, %v6786
        %v6809 = vcombine.high %v6793, %v6793
        %v6810 = vcombine.high %v6800, %v6800
        %v6811 = vcombine.high %v6807, %v6807
        %v6820 = vlaneseq
        %v6821 = vshrl.u32 %v6820, 7
        %v6822 = vsub.s32 0, %v6821
        %v6823 = vrot.slane %v6786, %v6822
        %v6824 = vlaneseq
        %v6825 = vshrl.u32 %v6824, 7
        %v6826 = vsub.s32 1, %v6825
        %v6827 = vrot.slane %v6786, %v6826
        %v6828 = vlaneseq
        %v6829 = vshrl.u32 %v6828, 7
        %v6830 = vsub.s32 0, %v6829
        %v6831 = vrot.slane %v6800, %v6830
        %v6832 = vlaneseq
        %v6833 = vshrl.u32 %v6832, 7
        %v6834 = vsub.s32 1, %v6833
        %v6835 = vrot.slane %v6800, %v6834
        %v6836 = vlaneseq
        %v6837 = vshrl.u32 %v6836, 7
        %v6838 = vsub.s32 0, %v6837
        %v6839 = vrot.slane %v6808, %v6838
        %v6840 = vlaneseq
        %v6841 = vshrl.u32 %v6840, 7
        %v6842 = vsub.s32 1, %v6841
        %v6843 = vrot.slane %v6808, %v6842
        %v6844 = vlaneseq
        %v6845 = vshrl.u32 %v6844, 7
        %v6846 = vsub.s32 0, %v6845
        %v6847 = vrot.slane %v6810, %v6846
        %v6848 = vlaneseq
        %v6849 = vshrl.u32 %v6848, 7
        %v6850 = vsub.s32 1, %v6849
        %v6851 = vrot.slane %v6810, %v6850
        %v6852 = vlaneseq
        %v6853 = vshrl.u32 %v6852, 7
        %v6854 = vsub.s32 0, %v6853
        %v6855 = vrot.slane %v6793, %v6854
        %v6856 = vlaneseq
        %v6857 = vshrl.u32 %v6856, 7
        %v6858 = vsub.s32 1, %v6857
        %v6859 = vrot.slane %v6793, %v6858
        %v6860 = vlaneseq
        %v6861 = vshrl.u32 %v6860, 7
        %v6862 = vsub.s32 0, %v6861
        %v6863 = vrot.slane %v6807, %v6862
        %v6864 = vlaneseq
        %v6865 = vshrl.u32 %v6864, 7
        %v6866 = vsub.s32 1, %v6865
        %v6867 = vrot.slane %v6807, %v6866
        %v6868 = vlaneseq
        %v6869 = vshrl.u32 %v6868, 7
        %v6870 = vsub.s32 0, %v6869
        %v6871 = vrot.slane %v6809, %v6870
        %v6872 = vlaneseq
        %v6873 = vshrl.u32 %v6872, 7
        %v6874 = vsub.s32 1, %v6873
        %v6875 = vrot.slane %v6809, %v6874
        %v6876 = vlaneseq
        %v6877 = vshrl.u32 %v6876, 7
        %v6878 = vsub.s32 0, %v6877
        %v6879 = vrot.slane %v6811, %v6878
        %v6880 = vlaneseq
        %v6881 = vshrl.u32 %v6880, 7
        %v6882 = vsub.s32 1, %v6881
        %v6883 = vrot.slane %v6811, %v6882
        %v6900 = vsel %vm6507, %v6823, 0.0
        %v6901 = vsel %vm6507, %v6827, 0.0
        %v6902 = vadd.f32 %v6900, %v6901
        %6903 = vadd.xlane.f32.xlu0 %v6902
        %v6904 = vpop.xlane.xlu0 %6903
        %v6905 = vsel %vm6507, %v6831, 0.0
        %v6906 = vsel %vm6507, %v6835, 0.0
        %v6907 = vadd.f32 %v6905, %v6906
        %6908 = vadd.xlane.f32.xlu0 %v6907
        %v6909 = vpop.xlane.xlu0 %6908
        %v6910 = vsel %vm6507, %v6839, 0.0
        %v6911 = vsel %vm6507, %v6843, 0.0
        %v6912 = vadd.f32 %v6910, %v6911
        %6913 = vadd.xlane.f32.xlu0 %v6912
        %v6914 = vpop.xlane.xlu0 %6913
        %v6915 = vsel %vm6507, %v6847, 0.0
        %v6916 = vsel %vm6507, %v6851, 0.0
        %v6917 = vadd.f32 %v6915, %v6916
        %6918 = vadd.xlane.f32.xlu0 %v6917
        %v6919 = vpop.xlane.xlu0 %6918
        %v6920 = vsel %vm6507, %v6855, 0.0
        %v6921 = vsel %vm6507, %v6859, 0.0
        %v6922 = vadd.f32 %v6920, %v6921
        %6923 = vadd.xlane.f32.xlu0 %v6922
        %v6924 = vpop.xlane.xlu0 %6923
        %v6925 = vsel %vm6507, %v6863, 0.0
        %v6926 = vsel %vm6507, %v6867, 0.0
        %v6927 = vadd.f32 %v6925, %v6926
        %6928 = vadd.xlane.f32.xlu0 %v6927
        %v6929 = vpop.xlane.xlu0 %6928
        %v6930 = vsel %vm6507, %v6871, 0.0
        %v6931 = vsel %vm6507, %v6875, 0.0
        %v6932 = vadd.f32 %v6930, %v6931
        %6933 = vadd.xlane.f32.xlu0 %v6932
        %v6934 = vpop.xlane.xlu0 %6933
        %v6935 = vsel %vm6507, %v6879, 0.0
        %v6936 = vsel %vm6507, %v6883, 0.0
        %v6937 = vadd.f32 %v6935, %v6936
        %6938 = vadd.xlane.f32.xlu0 %v6937
        %v6939 = vpop.xlane.xlu0 %6938
        %v6940 = vrcp.pop 256.0
        %v6941 = vmul.f32 %v6904, %v6940
        %v6942 = vmul.f32 %v6909, %v6940
        %v6943 = vmul.f32 %v6914, %v6940
        %v6944 = vmul.f32 %v6919, %v6940
        %v6945 = vmul.f32 %v6924, %v6940
        %v6946 = vmul.f32 %v6929, %v6940
        %v6947 = vmul.f32 %v6934, %v6940
        %v6948 = vmul.f32 %v6939, %v6940
        %v6957 = vlaneseq
        %v6958 = vshrl.u32 %v6957, 7
        %v6959 = vsub.s32 0, %v6958
        %v6960 = vrot.slane %v6941, %v6959
        %v6961 = vlaneseq
        %v6962 = vshrl.u32 %v6961, 7
        %v6963 = vsub.s32 0, %v6962
        %v6964 = vrot.slane %v6942, %v6963
        %v6965 = vlaneseq
        %v6966 = vshrl.u32 %v6965, 7
        %v6967 = vsub.s32 0, %v6966
        %v6968 = vrot.slane %v6943, %v6967
        %v6969 = vlaneseq
        %v6970 = vshrl.u32 %v6969, 7
        %v6971 = vsub.s32 0, %v6970
        %v6972 = vrot.slane %v6944, %v6971
        %v6973 = vlaneseq
        %v6974 = vshrl.u32 %v6973, 7
        %v6975 = vsub.s32 0, %v6974
        %v6976 = vrot.slane %v6945, %v6975
        %v6977 = vlaneseq
        %v6978 = vshrl.u32 %v6977, 7
        %v6979 = vsub.s32 0, %v6978
        %v6980 = vrot.slane %v6946, %v6979
        %v6981 = vlaneseq
        %v6982 = vshrl.u32 %v6981, 7
        %v6983 = vsub.s32 0, %v6982
        %v6984 = vrot.slane %v6947, %v6983
        %v6985 = vlaneseq
        %v6986 = vshrl.u32 %v6985, 7
        %v6987 = vsub.s32 0, %v6986
        %v6988 = vrot.slane %v6948, %v6987
        %v6997 = vsub.f32 %v6786, %v6960
        %v6998 = vsub.f32 %v6800, %v6964
        %v6999 = vsub.f32 %v6808, %v6968
        %v7000 = vsub.f32 %v6810, %v6972
        %v7001 = vsub.f32 %v6793, %v6976
        %v7002 = vsub.f32 %v6807, %v6980
        %v7003 = vsub.f32 %v6809, %v6984
        %v7004 = vsub.f32 %v6811, %v6988
        %v7005 = vmul.f32 %v6997, %v6997
        %v7006 = vmul.f32 %v6998, %v6998
        %v7007 = vmul.f32 %v6999, %v6999
        %v7008 = vmul.f32 %v7000, %v7000
        %v7009 = vmul.f32 %v7001, %v7001
        %v7010 = vmul.f32 %v7002, %v7002
        %v7011 = vmul.f32 %v7003, %v7003
        %v7012 = vmul.f32 %v7004, %v7004
        %v7021 = vlaneseq
        %v7022 = vshrl.u32 %v7021, 7
        %v7023 = vsub.s32 0, %v7022
        %v7024 = vrot.slane %v7005, %v7023
        %v7025 = vlaneseq
        %v7026 = vshrl.u32 %v7025, 7
        %v7027 = vsub.s32 1, %v7026
        %v7028 = vrot.slane %v7005, %v7027
        %v7029 = vlaneseq
        %v7030 = vshrl.u32 %v7029, 7
        %v7031 = vsub.s32 0, %v7030
        %v7032 = vrot.slane %v7006, %v7031
        %v7033 = vlaneseq
        %v7034 = vshrl.u32 %v7033, 7
        %v7035 = vsub.s32 1, %v7034
        %v7036 = vrot.slane %v7006, %v7035
        %v7037 = vlaneseq
        %v7038 = vshrl.u32 %v7037, 7
        %v7039 = vsub.s32 0, %v7038
        %v7040 = vrot.slane %v7007, %v7039
        %v7041 = vlaneseq
        %v7042 = vshrl.u32 %v7041, 7
        %v7043 = vsub.s32 1, %v7042
        %v7044 = vrot.slane %v7007, %v7043
        %v7045 = vlaneseq
        %v7046 = vshrl.u32 %v7045, 7
        %v7047 = vsub.s32 0, %v7046
        %v7048 = vrot.slane %v7008, %v7047
        %v7049 = vlaneseq
        %v7050 = vshrl.u32 %v7049, 7
        %v7051 = vsub.s32 1, %v7050
        %v7052 = vrot.slane %v7008, %v7051
        %v7053 = vlaneseq
        %v7054 = vshrl.u32 %v7053, 7
        %v7055 = vsub.s32 0, %v7054
        %v7056 = vrot.slane %v7009, %v7055
        %v7057 = vlaneseq
        %v7058 = vshrl.u32 %v7057, 7
        %v7059 = vsub.s32 1, %v7058
        %v7060 = vrot.slane %v7009, %v7059
        %v7061 = vlaneseq
        %v7062 = vshrl.u32 %v7061, 7
        %v7063 = vsub.s32 0, %v7062
        %v7064 = vrot.slane %v7010, %v7063
        %v7065 = vlaneseq
        %v7066 = vshrl.u32 %v7065, 7
        %v7067 = vsub.s32 1, %v7066
        %v7068 = vrot.slane %v7010, %v7067
        %v7069 = vlaneseq
        %v7070 = vshrl.u32 %v7069, 7
        %v7071 = vsub.s32 0, %v7070
        %v7072 = vrot.slane %v7011, %v7071
        %v7073 = vlaneseq
        %v7074 = vshrl.u32 %v7073, 7
        %v7075 = vsub.s32 1, %v7074
        %v7076 = vrot.slane %v7011, %v7075
        %v7077 = vlaneseq
        %v7078 = vshrl.u32 %v7077, 7
        %v7079 = vsub.s32 0, %v7078
        %v7080 = vrot.slane %v7012, %v7079
        %v7081 = vlaneseq
        %v7082 = vshrl.u32 %v7081, 7
        %v7083 = vsub.s32 1, %v7082
        %v7084 = vrot.slane %v7012, %v7083
        %v7101 = vsel %vm6507, %v7024, 0.0
        %v7102 = vsel %vm6507, %v7028, 0.0
        %v7103 = vadd.f32 %v7101, %v7102
        %7104 = vadd.xlane.f32.xlu0 %v7103
        %v7105 = vpop.xlane.xlu0 %7104
        %v7106 = vsel %vm6507, %v7032, 0.0
        %v7107 = vsel %vm6507, %v7036, 0.0
        %v7108 = vadd.f32 %v7106, %v7107
        %7109 = vadd.xlane.f32.xlu0 %v7108
        %v7110 = vpop.xlane.xlu0 %7109
        %v7111 = vsel %vm6507, %v7040, 0.0
        %v7112 = vsel %vm6507, %v7044, 0.0
        %v7113 = vadd.f32 %v7111, %v7112
        %7114 = vadd.xlane.f32.xlu0 %v7113
        %v7115 = vpop.xlane.xlu0 %7114
        %v7116 = vsel %vm6507, %v7048, 0.0
        %v7117 = vsel %vm6507, %v7052, 0.0
        %v7118 = vadd.f32 %v7116, %v7117
        %7119 = vadd.xlane.f32.xlu0 %v7118
        %v7120 = vpop.xlane.xlu0 %7119
        %v7121 = vsel %vm6507, %v7056, 0.0
        %v7122 = vsel %vm6507, %v7060, 0.0
        %v7123 = vadd.f32 %v7121, %v7122
        %7124 = vadd.xlane.f32.xlu0 %v7123
        %v7125 = vpop.xlane.xlu0 %7124
        %v7126 = vsel %vm6507, %v7064, 0.0
        %v7127 = vsel %vm6507, %v7068, 0.0
        %v7128 = vadd.f32 %v7126, %v7127
        %7129 = vadd.xlane.f32.xlu0 %v7128
        %v7130 = vpop.xlane.xlu0 %7129
        %v7131 = vsel %vm6507, %v7072, 0.0
        %v7132 = vsel %vm6507, %v7076, 0.0
        %v7133 = vadd.f32 %v7131, %v7132
        %7134 = vadd.xlane.f32.xlu0 %v7133
        %v7135 = vpop.xlane.xlu0 %7134
        %v7136 = vsel %vm6507, %v7080, 0.0
        %v7137 = vsel %vm6507, %v7084, 0.0
        %v7138 = vadd.f32 %v7136, %v7137
        %7139 = vadd.xlane.f32.xlu0 %v7138
        %v7140 = vpop.xlane.xlu0 %7139
        %v7141 = vmul.f32 %v7105, %v6940
        %v7142 = vmul.f32 %v7110, %v6940
        %v7143 = vmul.f32 %v7115, %v6940
        %v7144 = vmul.f32 %v7120, %v6940
        %v7145 = vmul.f32 %v7125, %v6940
        %v7146 = vmul.f32 %v7130, %v6940
        %v7147 = vmul.f32 %v7135, %v6940
        %v7148 = vmul.f32 %v7140, %v6940
        %v7149 = vadd.f32 %v7141, 1e-05
        %v7150 = vadd.f32 %v7142, 1e-05
        %v7151 = vadd.f32 %v7143, 1e-05
        %v7152 = vadd.f32 %v7144, 1e-05
        %v7153 = vadd.f32 %v7145, 1e-05
        %v7154 = vadd.f32 %v7146, 1e-05
        %v7155 = vadd.f32 %v7147, 1e-05
        %v7156 = vadd.f32 %v7148, 1e-05
        %v7157 = vrsqrt.pop %v7149
        %v7158 = vrsqrt.pop %v7150
        %v7159 = vrsqrt.pop %v7151
        %v7160 = vrsqrt.pop %v7152
        %v7161 = vrsqrt.pop %v7153
        %v7162 = vrsqrt.pop %v7154
        %v7163 = vrsqrt.pop %v7155
        %v7164 = vrsqrt.pop %v7156
        %v7173 = vlaneseq
        %v7174 = vshrl.u32 %v7173, 7
        %v7175 = vsub.s32 0, %v7174
        %v7176 = vrot.slane %v7157, %v7175
        %v7177 = vlaneseq
        %v7178 = vshrl.u32 %v7177, 7
        %v7179 = vsub.s32 0, %v7178
        %v7180 = vrot.slane %v7158, %v7179
        %v7181 = vlaneseq
        %v7182 = vshrl.u32 %v7181, 7
        %v7183 = vsub.s32 0, %v7182
        %v7184 = vrot.slane %v7159, %v7183
        %v7185 = vlaneseq
        %v7186 = vshrl.u32 %v7185, 7
        %v7187 = vsub.s32 0, %v7186
        %v7188 = vrot.slane %v7160, %v7187
        %v7189 = vlaneseq
        %v7190 = vshrl.u32 %v7189, 7
        %v7191 = vsub.s32 0, %v7190
        %v7192 = vrot.slane %v7161, %v7191
        %v7193 = vlaneseq
        %v7194 = vshrl.u32 %v7193, 7
        %v7195 = vsub.s32 0, %v7194
        %v7196 = vrot.slane %v7162, %v7195
        %v7197 = vlaneseq
        %v7198 = vshrl.u32 %v7197, 7
        %v7199 = vsub.s32 0, %v7198
        %v7200 = vrot.slane %v7163, %v7199
        %v7201 = vlaneseq
        %v7202 = vshrl.u32 %v7201, 7
        %v7203 = vsub.s32 0, %v7202
        %v7204 = vrot.slane %v7164, %v7203
        %v7213 = vmul.f32 %v6997, %v7176
        %v7214 = vmul.f32 %v6998, %v7180
        %v7215 = vmul.f32 %v6999, %v7184
        %v7216 = vmul.f32 %v7000, %v7188
        %v7217 = vmul.f32 %v7001, %v7192
        %v7218 = vmul.f32 %v7002, %v7196
        %v7219 = vmul.f32 %v7003, %v7200
        %v7220 = vmul.f32 %v7004, %v7204
        %v7221 = vmax.f32 %v7213, 0.0
        %v7222 = vmax.f32 %v7214, 0.0
        %v7223 = vmax.f32 %v7215, 0.0
        %v7224 = vmax.f32 %v7216, 0.0
        %v7225 = vmax.f32 %v7217, 0.0
        %v7226 = vmax.f32 %v7218, 0.0
        %v7227 = vmax.f32 %v7219, 0.0
        %v7228 = vmax.f32 %v7220, 0.0
        %v7237 = vcombine.low %v7221, %v7222
        %v7238 = vcombine.low %v7223, %v7224
        %v7239 = vcombine.low %v7225, %v7226
        %v7240 = vcombine.low %v7227, %v7228
        %v7242 = vunpack.c.l.s4 1966171168
        %v7243 = vunpack.c.0.s8 %v7242
        %v7244 = vlaneseq
        %v7245 = vshrl.u32 %v7244, 7
        %v7246 = vsub.s32 %v7243, %v7245
        %v7247 = vrot.slane %v7237, %v7246
        %v7249 = vunpack.c.l.s4 1966171168
        %v7250 = vunpack.c.0.s8 %v7249
        %v7251 = vlaneseq
        %v7252 = vshrl.u32 %v7251, 7
        %v7253 = vsub.s32 %v7250, %v7252
        %v7254 = vrot.slane %v7238, %v7253
        %v7256 = vunpack.c.l.s4 1966171168
        %v7257 = vunpack.c.0.s8 %v7256
        %v7258 = vlaneseq
        %v7259 = vshrl.u32 %v7258, 7
        %v7260 = vsub.s32 %v7257, %v7259
        %v7261 = vrot.slane %v7239, %v7260
        %v7263 = vunpack.c.l.s4 1966171168
        %v7264 = vunpack.c.0.s8 %v7263
        %v7265 = vlaneseq
        %v7266 = vshrl.u32 %v7265, 7
        %v7267 = vsub.s32 %v7264, %v7266
        %v7268 = vrot.slane %v7240, %v7267
        %v7269 = vcombine.low %v7247, %v7254
        %v7270 = vcombine.high %v7247, %v7254
        %v7271 = vcombine.low %v7261, %v7268
        %v7272 = vcombine.high %v7261, %v7268
        %v7274 = vunpack.c.l.s4 1966171168
        %v7275 = vunpack.c.0.s8 %v7274
        %v7276 = vlaneseq
        %v7277 = vshrl.u32 %v7276, 7
        %v7278 = vsub.s32 %v7275, %v7277
        %v7279 = vrot.slane %v7269, %v7278
        %v7281 = vunpack.c.l.s4 1966171168
        %v7282 = vunpack.c.0.s8 %v7281
        %v7283 = vlaneseq
        %v7284 = vshrl.u32 %v7283, 7
        %v7285 = vsub.s32 %v7282, %v7284
        %v7286 = vrot.slane %v7270, %v7285
        %v7288 = vunpack.c.l.s4 1966171168
        %v7289 = vunpack.c.0.s8 %v7288
        %v7290 = vlaneseq
        %v7291 = vshrl.u32 %v7290, 7
        %v7292 = vsub.s32 %v7289, %v7291
        %v7293 = vrot.slane %v7271, %v7292
        %v7295 = vunpack.c.l.s4 1966171168
        %v7296 = vunpack.c.0.s8 %v7295
        %v7297 = vlaneseq
        %v7298 = vshrl.u32 %v7297, 7
        %v7299 = vsub.s32 %v7296, %v7298
        %v7300 = vrot.slane %v7272, %v7299
        %v7301 = vcombine.low %v7279, %v7293
        %v7302 = vcombine.low %v7286, %v7300
        %7305 = vst [vmem:[%s163] sm:$0xff] %v7301
        %7306 = vst [vmem:[%s163 + $0x8] sm:$0xff] %v7302
        %s7307 = sand.u32 %s90, 1
        %s7308 = scalar_lea.sflag [#allocation3], %s7307
        %s7309 = sand.u32 %s90, 1
        %s7310 = smul.addr %s7309, 16
        %s7311 = scalar_lea.vmem [#allocation2], %s7310
        // Predicated region
        $region29: #{tpu_custom_call.1} parent=27 // pred_check
          %p7312 = pneg %p100
        $region30: #{tpu_custom_call.1} parent=27 // pred_check_branch
          %7314 = sbr.rel (%p7312) target = $region32
        $region31: #{tpu_custom_call.1} parent=27 // pred_region
          %s7316 = ssub.s32 256, 256
          %7317 = vsyncadd %s7308, %s7316
          %s7318 = smul.addr %s21, 2
          %s7319 = smul.addr %s20, 2
          %s7320 = sadd.s32 %s7318, %s7319
          %s7321 = smul.addr %s7320, 128
          %s7322 = scalar_lea.hbm %s2, %s7321
          %s7324 = sshll.u32 %s7311, 4
          %s7325 = int_to_ptr.vmem [resolvable:$true] %s7324
          %7327 = dma.vmem_to_hbm [thread:$0]  %s7325, 256, %s7322, %s7308
        $region32: #{tpu_custom_call.1} parent=27 // pred_fallthru
          _
      $region28: #{tpu_custom_call.1} parent=5 // pred_fallthru
        _
      %p7328 = scmp.le.s32.totalorder 2, %s11
      // Predicated region
      $region33: #{tpu_custom_call.1} parent=5 // pred_check
        %p7329 = pneg %p7328
      $region34: #{tpu_custom_call.1} parent=5 // pred_check_branch
        %7331 = sbr.rel (%p7329) target = $region36
      $region35: #{tpu_custom_call.1} parent=5 // pred_region
        %s7332 = ssub.s32 %s11, 2
        // Predicated region
        $region37: #{tpu_custom_call.1} parent=35 // pred_check
          %p7333 = pneg %p106
        $region38: #{tpu_custom_call.1} parent=35 // pred_check_branch
          %7335 = sbr.rel (%p7333) target = $region40
        $region39: #{tpu_custom_call.1} parent=35 // pred_region
          %s7336 = sand.u32 %s91, 1
          %s7337 = scalar_lea.sflag [#allocation3], %s7336
          %s7338 = sand.u32 %s91, 1
          %s7339 = smul.addr %s7338, 16
          %s7340 = scalar_lea.vmem [#allocation2], %s7339
          %7341 = dma.done %s7337, 256
        $region40: #{tpu_custom_call.1} parent=35 // pred_fallthru
          _
      $region36: #{tpu_custom_call.1} parent=5 // pred_fallthru
        _
    $region6: #{tpu_custom_call.1} parent=1 // loop_footer
      %s15 = sadd.s32 1, %s11
    $region7: #{tpu_custom_call.1} parent=1 // loop_footer_branch
      %10 = sbr.rel target = $region3
    $region8: #{tpu_custom_call.1} parent=1 // loop_exit
      _
    %7342 = vsyncpa [#allocation3], 1
    %s7343 = scalar_lea.sflag [#allocation3], 1
    %7344 = vsyncpa %s7343, 1

</llo_original>
